<compile_context>
chip_gen: v7x
topology: tpu7x:2x2x1
jax: 0.10.0
libtpu: 0.0.40
codegen_flags: <defaults>
</compile_context>

<pallas_src>
import functools
import math

import jax
import jax.numpy as jnp
from jax import lax
from jax.experimental import pallas as pl
from jax.experimental.pallas import tpu as pltpu


def _attention_pool_kernel(x_ref, pos0_ref, seg_ref, segt_ref,
                           w_q_ref, w_k_ref, w_v_ref,
                           b_q_ref, b_k_ref, b_v_ref,
                           w_pT_ref, b_p_ref, o_ref,
                           *, num_heads, approx_recip):
    f32 = jnp.float32
    C = w_q_ref.shape[0]
    H = num_heads
    ch = C // H
    N, Bt = seg_ref.shape                 # N = batch_tile * S
    S = N // Bt
    scale2 = 1.0 / math.sqrt(ch)          # (1/ch**0.25)**2, applied once to q
    cd = x_ref.dtype                      # MXU operand dtype (bf16 or f32)

    X = x_ref[0]                          # [C, N]   pos[:,1:] already folded in
    seg = seg_ref[...]                    # [N, Bt]  0/1 segment indicator
    segt = segt_ref[...]                  # [Bt, N]

    # ---- mean token (token 0) ---------------------------------------------
    # X already contains pos[:, 1:]; pos0_ref = pos[:, 0] - mean(pos[:, 1:]),
    # so mean(X) + pos0_ref == mean(x) + pos[:, 0], matching the reference.
    mean = jnp.dot(X, seg, preferred_element_type=f32) * (1.0 / S)      # [C, Bt]
    xt0 = (mean + pos0_ref[...]).astype(cd)                             # [C, Bt]

    # ---- projections --------------------------------------------------------
    q0 = (jnp.dot(w_q_ref[...], xt0, preferred_element_type=f32)
          + b_q_ref[...]) * scale2                                      # [C, Bt]
    k0 = jnp.dot(w_k_ref[...], xt0, preferred_element_type=f32) + b_k_ref[...]
    v0 = jnp.dot(w_v_ref[...], xt0, preferred_element_type=f32) + b_v_ref[...]
    kx = jnp.dot(w_k_ref[...], X, preferred_element_type=f32) + b_k_ref[...]   # [C, N]
    vx = jnp.dot(w_v_ref[...], X, preferred_element_type=f32) + b_v_ref[...]   # [C, N]

    # ---- per-head scores for the single (mean-token) query ------------------
    # lane-group broadcast of q0[:, b] across that batch's S token lanes
    # (kept on the MXU, see TODO(synk) at the top of the file).
    q0b = jnp.dot(q0.astype(cd), segt, preferred_element_type=f32)      # [C, N]
    # per-head channel-group sums done as sublane-group reductions (XLU),
    # not 0/1 head-selector matmuls (MXU).
    s_x = jnp.sum((q0b * kx).reshape(H, ch, N), axis=1)                 # [H, N]
    s_mean = jnp.sum((q0 * k0).reshape(H, ch, Bt), axis=1)              # [H, Bt]

    # ---- segmented softmax over each batch element's S + 1 tokens ------------
    in_seg = segt[None, :, :] > 0                                        # [1, Bt, N]
    masked = jnp.where(in_seg, s_x[:, None, :], jnp.float32(-1e30))      # [H, Bt, N]
    m = jnp.maximum(jnp.max(masked, axis=-1), s_mean)                    # [H, Bt]
    # round m once to the compute dtype so numerator and denominator use the
    # exact same stabilizer (softmax stays exact w.r.t. the choice of m).
    m_cd = m.astype(cd)
    m_b = jnp.dot(m_cd, segt, preferred_element_type=f32)                # [H, N]
    p_x = jnp.exp(s_x - m_b).astype(cd)                                  # [H, N]
    p_m = jnp.exp(s_mean - m_cd.astype(f32))                             # [H, Bt]
    denom = jnp.dot(p_x, seg, preferred_element_type=f32) + p_m          # [H, Bt]
    inv = pl.reciprocal(denom, approx=approx_recip)                      # [H, Bt]

    # ---- attention output for token 0 ----------------------------------------
    # per-head -> per-channel broadcasts on the VPU via sublane-group
    # reshape/broadcast; normalization applied once at the very end.
    vxp = (vx.reshape(H, ch, N) * p_x.astype(f32)[:, None, :]).reshape(C, N)
    a0 = jnp.dot(vxp.astype(cd), seg, preferred_element_type=f32)        # [C, Bt]
    a0 = a0 + (v0.reshape(H, ch, Bt) * p_m[:, None, :]).reshape(C, Bt)
    a0 = (a0.reshape(H, ch, Bt) * inv[:, None, :]).reshape(C, Bt)

    # ---- fused output projection, lane-dense [Bt, Dout] slab ------------------
    out = lax.dot_general(a0.astype(cd), w_pT_ref[...],
                          (((0,), (0,)), ((), ())),
                          preferred_element_type=f32)                    # [Bt, Dout]
    o_ref[0] = (out + b_p_ref[...]).astype(o_ref.dtype)


def _vmem_estimate(C, Dout, N, Bt, itemsize):
    const = (3 * C * C + C * Dout + 2 * N * Bt) * itemsize               # weights + seg
    const += (5 * C + Dout) * 4                                          # small f32 biases
    dyn = 2 * C * N * itemsize + 2 * Bt * Dout * 4                       # x / out (2-buf)
    interm = 8 * C * N * 4                                               # f32 intermediates
    return const + dyn + interm


def _pick_batch_tile(B, S, C, Dout, itemsize, budget_bytes):
    divisors = [d for d in range(1, B + 1) if B % d == 0]
    fitting = [d for d in divisors
               if _vmem_estimate(C, Dout, d * S, d, itemsize) <= budget_bytes] or [1]
    # keep G = B // bt >= 2 so the "parallel" grid axis shards across v7x's
    # two TensorCores (harmless on 1-TC v5e / v6e).
    pref = [d for d in fitting if B // d >= 2] or fitting
    aligned = [d for d in pref if (d * S) % 128 == 0] or pref
    return max(aligned)


def attention_pool_2d(x, pos_emb, w_qkv, b_qkv, w_proj, b_proj, num_heads,
                      batch_tile=None, compute_dtype=jnp.bfloat16):
    """x: [B, C, H, W]; returns [B, Dout]. Matches AttentionPool2d.forward."""
    B, C, Hs, Ws = x.shape
    S = Hs * Ws
    Dout = w_proj.shape[0]
    assert C % num_heads == 0
    cd = jnp.dtype(compute_dtype)
    itemsize = cd.itemsize
    f32 = jnp.float32

    budget = 48 * 2 ** 20
    if batch_tile is None:
        batch_tile = _pick_batch_tile(B, S, C, Dout, itemsize, budget)
    assert B % batch_tile == 0, (B, batch_tile)
    G = B // batch_tile
    N = batch_tile * S

    # ---- wrapper-side prep (tiny, or fused with the relayout XLA must do) ----
    pos = pos_emb.astype(f32)
    pos_sp = pos[:, 1:]                                                  # [C, S]
    # slab: channels on sublanes, (batch, token) on lanes; the spatial pos
    # embedding is folded in here (fuses with the transpose) -> no tiled-pos
    # input, no in-kernel full-slab add.
    # TODO(synk): for very large x, fuse this relayout into x's producer.
    x_slab = (x.astype(f32).reshape(G, batch_tile, C, S).transpose(0, 2, 1, 3)
              + pos_sp[None, :, None, :]).reshape(G, C, N).astype(cd)
    # adjusted mean-token positional bias (kernel's mean is over pos-folded X).
    pos0_adj = (pos[:, 0:1] - pos_sp.mean(axis=1, keepdims=True)).astype(f32)

    w_qkv_c = w_qkv.astype(cd)
    w_q, w_k, w_v = w_qkv_c[:C], w_qkv_c[C:2 * C], w_qkv_c[2 * C:]
    b_q = b_qkv[:C].reshape(C, 1).astype(f32)
    b_k = b_qkv[C:2 * C].reshape(C, 1).astype(f32)
    b_v = b_qkv[2 * C:].reshape(C, 1).astype(f32)
    w_pT = w_proj.T.astype(cd)                                           # [C, Dout]
    b_p = b_proj.reshape(1, Dout).astype(f32)

    seg = (jnp.arange(N)[:, None] // S
           == jnp.arange(batch_tile)[None, :]).astype(cd)                # [N, Bt]
    segt = seg.T                                                         # [Bt, N]

    kernel = functools.partial(_attention_pool_kernel, num_heads=num_heads,
                               approx_recip=bool(cd == jnp.bfloat16))

    vmem_est = _vmem_estimate(C, Dout, N, batch_tile, itemsize)
    vmem_limit = int(min(64 * 2 ** 20, max(2 * vmem_est, 32 * 2 ** 20)))

    args = (x_slab, pos0_adj, seg, segt, w_q, w_k, w_v, b_q, b_k, b_v, w_pT, b_p)

    def build(single_buffer_consts):
        # grid-invariant operands are fetched once; single-buffer them so the
        # big weights are not held twice in VMEM.
        ckw = ({"pipeline_mode": pl.Buffered(1)} if single_buffer_consts else {})

        def cspec(shape):
            return pl.BlockSpec(shape, lambda g: (0, 0), **ckw)

        return pl.pallas_call(
            kernel,
            out_shape=jax.ShapeDtypeStruct((G, batch_tile, Dout), x.dtype),
            grid_spec=pltpu.PrefetchScalarGridSpec(
                num_scalar_prefetch=0,
                grid=(G,),
                in_specs=[
                    pl.BlockSpec((1, C, N), lambda g: (g, 0, 0)),        # x slab
                    cspec((C, 1)),                                       # pos0_adj
                    cspec((N, batch_tile)),                              # seg
                    cspec((batch_tile, N)),                              # seg^T
                    cspec((C, C)),                                       # w_q
                    cspec((C, C)),                                       # w_k
                    cspec((C, C)),                                       # w_v
                    cspec((C, 1)),                                       # b_q
                    cspec((C, 1)),                                       # b_k
                    cspec((C, 1)),                                       # b_v
                    cspec((C, Dout)),                                    # w_proj^T
                    cspec((1, Dout)),                                    # b_proj
                ],
                out_specs=pl.BlockSpec((1, batch_tile, Dout),
                                       lambda g: (g, 0, 0)),
            ),
            compiler_params=pltpu.CompilerParams(
                dimension_semantics=("parallel",),
                vmem_limit_bytes=vmem_limit),
        )

    try:
        out = build(True)(*args)
    except Exception:
        # pl.Buffered(1) unsupported on this jax/libtpu combo: fall back to
        # default double-buffering (correctness identical).
        out = build(False)(*args)
    return out.reshape(B, Dout)


def _reference(x, pos_emb, w_qkv, b_qkv, w_proj, b_proj, num_heads):
    """Pure-JAX port of the PyTorch forward, for verification."""
    B, C, H, W = x.shape
    S = H * W
    xr = x.reshape(B, C, S)
    xr = jnp.concatenate([xr.mean(axis=-1, keepdims=True), xr], axis=-1)
    xr = xr + pos_emb[None]
    qkv = jnp.einsum('oc,bct->bot', w_qkv, xr) + b_qkv[None, :, None]
    T = qkv.shape[-1]
    ch = C // num_heads
    q, k, v = jnp.split(qkv, 3, axis=1)
    scale = 1.0 / math.sqrt(math.sqrt(ch))
    q = (q * scale).reshape(B * num_heads, ch, T)
    k = (k * scale).reshape(B * num_heads, ch, T)
    v = v.reshape(B * num_heads, ch, T)
    w = jnp.einsum('bct,bcs->bts', q, k)
    w = jax.nn.softmax(w, axis=-1)
    a = jnp.einsum('bts,bcs->bct', w, v).reshape(B, C, T)
    out = jnp.einsum('oc,bct->bot', w_proj, a) + b_proj[None, :, None]
    return out[:, :, 0]


if __name__ == "__main__":
    # Module config: spacial_dim=4, embed_dim=32, num_heads_channels=16
    # -> num_heads=2, output_dim=embed_dim.
    B = 4
    spacial_dim = 4
    embed_dim = 32
    num_heads_channels = 16
    num_heads = embed_dim // num_heads_channels
    output_dim = embed_dim
    T = spacial_dim ** 2 + 1

    key = jax.random.PRNGKey(0)
    kx, kpos, kwq, kbq, kwp, kbp = jax.random.split(key, 6)

    x = jax.random.normal(kx, (B, embed_dim, spacial_dim, spacial_dim),
                          dtype=jnp.float32)
    pos_emb = (jax.random.normal(kpos, (embed_dim, T), dtype=jnp.float32)
               / math.sqrt(embed_dim))
    w_qkv = jax.random.normal(kwq, (3 * embed_dim, embed_dim),
                              dtype=jnp.float32) * 0.05
    b_qkv = jax.random.normal(kbq, (3 * embed_dim,), dtype=jnp.float32) * 0.05
    w_proj = jax.random.normal(kwp, (output_dim, embed_dim),
                               dtype=jnp.float32) * 0.05
    b_proj = jax.random.normal(kbp, (output_dim,), dtype=jnp.float32) * 0.05

    ref = _reference(x, pos_emb, w_qkv, b_qkv, w_proj, b_proj, num_heads)

    # f32 compute path: near-exact match with the reference module.
    out_f32 = attention_pool_2d(x, pos_emb, w_qkv, b_qkv, w_proj, b_proj,
                                num_heads, compute_dtype=jnp.float32)
    out_f32 = jax.block_until_ready(out_f32)
    assert out_f32.shape == (B, output_dim), out_f32.shape
    assert jnp.allclose(out_f32, ref, atol=1e-2, rtol=1e-2), \
        f"f32 max abs err {jnp.max(jnp.abs(out_f32 - ref))}"

    # bf16 MXU-operand path (default): tolerance loosened per bf16 rounding.
    out_bf16 = attention_pool_2d(x, pos_emb, w_qkv, b_qkv, w_proj, b_proj,
                                 num_heads, compute_dtype=jnp.bfloat16)
    out_bf16 = jax.block_until_ready(out_bf16)
    assert out_bf16.shape == (B, output_dim), out_bf16.shape
    assert jnp.allclose(out_bf16, ref, atol=4e-2, rtol=4e-2), \
        f"bf16 max abs err {jnp.max(jnp.abs(out_bf16 - ref))}"

    print("KERNEL_OK")
</pallas_src>

<mosaic_0001>
module attributes {stable_mosaic.version = 11 : i64} {
  func.func @_attention_pool_kernel(%arg0: i32, %arg1: memref<1x32x32xf32, #tpu.memory_space<vmem>>, %arg2: memref<32x1xf32, #tpu.memory_space<vmem>>, %arg3: memref<32x2xf32, #tpu.memory_space<vmem>>, %arg4: memref<2x32xf32, #tpu.memory_space<vmem>>, %arg5: memref<32x32xf32, #tpu.memory_space<vmem>>, %arg6: memref<32x32xf32, #tpu.memory_space<vmem>>, %arg7: memref<32x32xf32, #tpu.memory_space<vmem>>, %arg8: memref<32x1xf32, #tpu.memory_space<vmem>>, %arg9: memref<32x1xf32, #tpu.memory_space<vmem>>, %arg10: memref<32x1xf32, #tpu.memory_space<vmem>>, %arg11: memref<32x32xf32, #tpu.memory_space<vmem>>, %arg12: memref<1x32xf32, #tpu.memory_space<vmem>>, %arg13: memref<1x2x32xf32, #tpu.memory_space<vmem>>) attributes {dimension_semantics = [#tpu.dimension_semantics<parallel>], iteration_bounds = array<i64: 2>, scalar_prefetch = 0 : i64, scratch_operands = 0 : i64, tpu.core_type = #tpu.core_type<tc>, window_params = [{transform_indices = @transform_0, window_bounds = array<i64: 1, 32, 32>}, {pipeline_mode = #tpu.pipeline_mode<synchronous>, transform_indices = @transform_1, window_bounds = array<i64: 32, 1>}, {pipeline_mode = #tpu.pipeline_mode<synchronous>, transform_indices = @transform_2, window_bounds = array<i64: 32, 2>}, {pipeline_mode = #tpu.pipeline_mode<synchronous>, transform_indices = @transform_3, window_bounds = array<i64: 2, 32>}, {pipeline_mode = #tpu.pipeline_mode<synchronous>, transform_indices = @transform_4, window_bounds = array<i64: 32, 32>}, {pipeline_mode = #tpu.pipeline_mode<synchronous>, transform_indices = @transform_5, window_bounds = array<i64: 32, 32>}, {pipeline_mode = #tpu.pipeline_mode<synchronous>, transform_indices = @transform_6, window_bounds = array<i64: 32, 32>}, {pipeline_mode = #tpu.pipeline_mode<synchronous>, transform_indices = @transform_7, window_bounds = array<i64: 32, 1>}, {pipeline_mode = #tpu.pipeline_mode<synchronous>, transform_indices = @transform_8, window_bounds = array<i64: 32, 1>}, {pipeline_mode = #tpu.pipeline_mode<synchronous>, transform_indices = @transform_9, window_bounds = array<i64: 32, 1>}, {pipeline_mode = #tpu.pipeline_mode<synchronous>, transform_indices = @transform_10, window_bounds = array<i64: 32, 32>}, {pipeline_mode = #tpu.pipeline_mode<synchronous>, transform_indices = @transform_11, window_bounds = array<i64: 1, 32>}, {transform_indices = @transform_12, window_bounds = array<i64: 1, 2, 32>}]} {
    %c0 = arith.constant 0 : index
    %c0_0 = arith.constant 0 : index
    %c0_1 = arith.constant 0 : index
    %0 = vector.load %arg1[%c0, %c0_0, %c0_1] : memref<1x32x32xf32, #tpu.memory_space<vmem>>, vector<1x32x32xf32>
    %1 = vector.shape_cast %0 : vector<1x32x32xf32> to vector<32x32xf32>
    %c0_2 = arith.constant 0 : index
    %c0_3 = arith.constant 0 : index
    %2 = vector.load %arg3[%c0_2, %c0_3] : memref<32x2xf32, #tpu.memory_space<vmem>>, vector<32x2xf32>
    %c0_4 = arith.constant 0 : index
    %c0_5 = arith.constant 0 : index
    %3 = vector.load %arg4[%c0_4, %c0_5] : memref<2x32xf32, #tpu.memory_space<vmem>>, vector<2x32xf32>
    %cst = arith.constant dense<0.000000e+00> : vector<32x2xf32>
    %4 = tpu.matmul %1, %2, %cst {dimension_numbers = #tpu.dot_dimension_numbers<[1], [0], [0], [1], [0, 0, 1, 1], [], []>} : vector<32x32xf32>, vector<32x2xf32>, vector<32x2xf32> -> vector<32x2xf32>
    %cst_6 = arith.constant 6.250000e-02 : f32
    %5 = vector.broadcast %cst_6 : f32 to vector<32x2xf32>
    %6 = arith.mulf %4, %5 : vector<32x2xf32>
    %c0_7 = arith.constant 0 : index
    %c0_8 = arith.constant 0 : index
    %7 = vector.load %arg2[%c0_7, %c0_8] : memref<32x1xf32, #tpu.memory_space<vmem>>, vector<32x1xf32>
    %8 = vector.broadcast %7 : vector<32x1xf32> to vector<32x2xf32>
    %9 = arith.addf %6, %8 : vector<32x2xf32>
    %c0_9 = arith.constant 0 : index
    %c0_10 = arith.constant 0 : index
    %10 = vector.load %arg5[%c0_9, %c0_10] : memref<32x32xf32, #tpu.memory_space<vmem>>, vector<32x32xf32>
    %cst_11 = arith.constant dense<0.000000e+00> : vector<32x2xf32>
    %11 = tpu.matmul %10, %9, %cst_11 {dimension_numbers = #tpu.dot_dimension_numbers<[1], [0], [0], [1], [0, 0, 1, 1], [], []>} : vector<32x32xf32>, vector<32x2xf32>, vector<32x2xf32> -> vector<32x2xf32>
    %c0_12 = arith.constant 0 : index
    %c0_13 = arith.constant 0 : index
    %12 = vector.load %arg8[%c0_12, %c0_13] : memref<32x1xf32, #tpu.memory_space<vmem>>, vector<32x1xf32>
    %13 = vector.broadcast %12 : vector<32x1xf32> to vector<32x2xf32>
    %14 = arith.addf %11, %13 : vector<32x2xf32>
    %cst_14 = arith.constant 2.500000e-01 : f32
    %15 = vector.broadcast %cst_14 : f32 to vector<32x2xf32>
    %16 = arith.mulf %14, %15 : vector<32x2xf32>
    %c0_15 = arith.constant 0 : index
    %c0_16 = arith.constant 0 : index
    %17 = vector.load %arg6[%c0_15, %c0_16] : memref<32x32xf32, #tpu.memory_space<vmem>>, vector<32x32xf32>
    %cst_17 = arith.constant dense<0.000000e+00> : vector<32x2xf32>
    %18 = tpu.matmul %17, %9, %cst_17 {dimension_numbers = #tpu.dot_dimension_numbers<[1], [0], [0], [1], [0, 0, 1, 1], [], []>} : vector<32x32xf32>, vector<32x2xf32>, vector<32x2xf32> -> vector<32x2xf32>
    %c0_18 = arith.constant 0 : index
    %c0_19 = arith.constant 0 : index
    %19 = vector.load %arg9[%c0_18, %c0_19] : memref<32x1xf32, #tpu.memory_space<vmem>>, vector<32x1xf32>
    %20 = vector.broadcast %19 : vector<32x1xf32> to vector<32x2xf32>
    %21 = arith.addf %18, %20 : vector<32x2xf32>
    %c0_20 = arith.constant 0 : index
    %c0_21 = arith.constant 0 : index
    %22 = vector.load %arg7[%c0_20, %c0_21] : memref<32x32xf32, #tpu.memory_space<vmem>>, vector<32x32xf32>
    %cst_22 = arith.constant dense<0.000000e+00> : vector<32x2xf32>
    %23 = tpu.matmul %22, %9, %cst_22 {dimension_numbers = #tpu.dot_dimension_numbers<[1], [0], [0], [1], [0, 0, 1, 1], [], []>} : vector<32x32xf32>, vector<32x2xf32>, vector<32x2xf32> -> vector<32x2xf32>
    %c0_23 = arith.constant 0 : index
    %c0_24 = arith.constant 0 : index
    %24 = vector.load %arg10[%c0_23, %c0_24] : memref<32x1xf32, #tpu.memory_space<vmem>>, vector<32x1xf32>
    %25 = vector.broadcast %24 : vector<32x1xf32> to vector<32x2xf32>
    %26 = arith.addf %23, %25 : vector<32x2xf32>
    %c0_25 = arith.constant 0 : index
    %c0_26 = arith.constant 0 : index
    %27 = vector.load %arg6[%c0_25, %c0_26] : memref<32x32xf32, #tpu.memory_space<vmem>>, vector<32x32xf32>
    %cst_27 = arith.constant dense<0.000000e+00> : vector<32x32xf32>
    %28 = tpu.matmul %27, %1, %cst_27 {dimension_numbers = #tpu.dot_dimension_numbers<[1], [0], [0], [1], [0, 0, 1, 1], [], []>} : vector<32x32xf32>, vector<32x32xf32>, vector<32x32xf32> -> vector<32x32xf32>
    %c0_28 = arith.constant 0 : index
    %c0_29 = arith.constant 0 : index
    %29 = vector.load %arg9[%c0_28, %c0_29] : memref<32x1xf32, #tpu.memory_space<vmem>>, vector<32x1xf32>
    %30 = vector.broadcast %29 : vector<32x1xf32> to vector<32x32xf32>
    %31 = arith.addf %28, %30 : vector<32x32xf32>
    %c0_30 = arith.constant 0 : index
    %c0_31 = arith.constant 0 : index
    %32 = vector.load %arg7[%c0_30, %c0_31] : memref<32x32xf32, #tpu.memory_space<vmem>>, vector<32x32xf32>
    %cst_32 = arith.constant dense<0.000000e+00> : vector<32x32xf32>
    %33 = tpu.matmul %32, %1, %cst_32 {dimension_numbers = #tpu.dot_dimension_numbers<[1], [0], [0], [1], [0, 0, 1, 1], [], []>} : vector<32x32xf32>, vector<32x32xf32>, vector<32x32xf32> -> vector<32x32xf32>
    %c0_33 = arith.constant 0 : index
    %c0_34 = arith.constant 0 : index
    %34 = vector.load %arg10[%c0_33, %c0_34] : memref<32x1xf32, #tpu.memory_space<vmem>>, vector<32x1xf32>
    %35 = vector.broadcast %34 : vector<32x1xf32> to vector<32x32xf32>
    %36 = arith.addf %33, %35 : vector<32x32xf32>
    %cst_35 = arith.constant dense<0.000000e+00> : vector<32x32xf32>
    %37 = tpu.matmul %16, %3, %cst_35 {dimension_numbers = #tpu.dot_dimension_numbers<[1], [0], [0], [1], [0, 0, 1, 1], [], []>} : vector<32x2xf32>, vector<2x32xf32>, vector<32x32xf32> -> vector<32x32xf32>
    %38 = arith.mulf %37, %31 : vector<32x32xf32>
    %39 = vector.shape_cast %38 : vector<32x32xf32> to vector<2x16x32xf32>
    %cst_36 = arith.constant dense<0.000000e+00> : vector<2x32xf32>
    %40 = vector.multi_reduction <add>, %39, %cst_36 [1] : vector<2x16x32xf32> to vector<2x32xf32>
    %41 = arith.mulf %16, %21 : vector<32x2xf32>
    %42 = vector.shape_cast %41 : vector<32x2xf32> to vector<2x16x2xf32>
    %cst_37 = arith.constant dense<0.000000e+00> : vector<2x2xf32>
    %43 = vector.multi_reduction <add>, %42, %cst_37 [1] : vector<2x16x2xf32> to vector<2x2xf32>
    %44 = vector.shape_cast %3 : vector<2x32xf32> to vector<1x2x32xf32>
    %cst_38 = arith.constant 0.000000e+00 : f32
    %45 = vector.broadcast %cst_38 : f32 to vector<1x2x32xf32>
    %46 = arith.cmpf ogt, %44, %45 : vector<1x2x32xf32>
    %47 = vector.shape_cast %40 : vector<2x32xf32> to vector<2x1x32xf32>
    %cst_39 = arith.constant -1.000000e+30 : f32
    %48 = vector.shape_cast %46 : vector<1x2x32xi1> to vector<1x2x32xi1>
    %49 = vector.broadcast %48 : vector<1x2x32xi1> to vector<2x2x32xi1>
    %50 = vector.shape_cast %47 : vector<2x1x32xf32> to vector<2x1x32xf32>
    %51 = vector.broadcast %50 : vector<2x1x32xf32> to vector<2x2x32xf32>
    %52 = vector.broadcast %cst_39 : f32 to vector<2x2x32xf32>
    %53 = arith.select %49, %51, %52 : vector<2x2x32xi1>, vector<2x2x32xf32>
    %cst_40 = arith.constant dense<0xFF800000> : vector<2x2xf32>
    %54 = vector.multi_reduction <maximumf>, %53, %cst_40 [2] : vector<2x2x32xf32> to vector<2x2xf32>
    %55 = arith.maximumf %54, %43 : vector<2x2xf32>
    %cst_41 = arith.constant dense<0.000000e+00> : vector<2x32xf32>
    %56 = tpu.matmul %55, %3, %cst_41 {dimension_numbers = #tpu.dot_dimension_numbers<[1], [0], [0], [1], [0, 0, 1, 1], [], []>} : vector<2x2xf32>, vector<2x32xf32>, vector<2x32xf32> -> vector<2x32xf32>
    %57 = arith.subf %40, %56 : vector<2x32xf32>
    %58 = math.exp %57 : vector<2x32xf32>
    %59 = arith.subf %43, %55 : vector<2x2xf32>
    %60 = math.exp %59 : vector<2x2xf32>
    %cst_42 = arith.constant dense<0.000000e+00> : vector<2x2xf32>
    %61 = tpu.matmul %58, %2, %cst_42 {dimension_numbers = #tpu.dot_dimension_numbers<[1], [0], [0], [1], [0, 0, 1, 1], [], []>} : vector<2x32xf32>, vector<32x2xf32>, vector<2x2xf32> -> vector<2x2xf32>
    %62 = arith.addf %61, %60 : vector<2x2xf32>
    %63 = tpu.reciprocal %62 : vector<2x2xf32> -> vector<2x2xf32>
    %64 = vector.shape_cast %36 : vector<32x32xf32> to vector<2x16x32xf32>
    %65 = vector.shape_cast %58 : vector<2x32xf32> to vector<2x1x32xf32>
    %66 = vector.broadcast %65 : vector<2x1x32xf32> to vector<2x16x32xf32>
    %67 = arith.mulf %64, %66 : vector<2x16x32xf32>
    %68 = vector.shape_cast %67 : vector<2x16x32xf32> to vector<32x32xf32>
    %cst_43 = arith.constant dense<0.000000e+00> : vector<32x2xf32>
    %69 = tpu.matmul %68, %2, %cst_43 {dimension_numbers = #tpu.dot_dimension_numbers<[1], [0], [0], [1], [0, 0, 1, 1], [], []>} : vector<32x32xf32>, vector<32x2xf32>, vector<32x2xf32> -> vector<32x2xf32>
    %70 = vector.shape_cast %26 : vector<32x2xf32> to vector<2x16x2xf32>
    %71 = vector.shape_cast %60 : vector<2x2xf32> to vector<2x1x2xf32>
    %72 = vector.broadcast %71 : vector<2x1x2xf32> to vector<2x16x2xf32>
    %73 = arith.mulf %70, %72 : vector<2x16x2xf32>
    %74 = vector.shape_cast %73 : vector<2x16x2xf32> to vector<32x2xf32>
    %75 = arith.addf %69, %74 : vector<32x2xf32>
    %76 = vector.shape_cast %75 : vector<32x2xf32> to vector<2x16x2xf32>
    %77 = vector.shape_cast %63 : vector<2x2xf32> to vector<2x1x2xf32>
    %78 = vector.broadcast %77 : vector<2x1x2xf32> to vector<2x16x2xf32>
    %79 = arith.mulf %76, %78 : vector<2x16x2xf32>
    %80 = vector.shape_cast %79 : vector<2x16x2xf32> to vector<32x2xf32>
    %c0_44 = arith.constant 0 : index
    %c0_45 = arith.constant 0 : index
    %81 = vector.load %arg11[%c0_44, %c0_45] : memref<32x32xf32, #tpu.memory_space<vmem>>, vector<32x32xf32>
    %cst_46 = arith.constant dense<0.000000e+00> : vector<2x32xf32>
    %82 = tpu.matmul %80, %81, %cst_46 {dimension_numbers = #tpu.dot_dimension_numbers<[0], [0], [1], [1], [0, 1, 1, 1], [], []>} : vector<32x2xf32>, vector<32x32xf32>, vector<2x32xf32> -> vector<2x32xf32>
    %c0_47 = arith.constant 0 : index
    %c0_48 = arith.constant 0 : index
    %83 = vector.load %arg12[%c0_47, %c0_48] : memref<1x32xf32, #tpu.memory_space<vmem>>, vector<1x32xf32>
    %84 = vector.broadcast %83 : vector<1x32xf32> to vector<2x32xf32>
    %85 = arith.addf %82, %84 : vector<2x32xf32>
    %c0_49 = arith.constant 0 : index
    %c0_50 = arith.constant 0 : index
    %c0_51 = arith.constant 0 : index
    %86 = vector.load %arg13[%c0_49, %c0_50, %c0_51] : memref<1x2x32xf32, #tpu.memory_space<vmem>>, vector<1x2x32xf32>
    %87 = vector.shape_cast %86 : vector<1x2x32xf32> to vector<2x32xf32>
    %88 = vector.shape_cast %85 : vector<2x32xf32> to vector<1x2x32xf32>
    tpu.vector_store %arg13[%c0_49, %c0_50, %c0_51], %88 {strides = array<i32>} : memref<1x2x32xf32, #tpu.memory_space<vmem>>, vector<1x2x32xf32>,
    return
  }
  func.func @transform_0(%arg0: i32) -> (i32, i32, i32) {
    %c0_i32 = arith.constant 0 : i32
    %c0_i32_0 = arith.constant 0 : i32
    %c0_i32_1 = arith.constant 0 : i32
    return %arg0, %c0_i32, %c0_i32_0 : i32, i32, i32
  }
  func.func @transform_1(%arg0: i32) -> (i32, i32) {
    %c0_i32 = arith.constant 0 : i32
    %c0_i32_0 = arith.constant 0 : i32
    %c0_i32_1 = arith.constant 0 : i32
    return %c0_i32, %c0_i32_0 : i32, i32
  }
  func.func @transform_2(%arg0: i32) -> (i32, i32) {
    %c0_i32 = arith.constant 0 : i32
    %c0_i32_0 = arith.constant 0 : i32
    %c0_i32_1 = arith.constant 0 : i32
    return %c0_i32, %c0_i32_0 : i32, i32
  }
  func.func @transform_3(%arg0: i32) -> (i32, i32) {
    %c0_i32 = arith.constant 0 : i32
    %c0_i32_0 = arith.constant 0 : i32
    %c0_i32_1 = arith.constant 0 : i32
    return %c0_i32, %c0_i32_0 : i32, i32
  }
  func.func @transform_4(%arg0: i32) -> (i32, i32) {
    %c0_i32 = arith.constant 0 : i32
    %c0_i32_0 = arith.constant 0 : i32
    %c0_i32_1 = arith.constant 0 : i32
    return %c0_i32, %c0_i32_0 : i32, i32
  }
  func.func @transform_5(%arg0: i32) -> (i32, i32) {
    %c0_i32 = arith.constant 0 : i32
    %c0_i32_0 = arith.constant 0 : i32
    %c0_i32_1 = arith.constant 0 : i32
    return %c0_i32, %c0_i32_0 : i32, i32
  }
  func.func @transform_6(%arg0: i32) -> (i32, i32) {
    %c0_i32 = arith.constant 0 : i32
    %c0_i32_0 = arith.constant 0 : i32
    %c0_i32_1 = arith.constant 0 : i32
    return %c0_i32, %c0_i32_0 : i32, i32
  }
  func.func @transform_7(%arg0: i32) -> (i32, i32) {
    %c0_i32 = arith.constant 0 : i32
    %c0_i32_0 = arith.constant 0 : i32
    %c0_i32_1 = arith.constant 0 : i32
    return %c0_i32, %c0_i32_0 : i32, i32
  }
  func.func @transform_8(%arg0: i32) -> (i32, i32) {
    %c0_i32 = arith.constant 0 : i32
    %c0_i32_0 = arith.constant 0 : i32
    %c0_i32_1 = arith.constant 0 : i32
    return %c0_i32, %c0_i32_0 : i32, i32
  }
  func.func @transform_9(%arg0: i32) -> (i32, i32) {
    %c0_i32 = arith.constant 0 : i32
    %c0_i32_0 = arith.constant 0 : i32
    %c0_i32_1 = arith.constant 0 : i32
    return %c0_i32, %c0_i32_0 : i32, i32
  }
  func.func @transform_10(%arg0: i32) -> (i32, i32) {
    %c0_i32 = arith.constant 0 : i32
    %c0_i32_0 = arith.constant 0 : i32
    %c0_i32_1 = arith.constant 0 : i32
    return %c0_i32, %c0_i32_0 : i32, i32
  }
  func.func @transform_11(%arg0: i32) -> (i32, i32) {
    %c0_i32 = arith.constant 0 : i32
    %c0_i32_0 = arith.constant 0 : i32
    %c0_i32_1 = arith.constant 0 : i32
    return %c0_i32, %c0_i32_0 : i32, i32
  }
  func.func @transform_12(%arg0: i32) -> (i32, i32, i32) {
    %c0_i32 = arith.constant 0 : i32
    %c0_i32_0 = arith.constant 0 : i32
    %c0_i32_1 = arith.constant 0 : i32
    return %arg0, %c0_i32, %c0_i32_0 : i32, i32, i32
  }
}

module attributes {stable_mosaic.version = 11 : i64} {
  func.func @_attention_pool_kernel(%arg0: i32, %arg1: memref<1x32x32xf32, #tpu.memory_space<vmem>>, %arg2: memref<32x1xf32, #tpu.memory_space<vmem>>, %arg3: memref<32x2xf32, #tpu.memory_space<vmem>>, %arg4: memref<2x32xf32, #tpu.memory_space<vmem>>, %arg5: memref<32x32xf32, #tpu.memory_space<vmem>>, %arg6: memref<32x32xf32, #tpu.memory_space<vmem>>, %arg7: memref<32x32xf32, #tpu.memory_space<vmem>>, %arg8: memref<32x1xf32, #tpu.memory_space<vmem>>, %arg9: memref<32x1xf32, #tpu.memory_space<vmem>>, %arg10: memref<32x1xf32, #tpu.memory_space<vmem>>, %arg11: memref<32x32xf32, #tpu.memory_space<vmem>>, %arg12: memref<1x32xf32, #tpu.memory_space<vmem>>, %arg13: memref<1x2x32xf32, #tpu.memory_space<vmem>>) attributes {dimension_semantics = [#tpu.dimension_semantics<parallel>], iteration_bounds = array<i64: 2>, scalar_prefetch = 0 : i64, scratch_operands = 0 : i64, tpu.core_type = #tpu.core_type<tc>, window_params = [{transform_indices = @transform_0, window_bounds = array<i64: 1, 32, 32>}, {pipeline_mode = #tpu.pipeline_mode<synchronous>, transform_indices = @transform_1, window_bounds = array<i64: 32, 1>}, {pipeline_mode = #tpu.pipeline_mode<synchronous>, transform_indices = @transform_2, window_bounds = array<i64: 32, 2>}, {pipeline_mode = #tpu.pipeline_mode<synchronous>, transform_indices = @transform_3, window_bounds = array<i64: 2, 32>}, {pipeline_mode = #tpu.pipeline_mode<synchronous>, transform_indices = @transform_4, window_bounds = array<i64: 32, 32>}, {pipeline_mode = #tpu.pipeline_mode<synchronous>, transform_indices = @transform_5, window_bounds = array<i64: 32, 32>}, {pipeline_mode = #tpu.pipeline_mode<synchronous>, transform_indices = @transform_6, window_bounds = array<i64: 32, 32>}, {pipeline_mode = #tpu.pipeline_mode<synchronous>, transform_indices = @transform_7, window_bounds = array<i64: 32, 1>}, {pipeline_mode = #tpu.pipeline_mode<synchronous>, transform_indices = @transform_8, window_bounds = array<i64: 32, 1>}, {pipeline_mode = #tpu.pipeline_mode<synchronous>, transform_indices = @transform_9, window_bounds = array<i64: 32, 1>}, {pipeline_mode = #tpu.pipeline_mode<synchronous>, transform_indices = @transform_10, window_bounds = array<i64: 32, 32>}, {pipeline_mode = #tpu.pipeline_mode<synchronous>, transform_indices = @transform_11, window_bounds = array<i64: 1, 32>}, {transform_indices = @transform_12, window_bounds = array<i64: 1, 2, 32>}]} {
    %c0 = arith.constant 0 : index
    %c0_0 = arith.constant 0 : index
    %c0_1 = arith.constant 0 : index
    %0 = vector.load %arg1[%c0, %c0_0, %c0_1] : memref<1x32x32xf32, #tpu.memory_space<vmem>>, vector<1x32x32xf32>
    %1 = vector.shape_cast %0 : vector<1x32x32xf32> to vector<32x32xf32>
    %c0_2 = arith.constant 0 : index
    %c0_3 = arith.constant 0 : index
    %2 = vector.load %arg3[%c0_2, %c0_3] : memref<32x2xf32, #tpu.memory_space<vmem>>, vector<32x2xf32>
    %c0_4 = arith.constant 0 : index
    %c0_5 = arith.constant 0 : index
    %3 = vector.load %arg4[%c0_4, %c0_5] : memref<2x32xf32, #tpu.memory_space<vmem>>, vector<2x32xf32>
    %cst = arith.constant dense<0.000000e+00> : vector<32x2xf32>
    %4 = tpu.matmul %1, %2, %cst {dimension_numbers = #tpu.dot_dimension_numbers<[1], [0], [0], [1], [0, 0, 1, 1], [], []>} : vector<32x32xf32>, vector<32x2xf32>, vector<32x2xf32> -> vector<32x2xf32>
    %cst_6 = arith.constant 6.250000e-02 : f32
    %5 = vector.broadcast %cst_6 : f32 to vector<32x2xf32>
    %6 = arith.mulf %4, %5 : vector<32x2xf32>
    %c0_7 = arith.constant 0 : index
    %c0_8 = arith.constant 0 : index
    %7 = vector.load %arg2[%c0_7, %c0_8] : memref<32x1xf32, #tpu.memory_space<vmem>>, vector<32x1xf32>
    %8 = vector.broadcast %7 : vector<32x1xf32> to vector<32x2xf32>
    %9 = arith.addf %6, %8 : vector<32x2xf32>
    %c0_9 = arith.constant 0 : index
    %c0_10 = arith.constant 0 : index
    %10 = vector.load %arg5[%c0_9, %c0_10] : memref<32x32xf32, #tpu.memory_space<vmem>>, vector<32x32xf32>
    %cst_11 = arith.constant dense<0.000000e+00> : vector<32x2xf32>
    %11 = tpu.matmul %10, %9, %cst_11 {dimension_numbers = #tpu.dot_dimension_numbers<[1], [0], [0], [1], [0, 0, 1, 1], [], []>} : vector<32x32xf32>, vector<32x2xf32>, vector<32x2xf32> -> vector<32x2xf32>
    %c0_12 = arith.constant 0 : index
    %c0_13 = arith.constant 0 : index
    %12 = vector.load %arg8[%c0_12, %c0_13] : memref<32x1xf32, #tpu.memory_space<vmem>>, vector<32x1xf32>
    %13 = vector.broadcast %12 : vector<32x1xf32> to vector<32x2xf32>
    %14 = arith.addf %11, %13 : vector<32x2xf32>
    %cst_14 = arith.constant 2.500000e-01 : f32
    %15 = vector.broadcast %cst_14 : f32 to vector<32x2xf32>
    %16 = arith.mulf %14, %15 : vector<32x2xf32>
    %c0_15 = arith.constant 0 : index
    %c0_16 = arith.constant 0 : index
    %17 = vector.load %arg6[%c0_15, %c0_16] : memref<32x32xf32, #tpu.memory_space<vmem>>, vector<32x32xf32>
    %cst_17 = arith.constant dense<0.000000e+00> : vector<32x2xf32>
    %18 = tpu.matmul %17, %9, %cst_17 {dimension_numbers = #tpu.dot_dimension_numbers<[1], [0], [0], [1], [0, 0, 1, 1], [], []>} : vector<32x32xf32>, vector<32x2xf32>, vector<32x2xf32> -> vector<32x2xf32>
    %c0_18 = arith.constant 0 : index
    %c0_19 = arith.constant 0 : index
    %19 = vector.load %arg9[%c0_18, %c0_19] : memref<32x1xf32, #tpu.memory_space<vmem>>, vector<32x1xf32>
    %20 = vector.broadcast %19 : vector<32x1xf32> to vector<32x2xf32>
    %21 = arith.addf %18, %20 : vector<32x2xf32>
    %c0_20 = arith.constant 0 : index
    %c0_21 = arith.constant 0 : index
    %22 = vector.load %arg7[%c0_20, %c0_21] : memref<32x32xf32, #tpu.memory_space<vmem>>, vector<32x32xf32>
    %cst_22 = arith.constant dense<0.000000e+00> : vector<32x2xf32>
    %23 = tpu.matmul %22, %9, %cst_22 {dimension_numbers = #tpu.dot_dimension_numbers<[1], [0], [0], [1], [0, 0, 1, 1], [], []>} : vector<32x32xf32>, vector<32x2xf32>, vector<32x2xf32> -> vector<32x2xf32>
    %c0_23 = arith.constant 0 : index
    %c0_24 = arith.constant 0 : index
    %24 = vector.load %arg10[%c0_23, %c0_24] : memref<32x1xf32, #tpu.memory_space<vmem>>, vector<32x1xf32>
    %25 = vector.broadcast %24 : vector<32x1xf32> to vector<32x2xf32>
    %26 = arith.addf %23, %25 : vector<32x2xf32>
    %c0_25 = arith.constant 0 : index
    %c0_26 = arith.constant 0 : index
    %27 = vector.load %arg6[%c0_25, %c0_26] : memref<32x32xf32, #tpu.memory_space<vmem>>, vector<32x32xf32>
    %cst_27 = arith.constant dense<0.000000e+00> : vector<32x32xf32>
    %28 = tpu.matmul %27, %1, %cst_27 {dimension_numbers = #tpu.dot_dimension_numbers<[1], [0], [0], [1], [0, 0, 1, 1], [], []>} : vector<32x32xf32>, vector<32x32xf32>, vector<32x32xf32> -> vector<32x32xf32>
    %c0_28 = arith.constant 0 : index
    %c0_29 = arith.constant 0 : index
    %29 = vector.load %arg9[%c0_28, %c0_29] : memref<32x1xf32, #tpu.memory_space<vmem>>, vector<32x1xf32>
    %30 = vector.broadcast %29 : vector<32x1xf32> to vector<32x32xf32>
    %31 = arith.addf %28, %30 : vector<32x32xf32>
    %c0_30 = arith.constant 0 : index
    %c0_31 = arith.constant 0 : index
    %32 = vector.load %arg7[%c0_30, %c0_31] : memref<32x32xf32, #tpu.memory_space<vmem>>, vector<32x32xf32>
    %cst_32 = arith.constant dense<0.000000e+00> : vector<32x32xf32>
    %33 = tpu.matmul %32, %1, %cst_32 {dimension_numbers = #tpu.dot_dimension_numbers<[1], [0], [0], [1], [0, 0, 1, 1], [], []>} : vector<32x32xf32>, vector<32x32xf32>, vector<32x32xf32> -> vector<32x32xf32>
    %c0_33 = arith.constant 0 : index
    %c0_34 = arith.constant 0 : index
    %34 = vector.load %arg10[%c0_33, %c0_34] : memref<32x1xf32, #tpu.memory_space<vmem>>, vector<32x1xf32>
    %35 = vector.broadcast %34 : vector<32x1xf32> to vector<32x32xf32>
    %36 = arith.addf %33, %35 : vector<32x32xf32>
    %cst_35 = arith.constant dense<0.000000e+00> : vector<32x32xf32>
    %37 = tpu.matmul %16, %3, %cst_35 {dimension_numbers = #tpu.dot_dimension_numbers<[1], [0], [0], [1], [0, 0, 1, 1], [], []>} : vector<32x2xf32>, vector<2x32xf32>, vector<32x32xf32> -> vector<32x32xf32>
    %38 = arith.mulf %37, %31 : vector<32x32xf32>
    %39 = vector.shape_cast %38 : vector<32x32xf32> to vector<2x16x32xf32>
    %cst_36 = arith.constant dense<0.000000e+00> : vector<2x32xf32>
    %40 = vector.multi_reduction <add>, %39, %cst_36 [1] : vector<2x16x32xf32> to vector<2x32xf32>
    %41 = arith.mulf %16, %21 : vector<32x2xf32>
    %42 = vector.shape_cast %41 : vector<32x2xf32> to vector<2x16x2xf32>
    %cst_37 = arith.constant dense<0.000000e+00> : vector<2x2xf32>
    %43 = vector.multi_reduction <add>, %42, %cst_37 [1] : vector<2x16x2xf32> to vector<2x2xf32>
    %44 = vector.shape_cast %3 : vector<2x32xf32> to vector<1x2x32xf32>
    %cst_38 = arith.constant 0.000000e+00 : f32
    %45 = vector.broadcast %cst_38 : f32 to vector<1x2x32xf32>
    %46 = arith.cmpf ogt, %44, %45 : vector<1x2x32xf32>
    %47 = vector.shape_cast %40 : vector<2x32xf32> to vector<2x1x32xf32>
    %cst_39 = arith.constant -1.000000e+30 : f32
    %48 = vector.shape_cast %46 : vector<1x2x32xi1> to vector<1x2x32xi1>
    %49 = vector.broadcast %48 : vector<1x2x32xi1> to vector<2x2x32xi1>
    %50 = vector.shape_cast %47 : vector<2x1x32xf32> to vector<2x1x32xf32>
    %51 = vector.broadcast %50 : vector<2x1x32xf32> to vector<2x2x32xf32>
    %52 = vector.broadcast %cst_39 : f32 to vector<2x2x32xf32>
    %53 = arith.select %49, %51, %52 : vector<2x2x32xi1>, vector<2x2x32xf32>
    %cst_40 = arith.constant dense<0xFF800000> : vector<2x2xf32>
    %54 = vector.multi_reduction <maximumf>, %53, %cst_40 [2] : vector<2x2x32xf32> to vector<2x2xf32>
    %55 = arith.maximumf %54, %43 : vector<2x2xf32>
    %cst_41 = arith.constant dense<0.000000e+00> : vector<2x32xf32>
    %56 = tpu.matmul %55, %3, %cst_41 {dimension_numbers = #tpu.dot_dimension_numbers<[1], [0], [0], [1], [0, 0, 1, 1], [], []>} : vector<2x2xf32>, vector<2x32xf32>, vector<2x32xf32> -> vector<2x32xf32>
    %57 = arith.subf %40, %56 : vector<2x32xf32>
    %58 = math.exp %57 : vector<2x32xf32>
    %59 = arith.subf %43, %55 : vector<2x2xf32>
    %60 = math.exp %59 : vector<2x2xf32>
    %cst_42 = arith.constant dense<0.000000e+00> : vector<2x2xf32>
    %61 = tpu.matmul %58, %2, %cst_42 {dimension_numbers = #tpu.dot_dimension_numbers<[1], [0], [0], [1], [0, 0, 1, 1], [], []>} : vector<2x32xf32>, vector<32x2xf32>, vector<2x2xf32> -> vector<2x2xf32>
    %62 = arith.addf %61, %60 : vector<2x2xf32>
    %63 = tpu.reciprocal %62 : vector<2x2xf32> -> vector<2x2xf32>
    %64 = vector.shape_cast %36 : vector<32x32xf32> to vector<2x16x32xf32>
    %65 = vector.shape_cast %58 : vector<2x32xf32> to vector<2x1x32xf32>
    %66 = vector.broadcast %65 : vector<2x1x32xf32> to vector<2x16x32xf32>
    %67 = arith.mulf %64, %66 : vector<2x16x32xf32>
    %68 = vector.shape_cast %67 : vector<2x16x32xf32> to vector<32x32xf32>
    %cst_43 = arith.constant dense<0.000000e+00> : vector<32x2xf32>
    %69 = tpu.matmul %68, %2, %cst_43 {dimension_numbers = #tpu.dot_dimension_numbers<[1], [0], [0], [1], [0, 0, 1, 1], [], []>} : vector<32x32xf32>, vector<32x2xf32>, vector<32x2xf32> -> vector<32x2xf32>
    %70 = vector.shape_cast %26 : vector<32x2xf32> to vector<2x16x2xf32>
    %71 = vector.shape_cast %60 : vector<2x2xf32> to vector<2x1x2xf32>
    %72 = vector.broadcast %71 : vector<2x1x2xf32> to vector<2x16x2xf32>
    %73 = arith.mulf %70, %72 : vector<2x16x2xf32>
    %74 = vector.shape_cast %73 : vector<2x16x2xf32> to vector<32x2xf32>
    %75 = arith.addf %69, %74 : vector<32x2xf32>
    %76 = vector.shape_cast %75 : vector<32x2xf32> to vector<2x16x2xf32>
    %77 = vector.shape_cast %63 : vector<2x2xf32> to vector<2x1x2xf32>
    %78 = vector.broadcast %77 : vector<2x1x2xf32> to vector<2x16x2xf32>
    %79 = arith.mulf %76, %78 : vector<2x16x2xf32>
    %80 = vector.shape_cast %79 : vector<2x16x2xf32> to vector<32x2xf32>
    %c0_44 = arith.constant 0 : index
    %c0_45 = arith.constant 0 : index
    %81 = vector.load %arg11[%c0_44, %c0_45] : memref<32x32xf32, #tpu.memory_space<vmem>>, vector<32x32xf32>
    %cst_46 = arith.constant dense<0.000000e+00> : vector<2x32xf32>
    %82 = tpu.matmul %80, %81, %cst_46 {dimension_numbers = #tpu.dot_dimension_numbers<[0], [0], [1], [1], [0, 1, 1, 1], [], []>} : vector<32x2xf32>, vector<32x32xf32>, vector<2x32xf32> -> vector<2x32xf32>
    %c0_47 = arith.constant 0 : index
    %c0_48 = arith.constant 0 : index
    %83 = vector.load %arg12[%c0_47, %c0_48] : memref<1x32xf32, #tpu.memory_space<vmem>>, vector<1x32xf32>
    %84 = vector.broadcast %83 : vector<1x32xf32> to vector<2x32xf32>
    %85 = arith.addf %82, %84 : vector<2x32xf32>
    %c0_49 = arith.constant 0 : index
    %c0_50 = arith.constant 0 : index
    %c0_51 = arith.constant 0 : index
    %86 = vector.load %arg13[%c0_49, %c0_50, %c0_51] : memref<1x2x32xf32, #tpu.memory_space<vmem>>, vector<1x2x32xf32>
    %87 = vector.shape_cast %86 : vector<1x2x32xf32> to vector<2x32xf32>
    %88 = vector.shape_cast %85 : vector<2x32xf32> to vector<1x2x32xf32>
    tpu.vector_store %arg13[%c0_49, %c0_50, %c0_51], %88 {strides = array<i32>} : memref<1x2x32xf32, #tpu.memory_space<vmem>>, vector<1x2x32xf32>,
    return
  }
  func.func @transform_0(%arg0: i32) -> (i32, i32, i32) {
    %c0_i32 = arith.constant 0 : i32
    %c0_i32_0 = arith.constant 0 : i32
    %c0_i32_1 = arith.constant 0 : i32
    return %arg0, %c0_i32, %c0_i32_0 : i32, i32, i32
  }
  func.func @transform_1(%arg0: i32) -> (i32, i32) {
    %c0_i32 = arith.constant 0 : i32
    %c0_i32_0 = arith.constant 0 : i32
    %c0_i32_1 = arith.constant 0 : i32
    return %c0_i32, %c0_i32_0 : i32, i32
  }
  func.func @transform_2(%arg0: i32) -> (i32, i32) {
    %c0_i32 = arith.constant 0 : i32
    %c0_i32_0 = arith.constant 0 : i32
    %c0_i32_1 = arith.constant 0 : i32
    return %c0_i32, %c0_i32_0 : i32, i32
  }
  func.func @transform_3(%arg0: i32) -> (i32, i32) {
    %c0_i32 = arith.constant 0 : i32
    %c0_i32_0 = arith.constant 0 : i32
    %c0_i32_1 = arith.constant 0 : i32
    return %c0_i32, %c0_i32_0 : i32, i32
  }
  func.func @transform_4(%arg0: i32) -> (i32, i32) {
    %c0_i32 = arith.constant 0 : i32
    %c0_i32_0 = arith.constant 0 : i32
    %c0_i32_1 = arith.constant 0 : i32
    return %c0_i32, %c0_i32_0 : i32, i32
  }
  func.func @transform_5(%arg0: i32) -> (i32, i32) {
    %c0_i32 = arith.constant 0 : i32
    %c0_i32_0 = arith.constant 0 : i32
    %c0_i32_1 = arith.constant 0 : i32
    return %c0_i32, %c0_i32_0 : i32, i32
  }
  func.func @transform_6(%arg0: i32) -> (i32, i32) {
    %c0_i32 = arith.constant 0 : i32
    %c0_i32_0 = arith.constant 0 : i32
    %c0_i32_1 = arith.constant 0 : i32
    return %c0_i32, %c0_i32_0 : i32, i32
  }
  func.func @transform_7(%arg0: i32) -> (i32, i32) {
    %c0_i32 = arith.constant 0 : i32
    %c0_i32_0 = arith.constant 0 : i32
    %c0_i32_1 = arith.constant 0 : i32
    return %c0_i32, %c0_i32_0 : i32, i32
  }
  func.func @transform_8(%arg0: i32) -> (i32, i32) {
    %c0_i32 = arith.constant 0 : i32
    %c0_i32_0 = arith.constant 0 : i32
    %c0_i32_1 = arith.constant 0 : i32
    return %c0_i32, %c0_i32_0 : i32, i32
  }
  func.func @transform_9(%arg0: i32) -> (i32, i32) {
    %c0_i32 = arith.constant 0 : i32
    %c0_i32_0 = arith.constant 0 : i32
    %c0_i32_1 = arith.constant 0 : i32
    return %c0_i32, %c0_i32_0 : i32, i32
  }
  func.func @transform_10(%arg0: i32) -> (i32, i32) {
    %c0_i32 = arith.constant 0 : i32
    %c0_i32_0 = arith.constant 0 : i32
    %c0_i32_1 = arith.constant 0 : i32
    return %c0_i32, %c0_i32_0 : i32, i32
  }
  func.func @transform_11(%arg0: i32) -> (i32, i32) {
    %c0_i32 = arith.constant 0 : i32
    %c0_i32_0 = arith.constant 0 : i32
    %c0_i32_1 = arith.constant 0 : i32
    return %c0_i32, %c0_i32_0 : i32, i32
  }
  func.func @transform_12(%arg0: i32) -> (i32, i32, i32) {
    %c0_i32 = arith.constant 0 : i32
    %c0_i32_0 = arith.constant 0 : i32
    %c0_i32_1 = arith.constant 0 : i32
    return %arg0, %c0_i32, %c0_i32_0 : i32, i32, i32
  }
}

</mosaic_0001>

<llo_original>
// kernel: tpu_custom_call.1
$region0: #{tpu_custom_call.1}
  #allocation0 [shape = 'u32[]', space=smem, size = 0x4, offset = 0x4, fixed_abs, tag = 'smem constant byte address 0x4 - core index']
  #allocation1 [shape = 'u32[144,128]{1,0:T(1,128)}', space=vmem, size = 0x12000, scoped, tag = 'internal scratch']
  %s0 = inlined_call_operand.vmem [shape: f32[2,32,32], index: 0, kind: input, shape index: {}]
  %s1 = inlined_call_operand.vmem [shape: f32[32,1], index: 1, kind: input, shape index: {}]
  %s2 = inlined_call_operand.vmem [shape: f32[32,2], index: 2, kind: input, shape index: {}]
  %s3 = inlined_call_operand.hbm [shape: f32[2,32], index: 3, kind: input, shape index: {}]
  %s4 = inlined_call_operand.vmem [shape: f32[32,32], index: 4, kind: input, shape index: {}]
  %s5 = inlined_call_operand.vmem [shape: f32[32,32], index: 5, kind: input, shape index: {}]
  %s6 = inlined_call_operand.vmem [shape: f32[32,32], index: 6, kind: input, shape index: {}]
  %s7 = inlined_call_operand.vmem [shape: f32[32,1], index: 7, kind: input, shape index: {}]
  %s8 = inlined_call_operand.vmem [shape: f32[32,1], index: 8, kind: input, shape index: {}]
  %s9 = inlined_call_operand.vmem [shape: f32[32,1], index: 9, kind: input, shape index: {}]
  %s10 = inlined_call_operand.vmem [shape: f32[32,32], index: 10, kind: input, shape index: {}]
  %s11 = inlined_call_operand.vmem [shape: f32[1,32], index: 11, kind: input, shape index: {}]
  %s12 = inlined_call_operand.hbm [shape: f32[2,2,32], index: 12, kind: output, shape index: {}]
  %s13 = sld [smem:[#allocation0]]
  $region85: #{tpu_custom_call.1} parent=0
    _
  %s15 = ssub.s32 1, %s13
  %s16 = scalar_select 0, %s15, %s13
  $region1: #{tpu_custom_call.1} parent=0
    #allocation2 [shape = 'u8[1024]{0}', space=vmem, size = 0x400, scoped, tag = 'input window, operand 3, single buffered']
    #allocation3 [shape = 's32[2]{0}', space=sflag, size = 0x8, scoped, tag = 'scoped memory for tpu_custom_call.1']
    #allocation4 [shape = 's32[2]{0}', space=sflag, size = 0x8, scoped, tag = 'scoped memory for tpu_custom_call.1']
    #allocation5 [shape = 'u8[2048]{0}', space=vmem, size = 0x800, scoped, tag = 'output window, operand 0']
    %17 = vsyncpa [#allocation3], 0
    %18 = vsyncpa [#allocation4], 0
    %s19 = scalar_lea.sflag [#allocation4], 1
    %20 = vsyncpa %s19, 0
    loop: start=0, step=1, limit=4
    $region2: #{tpu_custom_call.1} parent=1 // loop_pre_header
      _
    $region3: #{tpu_custom_call.1} parent=1 // loop_header
      %s22 = sphi 0, %s26
      %p23 = scmp.ge.s32.totalorder %s22, 4
      %s32 = sphi 0, %s34
      %s35 = sphi 0, %s32
      %s36 = sphi 0, %s35
      %s52 = sphi 0, %s36
      %s56 = sphi 0, %s56
      %s58 = sphi 0, %s56
      %s59 = sphi 0, %s58
      %s73 = sphi 0, %s59
      %s77 = sphi 0, %s77
      %s79 = sphi 0, %s77
      %s80 = sphi 0, %s79
      %s94 = sphi 0, %s80
      %s98 = sphi 0, %s98
      %s100 = sphi 0, %s98
      %s101 = sphi 0, %s100
      %s115 = sphi 0, %s101
      %s119 = sphi 0, %s119
      %s121 = sphi 0, %s119
      %s122 = sphi 0, %s121
      %s136 = sphi 0, %s122
      %s140 = sphi 0, %s140
      %s142 = sphi 0, %s140
      %s143 = sphi 0, %s142
      %s157 = sphi 0, %s143
      %s161 = sphi 0, %s161
      %s163 = sphi 0, %s161
      %s164 = sphi 0, %s163
      %s178 = sphi 0, %s164
      %s182 = sphi 0, %s182
      %s184 = sphi 0, %s182
      %s185 = sphi 0, %s184
      %s199 = sphi 0, %s185
      %s203 = sphi 0, %s203
      %s205 = sphi 0, %s203
      %s206 = sphi 0, %s205
      %s220 = sphi 0, %s206
      %s224 = sphi 0, %s224
      %s226 = sphi 0, %s224
      %s227 = sphi 0, %s226
      %s241 = sphi 0, %s227
      %s245 = sphi 0, %s245
      %s247 = sphi 0, %s245
      %s248 = sphi 0, %s247
      %s262 = sphi 0, %s248
      %s266 = sphi 0, %s266
      %s268 = sphi 0, %s266
      %s269 = sphi 0, %s268
      %s283 = sphi 0, %s269
      %s289 = sphi 0, %s291
      %s292 = sphi 0, %s289
      %s293 = sphi 0, %s292
      %s309 = sphi 0, %s293
    $region4: #{tpu_custom_call.1} parent=1 // loop_header_branch
      %25 = sbr.rel (%p23) target = $region8
    $region5: #{tpu_custom_call.1} parent=1 // loop_body
      %s27 = ssub.s32 %s22, 1
      %s28 = ssub.s32 %s22, 2
      %s29 = sadd.s32 %s22, 1
      %s30 = ssub.s32 %s22, %s29
      %p31 = scmp.eq.s32.totalorder %s30, 0
      %s33 = sadd.s32 %s32, 1
      %s34 = scalar_select %p31, %s32, %s33
      %p37 = pneg %p31
      %p38 = scmp.eq.s32.totalorder %s22, 1
      %p39 = por %p37, %p38
      %p40 = scmp.ne.s32.totalorder %s32, %s35
      %p41 = scmp.eq.s32.totalorder %s22, 0
      %p42 = por %p40, %p41
      %p43 = scmp.ne.s32.totalorder %s32, %s35
      %p44 = scmp.eq.s32.totalorder %s27, 1
      %p45 = por %p43, %p44
      %p46 = scmp.ne.s32.totalorder %s35, %s36
      %p47 = scmp.eq.s32.totalorder %s27, 0
      %p48 = por %p46, %p47
      %p49 = scmp.ne.s32.totalorder %s35, %s36
      %p50 = scmp.eq.s32.totalorder %s28, 1
      %p51 = por %p49, %p50
      %p53 = scmp.ne.s32.totalorder %s36, %s52
      %p54 = scmp.eq.s32.totalorder %s28, 0
      %p55 = por %p53, %p54
      %s57 = sadd.s32 %s56, 1
      %p60 = scmp.eq.s32.totalorder %s22, 1
      %p61 = scmp.ne.s32.totalorder %s56, %s58
      %p62 = scmp.eq.s32.totalorder %s22, 0
      %p63 = por %p61, %p62
      %p64 = scmp.ne.s32.totalorder %s56, %s58
      %p65 = scmp.eq.s32.totalorder %s27, 1
      %p66 = por %p64, %p65
      %p67 = scmp.ne.s32.totalorder %s58, %s59
      %p68 = scmp.eq.s32.totalorder %s27, 0
      %p69 = por %p67, %p68
      %p70 = scmp.ne.s32.totalorder %s58, %s59
      %p71 = scmp.eq.s32.totalorder %s28, 1
      %p72 = por %p70, %p71
      %p74 = scmp.ne.s32.totalorder %s59, %s73
      %p75 = scmp.eq.s32.totalorder %s28, 0
      %p76 = por %p74, %p75
      %s78 = sadd.s32 %s77, 1
      %p81 = scmp.eq.s32.totalorder %s22, 1
      %p82 = scmp.ne.s32.totalorder %s77, %s79
      %p83 = scmp.eq.s32.totalorder %s22, 0
      %p84 = por %p82, %p83
      %p85 = scmp.ne.s32.totalorder %s77, %s79
      %p86 = scmp.eq.s32.totalorder %s27, 1
      %p87 = por %p85, %p86
      %p88 = scmp.ne.s32.totalorder %s79, %s80
      %p89 = scmp.eq.s32.totalorder %s27, 0
      %p90 = por %p88, %p89
      %p91 = scmp.ne.s32.totalorder %s79, %s80
      %p92 = scmp.eq.s32.totalorder %s28, 1
      %p93 = por %p91, %p92
      %p95 = scmp.ne.s32.totalorder %s80, %s94
      %p96 = scmp.eq.s32.totalorder %s28, 0
      %p97 = por %p95, %p96
      %s99 = sadd.s32 %s98, 1
      %p102 = scmp.eq.s32.totalorder %s22, 1
      %p103 = scmp.ne.s32.totalorder %s98, %s100
      %p104 = scmp.eq.s32.totalorder %s22, 0
      %p105 = por %p103, %p104
      %p106 = scmp.ne.s32.totalorder %s98, %s100
      %p107 = scmp.eq.s32.totalorder %s27, 1
      %p108 = por %p106, %p107
      %p109 = scmp.ne.s32.totalorder %s100, %s101
      %p110 = scmp.eq.s32.totalorder %s27, 0
      %p111 = por %p109, %p110
      %p112 = scmp.ne.s32.totalorder %s100, %s101
      %p113 = scmp.eq.s32.totalorder %s28, 1
      %p114 = por %p112, %p113
      %p116 = scmp.ne.s32.totalorder %s101, %s115
      %p117 = scmp.eq.s32.totalorder %s28, 0
      %p118 = por %p116, %p117
      %s120 = sadd.s32 %s119, 1
      %p123 = scmp.eq.s32.totalorder %s22, 1
      %p124 = scmp.ne.s32.totalorder %s119, %s121
      %p125 = scmp.eq.s32.totalorder %s22, 0
      %p126 = por %p124, %p125
      %p127 = scmp.ne.s32.totalorder %s119, %s121
      %p128 = scmp.eq.s32.totalorder %s27, 1
      %p129 = por %p127, %p128
      %p130 = scmp.ne.s32.totalorder %s121, %s122
      %p131 = scmp.eq.s32.totalorder %s27, 0
      %p132 = por %p130, %p131
      %p133 = scmp.ne.s32.totalorder %s121, %s122
      %p134 = scmp.eq.s32.totalorder %s28, 1
      %p135 = por %p133, %p134
      %p137 = scmp.ne.s32.totalorder %s122, %s136
      %p138 = scmp.eq.s32.totalorder %s28, 0
      %p139 = por %p137, %p138
      %s141 = sadd.s32 %s140, 1
      %p144 = scmp.eq.s32.totalorder %s22, 1
      %p145 = scmp.ne.s32.totalorder %s140, %s142
      %p146 = scmp.eq.s32.totalorder %s22, 0
      %p147 = por %p145, %p146
      %p148 = scmp.ne.s32.totalorder %s140, %s142
      %p149 = scmp.eq.s32.totalorder %s27, 1
      %p150 = por %p148, %p149
      %p151 = scmp.ne.s32.totalorder %s142, %s143
      %p152 = scmp.eq.s32.totalorder %s27, 0
      %p153 = por %p151, %p152
      %p154 = scmp.ne.s32.totalorder %s142, %s143
      %p155 = scmp.eq.s32.totalorder %s28, 1
      %p156 = por %p154, %p155
      %p158 = scmp.ne.s32.totalorder %s143, %s157
      %p159 = scmp.eq.s32.totalorder %s28, 0
      %p160 = por %p158, %p159
      %s162 = sadd.s32 %s161, 1
      %p165 = scmp.eq.s32.totalorder %s22, 1
      %p166 = scmp.ne.s32.totalorder %s161, %s163
      %p167 = scmp.eq.s32.totalorder %s22, 0
      %p168 = por %p166, %p167
      %p169 = scmp.ne.s32.totalorder %s161, %s163
      %p170 = scmp.eq.s32.totalorder %s27, 1
      %p171 = por %p169, %p170
      %p172 = scmp.ne.s32.totalorder %s163, %s164
      %p173 = scmp.eq.s32.totalorder %s27, 0
      %p174 = por %p172, %p173
      %p175 = scmp.ne.s32.totalorder %s163, %s164
      %p176 = scmp.eq.s32.totalorder %s28, 1
      %p177 = por %p175, %p176
      %p179 = scmp.ne.s32.totalorder %s164, %s178
      %p180 = scmp.eq.s32.totalorder %s28, 0
      %p181 = por %p179, %p180
      %s183 = sadd.s32 %s182, 1
      %p186 = scmp.eq.s32.totalorder %s22, 1
      %p187 = scmp.ne.s32.totalorder %s182, %s184
      %p188 = scmp.eq.s32.totalorder %s22, 0
      %p189 = por %p187, %p188
      %p190 = scmp.ne.s32.totalorder %s182, %s184
      %p191 = scmp.eq.s32.totalorder %s27, 1
      %p192 = por %p190, %p191
      %p193 = scmp.ne.s32.totalorder %s184, %s185
      %p194 = scmp.eq.s32.totalorder %s27, 0
      %p195 = por %p193, %p194
      %p196 = scmp.ne.s32.totalorder %s184, %s185
      %p197 = scmp.eq.s32.totalorder %s28, 1
      %p198 = por %p196, %p197
      %p200 = scmp.ne.s32.totalorder %s185, %s199
      %p201 = scmp.eq.s32.totalorder %s28, 0
      %p202 = por %p200, %p201
      %s204 = sadd.s32 %s203, 1
      %p207 = scmp.eq.s32.totalorder %s22, 1
      %p208 = scmp.ne.s32.totalorder %s203, %s205
      %p209 = scmp.eq.s32.totalorder %s22, 0
      %p210 = por %p208, %p209
      %p211 = scmp.ne.s32.totalorder %s203, %s205
      %p212 = scmp.eq.s32.totalorder %s27, 1
      %p213 = por %p211, %p212
      %p214 = scmp.ne.s32.totalorder %s205, %s206
      %p215 = scmp.eq.s32.totalorder %s27, 0
      %p216 = por %p214, %p215
      %p217 = scmp.ne.s32.totalorder %s205, %s206
      %p218 = scmp.eq.s32.totalorder %s28, 1
      %p219 = por %p217, %p218
      %p221 = scmp.ne.s32.totalorder %s206, %s220
      %p222 = scmp.eq.s32.totalorder %s28, 0
      %p223 = por %p221, %p222
      %s225 = sadd.s32 %s224, 1
      %p228 = scmp.eq.s32.totalorder %s22, 1
      %p229 = scmp.ne.s32.totalorder %s224, %s226
      %p230 = scmp.eq.s32.totalorder %s22, 0
      %p231 = por %p229, %p230
      %p232 = scmp.ne.s32.totalorder %s224, %s226
      %p233 = scmp.eq.s32.totalorder %s27, 1
      %p234 = por %p232, %p233
      %p235 = scmp.ne.s32.totalorder %s226, %s227
      %p236 = scmp.eq.s32.totalorder %s27, 0
      %p237 = por %p235, %p236
      %p238 = scmp.ne.s32.totalorder %s226, %s227
      %p239 = scmp.eq.s32.totalorder %s28, 1
      %p240 = por %p238, %p239
      %p242 = scmp.ne.s32.totalorder %s227, %s241
      %p243 = scmp.eq.s32.totalorder %s28, 0
      %p244 = por %p242, %p243
      %s246 = sadd.s32 %s245, 1
      %p249 = scmp.eq.s32.totalorder %s22, 1
      %p250 = scmp.ne.s32.totalorder %s245, %s247
      %p251 = scmp.eq.s32.totalorder %s22, 0
      %p252 = por %p250, %p251
      %p253 = scmp.ne.s32.totalorder %s245, %s247
      %p254 = scmp.eq.s32.totalorder %s27, 1
      %p255 = por %p253, %p254
      %p256 = scmp.ne.s32.totalorder %s247, %s248
      %p257 = scmp.eq.s32.totalorder %s27, 0
      %p258 = por %p256, %p257
      %p259 = scmp.ne.s32.totalorder %s247, %s248
      %p260 = scmp.eq.s32.totalorder %s28, 1
      %p261 = por %p259, %p260
      %p263 = scmp.ne.s32.totalorder %s248, %s262
      %p264 = scmp.eq.s32.totalorder %s28, 0
      %p265 = por %p263, %p264
      %s267 = sadd.s32 %s266, 1
      %p270 = scmp.eq.s32.totalorder %s22, 1
      %p271 = scmp.ne.s32.totalorder %s266, %s268
      %p272 = scmp.eq.s32.totalorder %s22, 0
      %p273 = por %p271, %p272
      %p274 = scmp.ne.s32.totalorder %s266, %s268
      %p275 = scmp.eq.s32.totalorder %s27, 1
      %p276 = por %p274, %p275
      %p277 = scmp.ne.s32.totalorder %s268, %s269
      %p278 = scmp.eq.s32.totalorder %s27, 0
      %p279 = por %p277, %p278
      %p280 = scmp.ne.s32.totalorder %s268, %s269
      %p281 = scmp.eq.s32.totalorder %s28, 1
      %p282 = por %p280, %p281
      %p284 = scmp.ne.s32.totalorder %s269, %s283
      %p285 = scmp.eq.s32.totalorder %s28, 0
      %p286 = por %p284, %p285
      %s287 = ssub.s32 %s22, %s29
      %p288 = scmp.eq.s32.totalorder %s287, 0
      %s290 = sadd.s32 %s289, 1
      %s291 = scalar_select %p288, %s289, %s290
      %p294 = pneg %p288
      %p295 = scmp.eq.s32.totalorder %s22, 1
      %p296 = por %p294, %p295
      %p297 = scmp.ne.s32.totalorder %s289, %s292
      %p298 = scmp.eq.s32.totalorder %s22, 0
      %p299 = por %p297, %p298
      %p300 = scmp.ne.s32.totalorder %s289, %s292
      %p301 = scmp.eq.s32.totalorder %s27, 1
      %p302 = por %p300, %p301
      %p303 = scmp.ne.s32.totalorder %s292, %s293
      %p304 = scmp.eq.s32.totalorder %s27, 0
      %p305 = por %p303, %p304
      %p306 = scmp.ne.s32.totalorder %s292, %s293
      %p307 = scmp.eq.s32.totalorder %s28, 1
      %p308 = por %p306, %p307
      %p310 = scmp.ne.s32.totalorder %s293, %s309
      %p311 = scmp.eq.s32.totalorder %s28, 0
      %p312 = por %p310, %p311
      %p313 = scmp.le.s32.totalorder 1, %s22
      %p314 = scmp.lt.s32.totalorder %s22, 3
      %p315 = pnand %p313, %p314
      %p316 = pneg %p315
      // Predicated region
      $region9: #{tpu_custom_call.1} parent=5 // pred_check
        _
      $region10: #{tpu_custom_call.1} parent=5 // pred_check_branch
        %318 = sbr.rel (%p315) target = $region12
      $region11: #{tpu_custom_call.1} parent=5 // pred_region
        %s319 = ssub.s32 %s22, 1
        // Predicated region
        $region13: #{tpu_custom_call.1} parent=11 // pred_check
          %p320 = pneg %p69
        $region14: #{tpu_custom_call.1} parent=11 // pred_check_branch
          %322 = sbr.rel (%p320) target = $region16
        $region15: #{tpu_custom_call.1} parent=11 // pred_region
          _
        $region16: #{tpu_custom_call.1} parent=11 // pred_fallthru
          _
        // Predicated region
        $region17: #{tpu_custom_call.1} parent=11 // pred_check
          %p323 = pneg %p90
        $region18: #{tpu_custom_call.1} parent=11 // pred_check_branch
          %325 = sbr.rel (%p323) target = $region20
        $region19: #{tpu_custom_call.1} parent=11 // pred_region
          _
        $region20: #{tpu_custom_call.1} parent=11 // pred_fallthru
          _
        // Predicated region
        $region21: #{tpu_custom_call.1} parent=11 // pred_check
          %p326 = pneg %p111
        $region22: #{tpu_custom_call.1} parent=11 // pred_check_branch
          %328 = sbr.rel (%p326) target = $region24
        $region23: #{tpu_custom_call.1} parent=11 // pred_region
          %s330 = ssub.s32 32, 32
          %331 = vsyncadd [#allocation3], %s330
          %s333 = sshll.u32 [#allocation2], 4
          %s334 = int_to_ptr.vmem [resolvable:$true] %s333
          %336 = dma.hbm_to_vmem [thread:$0]  %s3, 32, %s334, [#allocation3]
        $region24: #{tpu_custom_call.1} parent=11 // pred_fallthru
          _
        // Predicated region
        $region25: #{tpu_custom_call.1} parent=11 // pred_check
          %p337 = pneg %p132
        $region26: #{tpu_custom_call.1} parent=11 // pred_check_branch
          %339 = sbr.rel (%p337) target = $region28
        $region27: #{tpu_custom_call.1} parent=11 // pred_region
          _
        $region28: #{tpu_custom_call.1} parent=11 // pred_fallthru
          _
        // Predicated region
        $region29: #{tpu_custom_call.1} parent=11 // pred_check
          %p340 = pneg %p153
        $region30: #{tpu_custom_call.1} parent=11 // pred_check_branch
          %342 = sbr.rel (%p340) target = $region32
        $region31: #{tpu_custom_call.1} parent=11 // pred_region
          _
        $region32: #{tpu_custom_call.1} parent=11 // pred_fallthru
          _
        // Predicated region
        $region33: #{tpu_custom_call.1} parent=11 // pred_check
          %p343 = pneg %p174
        $region34: #{tpu_custom_call.1} parent=11 // pred_check_branch
          %345 = sbr.rel (%p343) target = $region36
        $region35: #{tpu_custom_call.1} parent=11 // pred_region
          _
        $region36: #{tpu_custom_call.1} parent=11 // pred_fallthru
          _
        // Predicated region
        $region37: #{tpu_custom_call.1} parent=11 // pred_check
          %p346 = pneg %p195
        $region38: #{tpu_custom_call.1} parent=11 // pred_check_branch
          %348 = sbr.rel (%p346) target = $region40
        $region39: #{tpu_custom_call.1} parent=11 // pred_region
          _
        $region40: #{tpu_custom_call.1} parent=11 // pred_fallthru
          _
        // Predicated region
        $region41: #{tpu_custom_call.1} parent=11 // pred_check
          %p349 = pneg %p216
        $region42: #{tpu_custom_call.1} parent=11 // pred_check_branch
          %351 = sbr.rel (%p349) target = $region44
        $region43: #{tpu_custom_call.1} parent=11 // pred_region
          _
        $region44: #{tpu_custom_call.1} parent=11 // pred_fallthru
          _
        // Predicated region
        $region45: #{tpu_custom_call.1} parent=11 // pred_check
          %p352 = pneg %p237
        $region46: #{tpu_custom_call.1} parent=11 // pred_check_branch
          %354 = sbr.rel (%p352) target = $region48
        $region47: #{tpu_custom_call.1} parent=11 // pred_region
          _
        $region48: #{tpu_custom_call.1} parent=11 // pred_fallthru
          _
        // Predicated region
        $region49: #{tpu_custom_call.1} parent=11 // pred_check
          %p355 = pneg %p258
        $region50: #{tpu_custom_call.1} parent=11 // pred_check_branch
          %357 = sbr.rel (%p355) target = $region52
        $region51: #{tpu_custom_call.1} parent=11 // pred_region
          _
        $region52: #{tpu_custom_call.1} parent=11 // pred_fallthru
          _
        // Predicated region
        $region53: #{tpu_custom_call.1} parent=11 // pred_check
          %p358 = pneg %p279
        $region54: #{tpu_custom_call.1} parent=11 // pred_check_branch
          %360 = sbr.rel (%p358) target = $region56
        $region55: #{tpu_custom_call.1} parent=11 // pred_region
          _
        $region56: #{tpu_custom_call.1} parent=11 // pred_fallthru
          _
      $region12: #{tpu_custom_call.1} parent=5 // pred_fallthru
        _
      %p361 = scmp.lt.s32.totalorder %s22, 2
      // Predicated region
      $region57: #{tpu_custom_call.1} parent=5 // pred_check
        %p362 = pneg %p361
      $region58: #{tpu_custom_call.1} parent=5 // pred_check_branch
        %364 = sbr.rel (%p362) target = $region60
      $region59: #{tpu_custom_call.1} parent=5 // pred_region
        // Predicated region
        $region61: #{tpu_custom_call.1} parent=59 // pred_check
          %p365 = pneg %p42
        $region62: #{tpu_custom_call.1} parent=59 // pred_check_branch
          %367 = sbr.rel (%p365) target = $region64
        $region63: #{tpu_custom_call.1} parent=59 // pred_region
          %p368 = scmp.lt.s32.totalorder %s22, 1
          %s369 = scalar_select %p368, %s22, 1
          %s370 = smul.addr %s369, 4
          %s371 = smul.addr %s370, 8
          %s372 = scalar_lea.vmem %s0, %s371
        $region64: #{tpu_custom_call.1} parent=59 // pred_fallthru
          _
      $region60: #{tpu_custom_call.1} parent=5 // pred_fallthru
        _
      %p373 = scmp.le.s32.totalorder 1, %s22
      %p374 = scmp.lt.s32.totalorder %s22, 3
      %p375 = pnand %p373, %p374
      %p376 = pneg %p375
      // Predicated region
      $region65: #{tpu_custom_call.1} parent=5 // pred_check
        _
      $region66: #{tpu_custom_call.1} parent=5 // pred_check_branch
        %378 = sbr.rel (%p375) target = $region68
      $region67: #{tpu_custom_call.1} parent=5 // pred_region
        %s379 = ssub.s32 %s22, 1
        // Predicated region
        $region69: #{tpu_custom_call.1} parent=67 // pred_check
          %p380 = pneg %p111
        $region70: #{tpu_custom_call.1} parent=67 // pred_check_branch
          %382 = sbr.rel (%p380) target = $region72
        $region71: #{tpu_custom_call.1} parent=67 // pred_region
          %383 = dma.done [#allocation3], 32
        $region72: #{tpu_custom_call.1} parent=67 // pred_fallthru
          _
        %p384 = scmp.lt.s32.totalorder %s27, 1
        %s385 = scalar_select %p384, %s27, 1
        %s386 = smul.addr %s385, 4
        %s387 = smul.addr %s386, 8
        %s388 = scalar_lea.vmem %s0, %s387
        %p389 = pneg %p48
        %p390 = pneg %p45
        %p391 = pneg %p69
        %p392 = pneg %p66
        %p393 = pneg %p90
        %p394 = pneg %p87
        %p395 = pneg %p111
        %p396 = pneg %p108
        %p397 = pneg %p132
        %p398 = pneg %p129
        %p399 = pneg %p153
        %p400 = pneg %p150
        %p401 = pneg %p174
        %p402 = pneg %p171
        %p403 = pneg %p195
        %p404 = pneg %p192
        %p405 = pneg %p216
        %p406 = pneg %p213
        %p407 = pneg %p237
        %p408 = pneg %p234
        %p409 = pneg %p258
        %p410 = pneg %p255
        %p411 = pneg %p279
        %p412 = pneg %p276
        %p413 = pneg %p305
        %p414 = pneg %p302
        %s415 = sand.u32 %s292, 1
        %s416 = scalar_lea.sflag [#allocation4], %s415
        %s417 = sand.u32 %s292, 1
        %s418 = smul.addr %s417, 2
        %s419 = scalar_lea.vmem [#allocation5], %s418
        %p420 = scmp.lt.s32.totalorder %s27, 1
        %s421 = scalar_select %p420, %s27, 1
        %s422 = smul.addr %s421, 4
        %s423 = smul.addr %s422, 8
        %s424 = scalar_lea.vmem %s0, %s423
        %v425 = vld [vmem:[%s424] sm:$0xff]
        %v426 = vld [vmem:[%s424 + $0x8] sm:$0xff]
        %v427 = vld [vmem:[%s424 + $0x10] sm:$0xff]
        %v428 = vld [vmem:[%s424 + $0x18] sm:$0xff]
        %v429 = vld [vmem:[%s2] sm:$0xff]
        %v430 = vld [vmem:[%s2 + $0x8] sm:$0xff]
        %v431 = vld [vmem:[%s2 + $0x10] sm:$0xff]
        %v432 = vld [vmem:[%s2 + $0x18] sm:$0xff]
        %v433 = vld [vmem:[#allocation2] sm:$0x3]
        %vm434 = vcmask 261120
        %v436 = vsel %vm434, %v425, 0
        %v439 = vsel %vm434, %v426, 0
        %v442 = vsel %vm434, %v427, 0
        %v445 = vsel %vm434, %v428, 0
        %447 = vmatprep.subr.mxu0 0.0
        %448 = vmatpush1.msra.mxu0 %v429
        %449 = vmatprep.subr.mxu0 0.0
        %450 = vmatpush1.msra.mxu0 %v430
        %451 = vmatprep.subr.mxu0 0.0
        %452 = vmatpush1.msra.mxu0 %v431
        %453 = vmatprep.subr.mxu0 0.0
        %454 = vmatpush1.msra.mxu0 %v432
        %455 = vmatprep.subr.mxu0 0.0
        %456 = vmatpush1.msra.mxu0 0.0
        %457 = vmatprep.subr.mxu0 0.0
        %458 = vmatpush1.msra.mxu0 0.0
        %459 = vmatprep.subr.mxu0 0.0
        %460 = vmatpush1.msra.mxu0 0.0
        %461 = vmatprep.subr.mxu0 0.0
        %462 = vmatpush1.msra.mxu0 0.0
        %463 = vmatprep.subr.mxu0 0.0
        %464 = vmatpush1.msra.mxu0 0.0
        %465 = vmatprep.subr.mxu0 0.0
        %466 = vmatpush1.msra.mxu0 0.0
        %467 = vmatprep.subr.mxu0 0.0
        %468 = vmatpush1.msra.mxu0 0.0
        %469 = vmatprep.subr.mxu0 0.0
        %470 = vmatpush1.msra.mxu0 0.0
        %471 = vmatprep.subr.mxu0 0.0
        %472 = vmatpush1.msra.mxu0 0.0
        %473 = vmatprep.subr.mxu0 0.0
        %474 = vmatpush1.msra.mxu0 0.0
        %475 = vmatprep.subr.mxu0 0.0
        %476 = vmatpush1.msra.mxu0 0.0
        %477 = vmatprep.subr.mxu0 0.0
        %478 = vmatpush1.msra.mxu0 0.0
        %479 = vmatprep.subr.mxu0 0.0
        %480 = vmatpush1.msra.mxu0 0.0
        %481 = vmatprep.subr.mxu0 0.0
        %482 = vmatpush1.msra.mxu0 0.0
        %483 = vmatprep.subr.mxu0 0.0
        %484 = vmatpush1.msra.mxu0 0.0
        %485 = vmatprep.subr.mxu0 0.0
        %486 = vmatpush1.msra.mxu0 0.0
        %487 = vmatprep.subr.mxu0 0.0
        %488 = vmatpush1.msra.mxu0 0.0
        %489 = vmatprep.subr.mxu0 0.0
        %490 = vmatpush1.msra.mxu0 0.0
        %491 = vmatprep.subr.mxu0 0.0
        %492 = vmatpush1.msra.mxu0 0.0
        %493 = vmatprep.subr.mxu0 0.0
        %494 = vmatpush1.msra.mxu0 0.0
        %495 = vmatprep.subr.mxu0 0.0
        %496 = vmatpush1.msra.mxu0 0.0
        %497 = vmatprep.subr.mxu0 0.0
        %498 = vmatpush1.msra.mxu0 0.0
        %499 = vmatprep.subr.mxu0 0.0
        %500 = vmatpush1.msra.mxu0 0.0
        %501 = vmatprep.subr.mxu0 0.0
        %502 = vmatpush1.msra.mxu0 0.0
        %503 = vmatprep.subr.mxu0 0.0
        %504 = vmatpush1.msra.mxu0 0.0
        %505 = vmatprep.subr.mxu0 0.0
        %506 = vmatpush1.msra.mxu0 0.0
        %507 = vmatprep.subr.mxu0 0.0
        %508 = vmatpush1.msra.mxu0 0.0
        %509 = vmatprep.subr.mxu0 0.0
        %510 = vmatpush1.msra.mxu0 0.0
        %511 = vmatprep.mubr.f32.mxu0 0.0
        %512 = vmatmul.mubr.f32.gmra.mrb[0].mxu0 %v436
        %v513 = vpop.f32.mrb[0].mxu0
        %v514 = vadd.f32 0.0, %v513
        %v515 = vpop.f32.mrb[0].mxu0
        %516 = vmatprep.mubr.f32.mxu0 0.0
        %517 = vmatmul.mubr.f32.gmra.mrb[0].mxu0 %v439
        %v518 = vpop.f32.mrb[0].mxu0
        %v519 = vadd.f32 0.0, %v518
        %v520 = vpop.f32.mrb[0].mxu0
        %521 = vmatprep.mubr.f32.mxu0 0.0
        %522 = vmatmul.mubr.f32.gmra.mrb[0].mxu0 %v442
        %v523 = vpop.f32.mrb[0].mxu0
        %v524 = vadd.f32 0.0, %v523
        %v525 = vpop.f32.mrb[0].mxu0
        %526 = vmatprep.mubr.f32.mxu0 0.0
        %527 = vmatmul.mubr.f32.gmra.mrb[0].mxu0 %v445
        %v528 = vpop.f32.mrb[0].mxu0
        %v529 = vadd.f32 0.0, %v528
        %v530 = vpop.f32.mrb[0].mxu0
        %531 = vdwg.mxu0
        %v532 = vmul.f32 %v514, 0.0625
        %v533 = vmul.f32 %v519, 0.0625
        %v534 = vmul.f32 %v524, 0.0625
        %v535 = vmul.f32 %v529, 0.0625
        %v536 = vld [vmem:[%s1] sm:$0xff]
        %v537 = vld [vmem:[%s1 + $0x8] sm:$0xff]
        %v538 = vld [vmem:[%s1 + $0x10] sm:$0xff]
        %v539 = vld [vmem:[%s1 + $0x18] sm:$0xff]
        %541 = vset.pattern.permute.xlu0 0
        %542 = vperm.xlu0 %541, %v536
        %v543 = vpop.permute.xlu0 %542
        %546 = vset.pattern.permute.xlu0 0
        %547 = vperm.xlu0 %546, %v537
        %v548 = vpop.permute.xlu0 %547
        %551 = vset.pattern.permute.xlu0 0
        %552 = vperm.xlu0 %551, %v538
        %v553 = vpop.permute.xlu0 %552
        %556 = vset.pattern.permute.xlu0 0
        %557 = vperm.xlu0 %556, %v539
        %v558 = vpop.permute.xlu0 %557
        %v560 = vadd.f32 %v532, %v543
        %v561 = vadd.f32 %v533, %v548
        %v562 = vadd.f32 %v534, %v553
        %v563 = vadd.f32 %v535, %v558
        %v564 = vld [vmem:[%s4] sm:$0xff]
        %v565 = vld [vmem:[%s4 + $0x8] sm:$0xff]
        %v566 = vld [vmem:[%s4 + $0x10] sm:$0xff]
        %v567 = vld [vmem:[%s4 + $0x18] sm:$0xff]
        %v568 = vld [vmem:[%s7] sm:$0xff]
        %v569 = vld [vmem:[%s7 + $0x8] sm:$0xff]
        %v570 = vld [vmem:[%s7 + $0x10] sm:$0xff]
        %v571 = vld [vmem:[%s7 + $0x18] sm:$0xff]
        %573 = vset.pattern.permute.xlu0 0
        %574 = vperm.xlu0 %573, %v568
        %v575 = vpop.permute.xlu0 %574
        %578 = vset.pattern.permute.xlu0 0
        %579 = vperm.xlu0 %578, %v569
        %v580 = vpop.permute.xlu0 %579
        %583 = vset.pattern.permute.xlu0 0
        %584 = vperm.xlu0 %583, %v570
        %v585 = vpop.permute.xlu0 %584
        %588 = vset.pattern.permute.xlu0 0
        %589 = vperm.xlu0 %588, %v571
        %v590 = vpop.permute.xlu0 %589
        %v593 = vsel %vm434, %v564, 0
        %v596 = vsel %vm434, %v565, 0
        %v599 = vsel %vm434, %v566, 0
        %v602 = vsel %vm434, %v567, 0
        %604 = vmatprep.subr.mxu0 0.0
        %605 = vmatpush1.msra.mxu0 %v560
        %606 = vmatprep.subr.mxu0 0.0
        %607 = vmatpush1.msra.mxu0 %v561
        %608 = vmatprep.subr.mxu0 0.0
        %609 = vmatpush1.msra.mxu0 %v562
        %610 = vmatprep.subr.mxu0 0.0
        %611 = vmatpush1.msra.mxu0 %v563
        %612 = vmatprep.subr.mxu0 0.0
        %613 = vmatpush1.msra.mxu0 0.0
        %614 = vmatprep.subr.mxu0 0.0
        %615 = vmatpush1.msra.mxu0 0.0
        %616 = vmatprep.subr.mxu0 0.0
        %617 = vmatpush1.msra.mxu0 0.0
        %618 = vmatprep.subr.mxu0 0.0
        %619 = vmatpush1.msra.mxu0 0.0
        %620 = vmatprep.subr.mxu0 0.0
        %621 = vmatpush1.msra.mxu0 0.0
        %622 = vmatprep.subr.mxu0 0.0
        %623 = vmatpush1.msra.mxu0 0.0
        %624 = vmatprep.subr.mxu0 0.0
        %625 = vmatpush1.msra.mxu0 0.0
        %626 = vmatprep.subr.mxu0 0.0
        %627 = vmatpush1.msra.mxu0 0.0
        %628 = vmatprep.subr.mxu0 0.0
        %629 = vmatpush1.msra.mxu0 0.0
        %630 = vmatprep.subr.mxu0 0.0
        %631 = vmatpush1.msra.mxu0 0.0
        %632 = vmatprep.subr.mxu0 0.0
        %633 = vmatpush1.msra.mxu0 0.0
        %634 = vmatprep.subr.mxu0 0.0
        %635 = vmatpush1.msra.mxu0 0.0
        %636 = vmatprep.subr.mxu0 0.0
        %637 = vmatpush1.msra.mxu0 0.0
        %638 = vmatprep.subr.mxu0 0.0
        %639 = vmatpush1.msra.mxu0 0.0
        %640 = vmatprep.subr.mxu0 0.0
        %641 = vmatpush1.msra.mxu0 0.0
        %642 = vmatprep.subr.mxu0 0.0
        %643 = vmatpush1.msra.mxu0 0.0
        %644 = vmatprep.subr.mxu0 0.0
        %645 = vmatpush1.msra.mxu0 0.0
        %646 = vmatprep.subr.mxu0 0.0
        %647 = vmatpush1.msra.mxu0 0.0
        %648 = vmatprep.subr.mxu0 0.0
        %649 = vmatpush1.msra.mxu0 0.0
        %650 = vmatprep.subr.mxu0 0.0
        %651 = vmatpush1.msra.mxu0 0.0
        %652 = vmatprep.subr.mxu0 0.0
        %653 = vmatpush1.msra.mxu0 0.0
        %654 = vmatprep.subr.mxu0 0.0
        %655 = vmatpush1.msra.mxu0 0.0
        %656 = vmatprep.subr.mxu0 0.0
        %657 = vmatpush1.msra.mxu0 0.0
        %658 = vmatprep.subr.mxu0 0.0
        %659 = vmatpush1.msra.mxu0 0.0
        %660 = vmatprep.subr.mxu0 0.0
        %661 = vmatpush1.msra.mxu0 0.0
        %662 = vmatprep.subr.mxu0 0.0
        %663 = vmatpush1.msra.mxu0 0.0
        %664 = vmatprep.subr.mxu0 0.0
        %665 = vmatpush1.msra.mxu0 0.0
        %666 = vmatprep.subr.mxu0 0.0
        %667 = vmatpush1.msra.mxu0 0.0
        %668 = vmatprep.mubr.f32.mxu0 0.0
        %669 = vmatmul.mubr.f32.gmra.mrb[0].mxu0 %v593
        %v670 = vpop.f32.mrb[0].mxu0
        %v671 = vadd.f32 %v575, %v670
        %v672 = vpop.f32.mrb[0].mxu0
        %673 = vmatprep.mubr.f32.mxu0 0.0
        %674 = vmatmul.mubr.f32.gmra.mrb[0].mxu0 %v596
        %v675 = vpop.f32.mrb[0].mxu0
        %v676 = vadd.f32 %v580, %v675
        %v677 = vpop.f32.mrb[0].mxu0
        %678 = vmatprep.mubr.f32.mxu0 0.0
        %679 = vmatmul.mubr.f32.gmra.mrb[0].mxu0 %v599
        %v680 = vpop.f32.mrb[0].mxu0
        %v681 = vadd.f32 %v585, %v680
        %v682 = vpop.f32.mrb[0].mxu0
        %683 = vmatprep.mubr.f32.mxu0 0.0
        %684 = vmatmul.mubr.f32.gmra.mrb[0].mxu0 %v602
        %v685 = vpop.f32.mrb[0].mxu0
        %v686 = vadd.f32 %v590, %v685
        %v687 = vpop.f32.mrb[0].mxu0
        %688 = vdwg.mxu0
        %v689 = vmul.f32 %v671, 0.25
        %v690 = vmul.f32 %v676, 0.25
        %v691 = vmul.f32 %v681, 0.25
        %v692 = vmul.f32 %v686, 0.25
        %v693 = vld [vmem:[%s5] sm:$0xff]
        %v694 = vld [vmem:[%s5 + $0x8] sm:$0xff]
        %v695 = vld [vmem:[%s5 + $0x10] sm:$0xff]
        %v696 = vld [vmem:[%s5 + $0x18] sm:$0xff]
        %v697 = vld [vmem:[%s8] sm:$0xff]
        %v698 = vld [vmem:[%s8 + $0x8] sm:$0xff]
        %v699 = vld [vmem:[%s8 + $0x10] sm:$0xff]
        %v700 = vld [vmem:[%s8 + $0x18] sm:$0xff]
        %702 = vset.pattern.permute.xlu0 0
        %703 = vperm.xlu0 %702, %v697
        %v704 = vpop.permute.xlu0 %703
        %707 = vset.pattern.permute.xlu0 0
        %708 = vperm.xlu0 %707, %v698
        %v709 = vpop.permute.xlu0 %708
        %712 = vset.pattern.permute.xlu0 0
        %713 = vperm.xlu0 %712, %v699
        %v714 = vpop.permute.xlu0 %713
        %717 = vset.pattern.permute.xlu0 0
        %718 = vperm.xlu0 %717, %v700
        %v719 = vpop.permute.xlu0 %718
        %v722 = vsel %vm434, %v693, 0
        %v725 = vsel %vm434, %v694, 0
        %v728 = vsel %vm434, %v695, 0
        %v731 = vsel %vm434, %v696, 0
        %733 = vmatprep.subr.mxu0 0.0
        %734 = vmatpush1.msra.mxu0 %v560
        %735 = vmatprep.subr.mxu0 0.0
        %736 = vmatpush1.msra.mxu0 %v561
        %737 = vmatprep.subr.mxu0 0.0
        %738 = vmatpush1.msra.mxu0 %v562
        %739 = vmatprep.subr.mxu0 0.0
        %740 = vmatpush1.msra.mxu0 %v563
        %741 = vmatprep.subr.mxu0 0.0
        %742 = vmatpush1.msra.mxu0 0.0
        %743 = vmatprep.subr.mxu0 0.0
        %744 = vmatpush1.msra.mxu0 0.0
        %745 = vmatprep.subr.mxu0 0.0
        %746 = vmatpush1.msra.mxu0 0.0
        %747 = vmatprep.subr.mxu0 0.0
        %748 = vmatpush1.msra.mxu0 0.0
        %749 = vmatprep.subr.mxu0 0.0
        %750 = vmatpush1.msra.mxu0 0.0
        %751 = vmatprep.subr.mxu0 0.0
        %752 = vmatpush1.msra.mxu0 0.0
        %753 = vmatprep.subr.mxu0 0.0
        %754 = vmatpush1.msra.mxu0 0.0
        %755 = vmatprep.subr.mxu0 0.0
        %756 = vmatpush1.msra.mxu0 0.0
        %757 = vmatprep.subr.mxu0 0.0
        %758 = vmatpush1.msra.mxu0 0.0
        %759 = vmatprep.subr.mxu0 0.0
        %760 = vmatpush1.msra.mxu0 0.0
        %761 = vmatprep.subr.mxu0 0.0
        %762 = vmatpush1.msra.mxu0 0.0
        %763 = vmatprep.subr.mxu0 0.0
        %764 = vmatpush1.msra.mxu0 0.0
        %765 = vmatprep.subr.mxu0 0.0
        %766 = vmatpush1.msra.mxu0 0.0
        %767 = vmatprep.subr.mxu0 0.0
        %768 = vmatpush1.msra.mxu0 0.0
        %769 = vmatprep.subr.mxu0 0.0
        %770 = vmatpush1.msra.mxu0 0.0
        %771 = vmatprep.subr.mxu0 0.0
        %772 = vmatpush1.msra.mxu0 0.0
        %773 = vmatprep.subr.mxu0 0.0
        %774 = vmatpush1.msra.mxu0 0.0
        %775 = vmatprep.subr.mxu0 0.0
        %776 = vmatpush1.msra.mxu0 0.0
        %777 = vmatprep.subr.mxu0 0.0
        %778 = vmatpush1.msra.mxu0 0.0
        %779 = vmatprep.subr.mxu0 0.0
        %780 = vmatpush1.msra.mxu0 0.0
        %781 = vmatprep.subr.mxu0 0.0
        %782 = vmatpush1.msra.mxu0 0.0
        %783 = vmatprep.subr.mxu0 0.0
        %784 = vmatpush1.msra.mxu0 0.0
        %785 = vmatprep.subr.mxu0 0.0
        %786 = vmatpush1.msra.mxu0 0.0
        %787 = vmatprep.subr.mxu0 0.0
        %788 = vmatpush1.msra.mxu0 0.0
        %789 = vmatprep.subr.mxu0 0.0
        %790 = vmatpush1.msra.mxu0 0.0
        %791 = vmatprep.subr.mxu0 0.0
        %792 = vmatpush1.msra.mxu0 0.0
        %793 = vmatprep.subr.mxu0 0.0
        %794 = vmatpush1.msra.mxu0 0.0
        %795 = vmatprep.subr.mxu0 0.0
        %796 = vmatpush1.msra.mxu0 0.0
        %797 = vmatprep.mubr.f32.mxu0 0.0
        %798 = vmatmul.mubr.f32.gmra.mrb[0].mxu0 %v722
        %v799 = vpop.f32.mrb[0].mxu0
        %v800 = vadd.f32 %v704, %v799
        %v801 = vpop.f32.mrb[0].mxu0
        %802 = vmatprep.mubr.f32.mxu0 0.0
        %803 = vmatmul.mubr.f32.gmra.mrb[0].mxu0 %v725
        %v804 = vpop.f32.mrb[0].mxu0
        %v805 = vadd.f32 %v709, %v804
        %v806 = vpop.f32.mrb[0].mxu0
        %807 = vmatprep.mubr.f32.mxu0 0.0
        %808 = vmatmul.mubr.f32.gmra.mrb[0].mxu0 %v728
        %v809 = vpop.f32.mrb[0].mxu0
        %v810 = vadd.f32 %v714, %v809
        %v811 = vpop.f32.mrb[0].mxu0
        %812 = vmatprep.mubr.f32.mxu0 0.0
        %813 = vmatmul.mubr.f32.gmra.mrb[0].mxu0 %v731
        %v814 = vpop.f32.mrb[0].mxu0
        %v815 = vadd.f32 %v719, %v814
        %v816 = vpop.f32.mrb[0].mxu0
        %817 = vdwg.mxu0
        %v818 = vld [vmem:[%s6] sm:$0xff]
        %v819 = vld [vmem:[%s6 + $0x8] sm:$0xff]
        %v820 = vld [vmem:[%s6 + $0x10] sm:$0xff]
        %v821 = vld [vmem:[%s6 + $0x18] sm:$0xff]
        %v822 = vld [vmem:[%s9] sm:$0xff]
        %v823 = vld [vmem:[%s9 + $0x8] sm:$0xff]
        %v824 = vld [vmem:[%s9 + $0x10] sm:$0xff]
        %v825 = vld [vmem:[%s9 + $0x18] sm:$0xff]
        %827 = vset.pattern.permute.xlu0 0
        %828 = vperm.xlu0 %827, %v822
        %v829 = vpop.permute.xlu0 %828
        %832 = vset.pattern.permute.xlu0 0
        %833 = vperm.xlu0 %832, %v823
        %v834 = vpop.permute.xlu0 %833
        %837 = vset.pattern.permute.xlu0 0
        %838 = vperm.xlu0 %837, %v824
        %v839 = vpop.permute.xlu0 %838
        %842 = vset.pattern.permute.xlu0 0
        %843 = vperm.xlu0 %842, %v825
        %v844 = vpop.permute.xlu0 %843
        %v847 = vsel %vm434, %v818, 0
        %v850 = vsel %vm434, %v819, 0
        %v853 = vsel %vm434, %v820, 0
        %v856 = vsel %vm434, %v821, 0
        %858 = vmatprep.subr.mxu0 0.0
        %859 = vmatpush1.msra.mxu0 %v560
        %860 = vmatprep.subr.mxu0 0.0
        %861 = vmatpush1.msra.mxu0 %v561
        %862 = vmatprep.subr.mxu0 0.0
        %863 = vmatpush1.msra.mxu0 %v562
        %864 = vmatprep.subr.mxu0 0.0
        %865 = vmatpush1.msra.mxu0 %v563
        %866 = vmatprep.subr.mxu0 0.0
        %867 = vmatpush1.msra.mxu0 0.0
        %868 = vmatprep.subr.mxu0 0.0
        %869 = vmatpush1.msra.mxu0 0.0
        %870 = vmatprep.subr.mxu0 0.0
        %871 = vmatpush1.msra.mxu0 0.0
        %872 = vmatprep.subr.mxu0 0.0
        %873 = vmatpush1.msra.mxu0 0.0
        %874 = vmatprep.subr.mxu0 0.0
        %875 = vmatpush1.msra.mxu0 0.0
        %876 = vmatprep.subr.mxu0 0.0
        %877 = vmatpush1.msra.mxu0 0.0
        %878 = vmatprep.subr.mxu0 0.0
        %879 = vmatpush1.msra.mxu0 0.0
        %880 = vmatprep.subr.mxu0 0.0
        %881 = vmatpush1.msra.mxu0 0.0
        %882 = vmatprep.subr.mxu0 0.0
        %883 = vmatpush1.msra.mxu0 0.0
        %884 = vmatprep.subr.mxu0 0.0
        %885 = vmatpush1.msra.mxu0 0.0
        %886 = vmatprep.subr.mxu0 0.0
        %887 = vmatpush1.msra.mxu0 0.0
        %888 = vmatprep.subr.mxu0 0.0
        %889 = vmatpush1.msra.mxu0 0.0
        %890 = vmatprep.subr.mxu0 0.0
        %891 = vmatpush1.msra.mxu0 0.0
        %892 = vmatprep.subr.mxu0 0.0
        %893 = vmatpush1.msra.mxu0 0.0
        %894 = vmatprep.subr.mxu0 0.0
        %895 = vmatpush1.msra.mxu0 0.0
        %896 = vmatprep.subr.mxu0 0.0
        %897 = vmatpush1.msra.mxu0 0.0
        %898 = vmatprep.subr.mxu0 0.0
        %899 = vmatpush1.msra.mxu0 0.0
        %900 = vmatprep.subr.mxu0 0.0
        %901 = vmatpush1.msra.mxu0 0.0
        %902 = vmatprep.subr.mxu0 0.0
        %903 = vmatpush1.msra.mxu0 0.0
        %904 = vmatprep.subr.mxu0 0.0
        %905 = vmatpush1.msra.mxu0 0.0
        %906 = vmatprep.subr.mxu0 0.0
        %907 = vmatpush1.msra.mxu0 0.0
        %908 = vmatprep.subr.mxu0 0.0
        %909 = vmatpush1.msra.mxu0 0.0
        %910 = vmatprep.subr.mxu0 0.0
        %911 = vmatpush1.msra.mxu0 0.0
        %912 = vmatprep.subr.mxu0 0.0
        %913 = vmatpush1.msra.mxu0 0.0
        %914 = vmatprep.subr.mxu0 0.0
        %915 = vmatpush1.msra.mxu0 0.0
        %916 = vmatprep.subr.mxu0 0.0
        %917 = vmatpush1.msra.mxu0 0.0
        %918 = vmatprep.subr.mxu0 0.0
        %919 = vmatpush1.msra.mxu0 0.0
        %920 = vmatprep.subr.mxu0 0.0
        %921 = vmatpush1.msra.mxu0 0.0
        %922 = vmatprep.mubr.f32.mxu0 0.0
        %923 = vmatmul.mubr.f32.gmra.mrb[0].mxu0 %v847
        %v924 = vpop.f32.mrb[0].mxu0
        %v925 = vadd.f32 %v829, %v924
        %v926 = vpop.f32.mrb[0].mxu0
        %927 = vmatprep.mubr.f32.mxu0 0.0
        %928 = vmatmul.mubr.f32.gmra.mrb[0].mxu0 %v850
        %v929 = vpop.f32.mrb[0].mxu0
        %v930 = vadd.f32 %v834, %v929
        %v931 = vpop.f32.mrb[0].mxu0
        %932 = vmatprep.mubr.f32.mxu0 0.0
        %933 = vmatmul.mubr.f32.gmra.mrb[0].mxu0 %v853
        %v934 = vpop.f32.mrb[0].mxu0
        %v935 = vadd.f32 %v839, %v934
        %v936 = vpop.f32.mrb[0].mxu0
        %937 = vmatprep.mubr.f32.mxu0 0.0
        %938 = vmatmul.mubr.f32.gmra.mrb[0].mxu0 %v856
        %v939 = vpop.f32.mrb[0].mxu0
        %v940 = vadd.f32 %v844, %v939
        %v941 = vpop.f32.mrb[0].mxu0
        %942 = vdwg.mxu0
        %943 = vmatprep.subr.mxu0 0.0
        %944 = vmatpush1.msra.mxu0 %v425
        %945 = vmatprep.subr.mxu0 0.0
        %946 = vmatpush1.msra.mxu0 %v426
        %947 = vmatprep.subr.mxu0 0.0
        %948 = vmatpush1.msra.mxu0 %v427
        %949 = vmatprep.subr.mxu0 0.0
        %950 = vmatpush1.msra.mxu0 %v428
        %951 = vmatprep.subr.mxu0 0.0
        %952 = vmatpush1.msra.mxu0 0.0
        %953 = vmatprep.subr.mxu0 0.0
        %954 = vmatpush1.msra.mxu0 0.0
        %955 = vmatprep.subr.mxu0 0.0
        %956 = vmatpush1.msra.mxu0 0.0
        %957 = vmatprep.subr.mxu0 0.0
        %958 = vmatpush1.msra.mxu0 0.0
        %959 = vmatprep.subr.mxu0 0.0
        %960 = vmatpush1.msra.mxu0 0.0
        %961 = vmatprep.subr.mxu0 0.0
        %962 = vmatpush1.msra.mxu0 0.0
        %963 = vmatprep.subr.mxu0 0.0
        %964 = vmatpush1.msra.mxu0 0.0
        %965 = vmatprep.subr.mxu0 0.0
        %966 = vmatpush1.msra.mxu0 0.0
        %967 = vmatprep.subr.mxu0 0.0
        %968 = vmatpush1.msra.mxu0 0.0
        %969 = vmatprep.subr.mxu0 0.0
        %970 = vmatpush1.msra.mxu0 0.0
        %971 = vmatprep.subr.mxu0 0.0
        %972 = vmatpush1.msra.mxu0 0.0
        %973 = vmatprep.subr.mxu0 0.0
        %974 = vmatpush1.msra.mxu0 0.0
        %975 = vmatprep.subr.mxu0 0.0
        %976 = vmatpush1.msra.mxu0 0.0
        %977 = vmatprep.subr.mxu0 0.0
        %978 = vmatpush1.msra.mxu0 0.0
        %979 = vmatprep.subr.mxu0 0.0
        %980 = vmatpush1.msra.mxu0 0.0
        %981 = vmatprep.subr.mxu0 0.0
        %982 = vmatpush1.msra.mxu0 0.0
        %983 = vmatprep.subr.mxu0 0.0
        %984 = vmatpush1.msra.mxu0 0.0
        %985 = vmatprep.subr.mxu0 0.0
        %986 = vmatpush1.msra.mxu0 0.0
        %987 = vmatprep.subr.mxu0 0.0
        %988 = vmatpush1.msra.mxu0 0.0
        %989 = vmatprep.subr.mxu0 0.0
        %990 = vmatpush1.msra.mxu0 0.0
        %991 = vmatprep.subr.mxu0 0.0
        %992 = vmatpush1.msra.mxu0 0.0
        %993 = vmatprep.subr.mxu0 0.0
        %994 = vmatpush1.msra.mxu0 0.0
        %995 = vmatprep.subr.mxu0 0.0
        %996 = vmatpush1.msra.mxu0 0.0
        %997 = vmatprep.subr.mxu0 0.0
        %998 = vmatpush1.msra.mxu0 0.0
        %999 = vmatprep.subr.mxu0 0.0
        %1000 = vmatpush1.msra.mxu0 0.0
        %1001 = vmatprep.subr.mxu0 0.0
        %1002 = vmatpush1.msra.mxu0 0.0
        %1003 = vmatprep.subr.mxu0 0.0
        %1004 = vmatpush1.msra.mxu0 0.0
        %1005 = vmatprep.subr.mxu0 0.0
        %1006 = vmatpush1.msra.mxu0 0.0
        %1007 = vmatprep.mubr.f32.mxu0 0.0
        %1008 = vmatmul.mubr.f32.gmra.mrb[0].mxu0 %v722
        %v1009 = vpop.f32.mrb[0].mxu0
        %v1010 = vadd.f32 %v704, %v1009
        %v1011 = vpop.f32.mrb[0].mxu0
        %1012 = vmatprep.mubr.f32.mxu0 0.0
        %1013 = vmatmul.mubr.f32.gmra.mrb[0].mxu0 %v725
        %v1014 = vpop.f32.mrb[0].mxu0
        %v1015 = vadd.f32 %v709, %v1014
        %v1016 = vpop.f32.mrb[0].mxu0
        %1017 = vmatprep.mubr.f32.mxu0 0.0
        %1018 = vmatmul.mubr.f32.gmra.mrb[0].mxu0 %v728
        %v1019 = vpop.f32.mrb[0].mxu0
        %v1020 = vadd.f32 %v714, %v1019
        %v1021 = vpop.f32.mrb[0].mxu0
        %1022 = vmatprep.mubr.f32.mxu0 0.0
        %1023 = vmatmul.mubr.f32.gmra.mrb[0].mxu0 %v731
        %v1024 = vpop.f32.mrb[0].mxu0
        %v1025 = vadd.f32 %v719, %v1024
        %v1026 = vpop.f32.mrb[0].mxu0
        %1027 = vdwg.mxu0
        %1028 = vmatprep.subr.mxu0 0.0
        %1029 = vmatpush1.msra.mxu0 %v425
        %1030 = vmatprep.subr.mxu0 0.0
        %1031 = vmatpush1.msra.mxu0 %v426
        %1032 = vmatprep.subr.mxu0 0.0
        %1033 = vmatpush1.msra.mxu0 %v427
        %1034 = vmatprep.subr.mxu0 0.0
        %1035 = vmatpush1.msra.mxu0 %v428
        %1036 = vmatprep.subr.mxu0 0.0
        %1037 = vmatpush1.msra.mxu0 0.0
        %1038 = vmatprep.subr.mxu0 0.0
        %1039 = vmatpush1.msra.mxu0 0.0
        %1040 = vmatprep.subr.mxu0 0.0
        %1041 = vmatpush1.msra.mxu0 0.0
        %1042 = vmatprep.subr.mxu0 0.0
        %1043 = vmatpush1.msra.mxu0 0.0
        %1044 = vmatprep.subr.mxu0 0.0
        %1045 = vmatpush1.msra.mxu0 0.0
        %1046 = vmatprep.subr.mxu0 0.0
        %1047 = vmatpush1.msra.mxu0 0.0
        %1048 = vmatprep.subr.mxu0 0.0
        %1049 = vmatpush1.msra.mxu0 0.0
        %1050 = vmatprep.subr.mxu0 0.0
        %1051 = vmatpush1.msra.mxu0 0.0
        %1052 = vmatprep.subr.mxu0 0.0
        %1053 = vmatpush1.msra.mxu0 0.0
        %1054 = vmatprep.subr.mxu0 0.0
        %1055 = vmatpush1.msra.mxu0 0.0
        %1056 = vmatprep.subr.mxu0 0.0
        %1057 = vmatpush1.msra.mxu0 0.0
        %1058 = vmatprep.subr.mxu0 0.0
        %1059 = vmatpush1.msra.mxu0 0.0
        %1060 = vmatprep.subr.mxu0 0.0
        %1061 = vmatpush1.msra.mxu0 0.0
        %1062 = vmatprep.subr.mxu0 0.0
        %1063 = vmatpush1.msra.mxu0 0.0
        %1064 = vmatprep.subr.mxu0 0.0
        %1065 = vmatpush1.msra.mxu0 0.0
        %1066 = vmatprep.subr.mxu0 0.0
        %1067 = vmatpush1.msra.mxu0 0.0
        %1068 = vmatprep.subr.mxu0 0.0
        %1069 = vmatpush1.msra.mxu0 0.0
        %1070 = vmatprep.subr.mxu0 0.0
        %1071 = vmatpush1.msra.mxu0 0.0
        %1072 = vmatprep.subr.mxu0 0.0
        %1073 = vmatpush1.msra.mxu0 0.0
        %1074 = vmatprep.subr.mxu0 0.0
        %1075 = vmatpush1.msra.mxu0 0.0
        %1076 = vmatprep.subr.mxu0 0.0
        %1077 = vmatpush1.msra.mxu0 0.0
        %1078 = vmatprep.subr.mxu0 0.0
        %1079 = vmatpush1.msra.mxu0 0.0
        %1080 = vmatprep.subr.mxu0 0.0
        %1081 = vmatpush1.msra.mxu0 0.0
        %1082 = vmatprep.subr.mxu0 0.0
        %1083 = vmatpush1.msra.mxu0 0.0
        %1084 = vmatprep.subr.mxu0 0.0
        %1085 = vmatpush1.msra.mxu0 0.0
        %1086 = vmatprep.subr.mxu0 0.0
        %1087 = vmatpush1.msra.mxu0 0.0
        %1088 = vmatprep.subr.mxu0 0.0
        %1089 = vmatpush1.msra.mxu0 0.0
        %1090 = vmatprep.subr.mxu0 0.0
        %1091 = vmatpush1.msra.mxu0 0.0
        %1092 = vmatprep.mubr.f32.mxu0 0.0
        %1093 = vmatmul.mubr.f32.gmra.mrb[0].mxu0 %v847
        %v1094 = vpop.f32.mrb[0].mxu0
        %v1095 = vadd.f32 %v829, %v1094
        %v1096 = vpop.f32.mrb[0].mxu0
        %1097 = vmatprep.mubr.f32.mxu0 0.0
        %1098 = vmatmul.mubr.f32.gmra.mrb[0].mxu0 %v850
        %v1099 = vpop.f32.mrb[0].mxu0
        %v1100 = vadd.f32 %v834, %v1099
        %v1101 = vpop.f32.mrb[0].mxu0
        %1102 = vmatprep.mubr.f32.mxu0 0.0
        %1103 = vmatmul.mubr.f32.gmra.mrb[0].mxu0 %v853
        %v1104 = vpop.f32.mrb[0].mxu0
        %v1105 = vadd.f32 %v839, %v1104
        %v1106 = vpop.f32.mrb[0].mxu0
        %1107 = vmatprep.mubr.f32.mxu0 0.0
        %1108 = vmatmul.mubr.f32.gmra.mrb[0].mxu0 %v856
        %v1109 = vpop.f32.mrb[0].mxu0
        %v1110 = vadd.f32 %v844, %v1109
        %v1111 = vpop.f32.mrb[0].mxu0
        %1112 = vdwg.mxu0
        %vm1113 = vcmask 15360
        %v1115 = vsel %vm1113, %v689, 0
        %v1118 = vsel %vm1113, %v690, 0
        %v1121 = vsel %vm1113, %v691, 0
        %v1124 = vsel %vm1113, %v692, 0
        %vm1126 = vcmask 1041408
        %v1128 = vsel %vm1126, %v433, 0
        %1130 = vmatprep.subr.mxu0 0.0
        %1131 = vmatpush1.msra.mxu0 %v1128
        %1132 = vmatprep.subr.mxu0 0.0
        %1133 = vmatpush1.msra.mxu0 0.0
        %1134 = vmatprep.subr.mxu0 0.0
        %1135 = vmatpush1.msra.mxu0 0.0
        %1136 = vmatprep.subr.mxu0 0.0
        %1137 = vmatpush1.msra.mxu0 0.0
        %1138 = vmatprep.subr.mxu0 0.0
        %1139 = vmatpush1.msra.mxu0 0.0
        %1140 = vmatprep.subr.mxu0 0.0
        %1141 = vmatpush1.msra.mxu0 0.0
        %1142 = vmatprep.subr.mxu0 0.0
        %1143 = vmatpush1.msra.mxu0 0.0
        %1144 = vmatprep.subr.mxu0 0.0
        %1145 = vmatpush1.msra.mxu0 0.0
        %1146 = vmatprep.subr.mxu0 0.0
        %1147 = vmatpush1.msra.mxu0 0.0
        %1148 = vmatprep.subr.mxu0 0.0
        %1149 = vmatpush1.msra.mxu0 0.0
        %1150 = vmatprep.subr.mxu0 0.0
        %1151 = vmatpush1.msra.mxu0 0.0
        %1152 = vmatprep.subr.mxu0 0.0
        %1153 = vmatpush1.msra.mxu0 0.0
        %1154 = vmatprep.subr.mxu0 0.0
        %1155 = vmatpush1.msra.mxu0 0.0
        %1156 = vmatprep.subr.mxu0 0.0
        %1157 = vmatpush1.msra.mxu0 0.0
        %1158 = vmatprep.subr.mxu0 0.0
        %1159 = vmatpush1.msra.mxu0 0.0
        %1160 = vmatprep.subr.mxu0 0.0
        %1161 = vmatpush1.msra.mxu0 0.0
        %1162 = vmatprep.subr.mxu0 0.0
        %1163 = vmatpush1.msra.mxu0 0.0
        %1164 = vmatprep.subr.mxu0 0.0
        %1165 = vmatpush1.msra.mxu0 0.0
        %1166 = vmatprep.subr.mxu0 0.0
        %1167 = vmatpush1.msra.mxu0 0.0
        %1168 = vmatprep.subr.mxu0 0.0
        %1169 = vmatpush1.msra.mxu0 0.0
        %1170 = vmatprep.subr.mxu0 0.0
        %1171 = vmatpush1.msra.mxu0 0.0
        %1172 = vmatprep.subr.mxu0 0.0
        %1173 = vmatpush1.msra.mxu0 0.0
        %1174 = vmatprep.subr.mxu0 0.0
        %1175 = vmatpush1.msra.mxu0 0.0
        %1176 = vmatprep.subr.mxu0 0.0
        %1177 = vmatpush1.msra.mxu0 0.0
        %1178 = vmatprep.subr.mxu0 0.0
        %1179 = vmatpush1.msra.mxu0 0.0
        %1180 = vmatprep.subr.mxu0 0.0
        %1181 = vmatpush1.msra.mxu0 0.0
        %1182 = vmatprep.subr.mxu0 0.0
        %1183 = vmatpush1.msra.mxu0 0.0
        %1184 = vmatprep.subr.mxu0 0.0
        %1185 = vmatpush1.msra.mxu0 0.0
        %1186 = vmatprep.subr.mxu0 0.0
        %1187 = vmatpush1.msra.mxu0 0.0
        %1188 = vmatprep.subr.mxu0 0.0
        %1189 = vmatpush1.msra.mxu0 0.0
        %1190 = vmatprep.subr.mxu0 0.0
        %1191 = vmatpush1.msra.mxu0 0.0
        %1192 = vmatprep.subr.mxu0 0.0
        %1193 = vmatpush1.msra.mxu0 0.0
        %1194 = vmatprep.mubr.f32.mxu0 0.0
        %1195 = vmatmul.mubr.f32.gmra.mrb[0].mxu0 %v1115
        %v1196 = vpop.f32.mrb[0].mxu0
        %v1197 = vadd.f32 0.0, %v1196
        %v1198 = vpop.f32.mrb[0].mxu0
        %1199 = vmatprep.mubr.f32.mxu0 0.0
        %1200 = vmatmul.mubr.f32.gmra.mrb[0].mxu0 %v1118
        %v1201 = vpop.f32.mrb[0].mxu0
        %v1202 = vadd.f32 0.0, %v1201
        %v1203 = vpop.f32.mrb[0].mxu0
        %1204 = vmatprep.mubr.f32.mxu0 0.0
        %1205 = vmatmul.mubr.f32.gmra.mrb[0].mxu0 %v1121
        %v1206 = vpop.f32.mrb[0].mxu0
        %v1207 = vadd.f32 0.0, %v1206
        %v1208 = vpop.f32.mrb[0].mxu0
        %1209 = vmatprep.mubr.f32.mxu0 0.0
        %1210 = vmatmul.mubr.f32.gmra.mrb[0].mxu0 %v1124
        %v1211 = vpop.f32.mrb[0].mxu0
        %v1212 = vadd.f32 0.0, %v1211
        %v1213 = vpop.f32.mrb[0].mxu0
        %1214 = vdwg.mxu0
        %v1215 = vmul.f32 %v1197, %v1010
        %v1216 = vmul.f32 %v1202, %v1015
        %v1217 = vmul.f32 %v1207, %v1020
        %v1218 = vmul.f32 %v1212, %v1025
        %v1219 = vsel %vm434, %v1215, 0.0
        %v1220 = vsel %vm434, %v1216, 0.0
        %v1221 = vadd.f32 %v1219, %v1220
        %v1222 = vrot.slane %v1221, 4
        %v1223 = vadd.f32 %v1221, %v1222
        %v1224 = vrot.slane %v1223, 2
        %v1225 = vadd.f32 %v1223, %v1224
        %v1226 = vrot.slane %v1225, 1
        %v1227 = vadd.f32 %v1225, %v1226
        %v1228 = vsel %vm434, %v1217, 0.0
        %v1229 = vsel %vm434, %v1218, 0.0
        %v1230 = vadd.f32 %v1228, %v1229
        %v1231 = vrot.slane %v1230, 4
        %v1232 = vadd.f32 %v1230, %v1231
        %v1233 = vrot.slane %v1232, 2
        %v1234 = vadd.f32 %v1232, %v1233
        %v1235 = vrot.slane %v1234, 1
        %v1236 = vadd.f32 %v1234, %v1235
        %v1237 = vmul.f32 %v689, %v800
        %v1238 = vmul.f32 %v690, %v805
        %v1239 = vmul.f32 %v691, %v810
        %v1240 = vmul.f32 %v692, %v815
        %v1241 = vsel %vm1113, %v1237, 0.0
        %v1242 = vsel %vm1113, %v1238, 0.0
        %v1243 = vadd.f32 %v1241, %v1242
        %v1244 = vrot.slane %v1243, 4
        %v1245 = vadd.f32 %v1243, %v1244
        %v1246 = vrot.slane %v1245, 2
        %v1247 = vadd.f32 %v1245, %v1246
        %v1248 = vrot.slane %v1247, 1
        %v1249 = vadd.f32 %v1247, %v1248
        %v1250 = vsel %vm1113, %v1239, 0.0
        %v1251 = vsel %vm1113, %v1240, 0.0
        %v1252 = vadd.f32 %v1250, %v1251
        %v1253 = vrot.slane %v1252, 4
        %v1254 = vadd.f32 %v1252, %v1253
        %v1255 = vrot.slane %v1254, 2
        %v1256 = vadd.f32 %v1254, %v1255
        %v1257 = vrot.slane %v1256, 1
        %v1258 = vadd.f32 %v1256, %v1257
        %vm1259 = vcmp.gt.f32.partialorder %v433, 0.0
        %v1260 = vsel %vm1259, 1, 0
        %vm1261 = vcmp.eq.s32.totalorder %v1260, 1
        %v1262 = vsel %vm1261, %v1227, -1e+30
        %v1263 = vsel %vm1261, %v1236, -1e+30
        %vm1264 = vcmask 254976
        %v1265 = vsel %vm1264, %v1262, -inf
        %1266 = vmax.xlane.f32.xlu0 %v1265
        %v1267 = vpop.xlane.xlu0 %1266
        %v1268 = vsel %vm1264, %v1263, -inf
        %1269 = vmax.xlane.f32.xlu0 %v1268
        %v1270 = vpop.xlane.xlu0 %1269
        %1274 = vbcast.lane.b32.xlu0 %v1249, 256
        %v1275 = vpop.permute.xlu0 %1274
        %1277 = vbcast.lane.b32.xlu0 %v1258, 256
        %v1278 = vpop.permute.xlu0 %1277
        %v1281 = vmax.f32 %v1267, %v1275
        %v1282 = vmax.f32 %v1270, %v1278
        %1285 = vset.pattern.permute.xlu0 0
        %1286 = vperm.xlu0 %1285, %v1281
        %v1287 = vpop.permute.xlu0 %1286
        %1288 = vset.pattern.permute.xlu0 0
        %1289 = vperm.xlu0 %1288, %v1282
        %v1290 = vpop.permute.xlu0 %1289
        %v1291 = vlaneseq
        %v1292 = vand.u32 %v1291, 127
        %v1293 = vlaneseq
        %v1294 = vshrl.u32 %v1293, 7
        %v1295 = vsub.s32 %v1292, %v1294
        %v1296 = vrot.slane %v1287, %v1295
        %v1297 = vlaneseq
        %v1298 = vshrl.u32 %v1297, 7
        %v1299 = vsub.s32 %v1292, %v1298
        %v1300 = vrot.slane %v1290, %v1299
        %vm1301 = vcmask 1041409
        %v1302 = vsel %vm1301, %v1300, %v1296
        %v1303 = vsel %vm1113, %v1302, 0
        %1305 = vmatprep.subr.mxu0 0.0
        %1306 = vmatpush1.msra.mxu0 %v1128
        %1307 = vmatprep.subr.mxu0 0.0
        %1308 = vmatpush1.msra.mxu0 0.0
        %1309 = vmatprep.subr.mxu0 0.0
        %1310 = vmatpush1.msra.mxu0 0.0
        %1311 = vmatprep.subr.mxu0 0.0
        %1312 = vmatpush1.msra.mxu0 0.0
        %1313 = vmatprep.subr.mxu0 0.0
        %1314 = vmatpush1.msra.mxu0 0.0
        %1315 = vmatprep.subr.mxu0 0.0
        %1316 = vmatpush1.msra.mxu0 0.0
        %1317 = vmatprep.subr.mxu0 0.0
        %1318 = vmatpush1.msra.mxu0 0.0
        %1319 = vmatprep.subr.mxu0 0.0
        %1320 = vmatpush1.msra.mxu0 0.0
        %1321 = vmatprep.subr.mxu0 0.0
        %1322 = vmatpush1.msra.mxu0 0.0
        %1323 = vmatprep.subr.mxu0 0.0
        %1324 = vmatpush1.msra.mxu0 0.0
        %1325 = vmatprep.subr.mxu0 0.0
        %1326 = vmatpush1.msra.mxu0 0.0
        %1327 = vmatprep.subr.mxu0 0.0
        %1328 = vmatpush1.msra.mxu0 0.0
        %1329 = vmatprep.subr.mxu0 0.0
        %1330 = vmatpush1.msra.mxu0 0.0
        %1331 = vmatprep.subr.mxu0 0.0
        %1332 = vmatpush1.msra.mxu0 0.0
        %1333 = vmatprep.subr.mxu0 0.0
        %1334 = vmatpush1.msra.mxu0 0.0
        %1335 = vmatprep.subr.mxu0 0.0
        %1336 = vmatpush1.msra.mxu0 0.0
        %1337 = vmatprep.subr.mxu0 0.0
        %1338 = vmatpush1.msra.mxu0 0.0
        %1339 = vmatprep.subr.mxu0 0.0
        %1340 = vmatpush1.msra.mxu0 0.0
        %1341 = vmatprep.subr.mxu0 0.0
        %1342 = vmatpush1.msra.mxu0 0.0
        %1343 = vmatprep.subr.mxu0 0.0
        %1344 = vmatpush1.msra.mxu0 0.0
        %1345 = vmatprep.subr.mxu0 0.0
        %1346 = vmatpush1.msra.mxu0 0.0
        %1347 = vmatprep.subr.mxu0 0.0
        %1348 = vmatpush1.msra.mxu0 0.0
        %1349 = vmatprep.subr.mxu0 0.0
        %1350 = vmatpush1.msra.mxu0 0.0
        %1351 = vmatprep.subr.mxu0 0.0
        %1352 = vmatpush1.msra.mxu0 0.0
        %1353 = vmatprep.subr.mxu0 0.0
        %1354 = vmatpush1.msra.mxu0 0.0
        %1355 = vmatprep.subr.mxu0 0.0
        %1356 = vmatpush1.msra.mxu0 0.0
        %1357 = vmatprep.subr.mxu0 0.0
        %1358 = vmatpush1.msra.mxu0 0.0
        %1359 = vmatprep.subr.mxu0 0.0
        %1360 = vmatpush1.msra.mxu0 0.0
        %1361 = vmatprep.subr.mxu0 0.0
        %1362 = vmatpush1.msra.mxu0 0.0
        %1363 = vmatprep.subr.mxu0 0.0
        %1364 = vmatpush1.msra.mxu0 0.0
        %1365 = vmatprep.subr.mxu0 0.0
        %1366 = vmatpush1.msra.mxu0 0.0
        %1367 = vmatprep.subr.mxu0 0.0
        %1368 = vmatpush1.msra.mxu0 0.0
        %1369 = vmatprep.mubr.f32.mxu0 0.0
        %1370 = vmatmul.mubr.f32.gmra.mrb[0].mxu0 %v1303
        %v1371 = vpop.f32.mrb[0].mxu0
        %v1372 = vadd.f32 0.0, %v1371
        %v1373 = vpop.f32.mrb[0].mxu0
        %1374 = vdwg.mxu0
        %v1376 = vrot.slane %v1372, 1
        %v1379 = vsub.f32 %v1227, %v1372
        %v1380 = vsub.f32 %v1236, %v1376
        %v1381 = vmul.f32 %v1379, 1.442695
        %v1382 = vpow.pop %v1381
        %v1383 = vmul.f32 %v1380, 1.442695
        %v1384 = vpow.pop %v1383
        %v1387 = vsub.f32 %v1249, %v1296
        %v1388 = vsub.f32 %v1258, %v1300
        %v1389 = vmul.f32 %v1387, 1.442695
        %v1390 = vpow.pop %v1389
        %v1391 = vmul.f32 %v1388, 1.442695
        %v1392 = vpow.pop %v1391
        %v1395 = vrot.slane %v1384, 7
        %v1396 = vsel %vm1301, %v1395, %v1382
        %v1399 = vrot.slane %v1392, 7
        %v1400 = vsel %vm1301, %v1399, %v1390
        %v1402 = vsel %vm434, %v1396, 0
        %1404 = vmatprep.subr.mxu0 0.0
        %1405 = vmatpush1.msra.mxu0 %v429
        %1406 = vmatprep.subr.mxu0 0.0
        %1407 = vmatpush1.msra.mxu0 %v430
        %1408 = vmatprep.subr.mxu0 0.0
        %1409 = vmatpush1.msra.mxu0 %v431
        %1410 = vmatprep.subr.mxu0 0.0
        %1411 = vmatpush1.msra.mxu0 %v432
        %1412 = vmatprep.subr.mxu0 0.0
        %1413 = vmatpush1.msra.mxu0 0.0
        %1414 = vmatprep.subr.mxu0 0.0
        %1415 = vmatpush1.msra.mxu0 0.0
        %1416 = vmatprep.subr.mxu0 0.0
        %1417 = vmatpush1.msra.mxu0 0.0
        %1418 = vmatprep.subr.mxu0 0.0
        %1419 = vmatpush1.msra.mxu0 0.0
        %1420 = vmatprep.subr.mxu0 0.0
        %1421 = vmatpush1.msra.mxu0 0.0
        %1422 = vmatprep.subr.mxu0 0.0
        %1423 = vmatpush1.msra.mxu0 0.0
        %1424 = vmatprep.subr.mxu0 0.0
        %1425 = vmatpush1.msra.mxu0 0.0
        %1426 = vmatprep.subr.mxu0 0.0
        %1427 = vmatpush1.msra.mxu0 0.0
        %1428 = vmatprep.subr.mxu0 0.0
        %1429 = vmatpush1.msra.mxu0 0.0
        %1430 = vmatprep.subr.mxu0 0.0
        %1431 = vmatpush1.msra.mxu0 0.0
        %1432 = vmatprep.subr.mxu0 0.0
        %1433 = vmatpush1.msra.mxu0 0.0
        %1434 = vmatprep.subr.mxu0 0.0
        %1435 = vmatpush1.msra.mxu0 0.0
        %1436 = vmatprep.subr.mxu0 0.0
        %1437 = vmatpush1.msra.mxu0 0.0
        %1438 = vmatprep.subr.mxu0 0.0
        %1439 = vmatpush1.msra.mxu0 0.0
        %1440 = vmatprep.subr.mxu0 0.0
        %1441 = vmatpush1.msra.mxu0 0.0
        %1442 = vmatprep.subr.mxu0 0.0
        %1443 = vmatpush1.msra.mxu0 0.0
        %1444 = vmatprep.subr.mxu0 0.0
        %1445 = vmatpush1.msra.mxu0 0.0
        %1446 = vmatprep.subr.mxu0 0.0
        %1447 = vmatpush1.msra.mxu0 0.0
        %1448 = vmatprep.subr.mxu0 0.0
        %1449 = vmatpush1.msra.mxu0 0.0
        %1450 = vmatprep.subr.mxu0 0.0
        %1451 = vmatpush1.msra.mxu0 0.0
        %1452 = vmatprep.subr.mxu0 0.0
        %1453 = vmatpush1.msra.mxu0 0.0
        %1454 = vmatprep.subr.mxu0 0.0
        %1455 = vmatpush1.msra.mxu0 0.0
        %1456 = vmatprep.subr.mxu0 0.0
        %1457 = vmatpush1.msra.mxu0 0.0
        %1458 = vmatprep.subr.mxu0 0.0
        %1459 = vmatpush1.msra.mxu0 0.0
        %1460 = vmatprep.subr.mxu0 0.0
        %1461 = vmatpush1.msra.mxu0 0.0
        %1462 = vmatprep.subr.mxu0 0.0
        %1463 = vmatpush1.msra.mxu0 0.0
        %1464 = vmatprep.subr.mxu0 0.0
        %1465 = vmatpush1.msra.mxu0 0.0
        %1466 = vmatprep.subr.mxu0 0.0
        %1467 = vmatpush1.msra.mxu0 0.0
        %1468 = vmatprep.mubr.f32.mxu0 0.0
        %1469 = vmatmul.mubr.f32.gmra.mrb[0].mxu0 %v1402
        %v1470 = vpop.f32.mrb[0].mxu0
        %v1471 = vadd.f32 %v1400, %v1470
        %v1472 = vpop.f32.mrb[0].mxu0
        %1473 = vdwg.mxu0
        %v1474 = vrcp.pop %v1471
        %v1475 = vlaneseq
        %v1476 = vshrl.u32 %v1475, 7
        %v1477 = vsub.s32 0, %v1476
        %v1478 = vrot.slane %v1382, %v1477
        %v1479 = vlaneseq
        %v1480 = vshrl.u32 %v1479, 7
        %v1481 = vsub.s32 0, %v1480
        %v1482 = vrot.slane %v1384, %v1481
        %v1483 = vmul.f32 %v1095, %v1478
        %v1484 = vmul.f32 %v1100, %v1478
        %v1485 = vmul.f32 %v1105, %v1482
        %v1486 = vmul.f32 %v1110, %v1482
        %v1487 = vlaneseq
        %v1488 = vshrl.u32 %v1487, 7
        %v1489 = vsub.s32 0, %v1488
        %v1490 = vrot.slane %v1390, %v1489
        %v1491 = vlaneseq
        %v1492 = vshrl.u32 %v1491, 7
        %v1493 = vsub.s32 0, %v1492
        %v1494 = vrot.slane %v1392, %v1493
        %v1495 = vmul.f32 %v925, %v1490
        %v1496 = vmul.f32 %v930, %v1490
        %v1497 = vmul.f32 %v935, %v1494
        %v1498 = vmul.f32 %v940, %v1494
        %v1500 = vsel %vm434, %v1483, 0
        %v1503 = vsel %vm434, %v1484, 0
        %v1506 = vsel %vm434, %v1485, 0
        %v1509 = vsel %vm434, %v1486, 0
        %1511 = vmatprep.subr.mxu0 0.0
        %1512 = vmatpush1.msra.mxu0 %v429
        %1513 = vmatprep.subr.mxu0 0.0
        %1514 = vmatpush1.msra.mxu0 %v430
        %1515 = vmatprep.subr.mxu0 0.0
        %1516 = vmatpush1.msra.mxu0 %v431
        %1517 = vmatprep.subr.mxu0 0.0
        %1518 = vmatpush1.msra.mxu0 %v432
        %1519 = vmatprep.subr.mxu0 0.0
        %1520 = vmatpush1.msra.mxu0 0.0
        %1521 = vmatprep.subr.mxu0 0.0
        %1522 = vmatpush1.msra.mxu0 0.0
        %1523 = vmatprep.subr.mxu0 0.0
        %1524 = vmatpush1.msra.mxu0 0.0
        %1525 = vmatprep.subr.mxu0 0.0
        %1526 = vmatpush1.msra.mxu0 0.0
        %1527 = vmatprep.subr.mxu0 0.0
        %1528 = vmatpush1.msra.mxu0 0.0
        %1529 = vmatprep.subr.mxu0 0.0
        %1530 = vmatpush1.msra.mxu0 0.0
        %1531 = vmatprep.subr.mxu0 0.0
        %1532 = vmatpush1.msra.mxu0 0.0
        %1533 = vmatprep.subr.mxu0 0.0
        %1534 = vmatpush1.msra.mxu0 0.0
        %1535 = vmatprep.subr.mxu0 0.0
        %1536 = vmatpush1.msra.mxu0 0.0
        %1537 = vmatprep.subr.mxu0 0.0
        %1538 = vmatpush1.msra.mxu0 0.0
        %1539 = vmatprep.subr.mxu0 0.0
        %1540 = vmatpush1.msra.mxu0 0.0
        %1541 = vmatprep.subr.mxu0 0.0
        %1542 = vmatpush1.msra.mxu0 0.0
        %1543 = vmatprep.subr.mxu0 0.0
        %1544 = vmatpush1.msra.mxu0 0.0
        %1545 = vmatprep.subr.mxu0 0.0
        %1546 = vmatpush1.msra.mxu0 0.0
        %1547 = vmatprep.subr.mxu0 0.0
        %1548 = vmatpush1.msra.mxu0 0.0
        %1549 = vmatprep.subr.mxu0 0.0
        %1550 = vmatpush1.msra.mxu0 0.0
        %1551 = vmatprep.subr.mxu0 0.0
        %1552 = vmatpush1.msra.mxu0 0.0
        %1553 = vmatprep.subr.mxu0 0.0
        %1554 = vmatpush1.msra.mxu0 0.0
        %1555 = vmatprep.subr.mxu0 0.0
        %1556 = vmatpush1.msra.mxu0 0.0
        %1557 = vmatprep.subr.mxu0 0.0
        %1558 = vmatpush1.msra.mxu0 0.0
        %1559 = vmatprep.subr.mxu0 0.0
        %1560 = vmatpush1.msra.mxu0 0.0
        %1561 = vmatprep.subr.mxu0 0.0
        %1562 = vmatpush1.msra.mxu0 0.0
        %1563 = vmatprep.subr.mxu0 0.0
        %1564 = vmatpush1.msra.mxu0 0.0
        %1565 = vmatprep.subr.mxu0 0.0
        %1566 = vmatpush1.msra.mxu0 0.0
        %1567 = vmatprep.subr.mxu0 0.0
        %1568 = vmatpush1.msra.mxu0 0.0
        %1569 = vmatprep.subr.mxu0 0.0
        %1570 = vmatpush1.msra.mxu0 0.0
        %1571 = vmatprep.subr.mxu0 0.0
        %1572 = vmatpush1.msra.mxu0 0.0
        %1573 = vmatprep.subr.mxu0 0.0
        %1574 = vmatpush1.msra.mxu0 0.0
        %1575 = vmatprep.mubr.f32.mxu0 0.0
        %1576 = vmatmul.mubr.f32.gmra.mrb[0].mxu0 %v1500
        %v1577 = vpop.f32.mrb[0].mxu0
        %v1578 = vadd.f32 %v1495, %v1577
        %v1579 = vpop.f32.mrb[0].mxu0
        %1580 = vmatprep.mubr.f32.mxu0 0.0
        %1581 = vmatmul.mubr.f32.gmra.mrb[0].mxu0 %v1503
        %v1582 = vpop.f32.mrb[0].mxu0
        %v1583 = vadd.f32 %v1496, %v1582
        %v1584 = vpop.f32.mrb[0].mxu0
        %1585 = vmatprep.mubr.f32.mxu0 0.0
        %1586 = vmatmul.mubr.f32.gmra.mrb[0].mxu0 %v1506
        %v1587 = vpop.f32.mrb[0].mxu0
        %v1588 = vadd.f32 %v1497, %v1587
        %v1589 = vpop.f32.mrb[0].mxu0
        %1590 = vmatprep.mubr.f32.mxu0 0.0
        %1591 = vmatmul.mubr.f32.gmra.mrb[0].mxu0 %v1509
        %v1592 = vpop.f32.mrb[0].mxu0
        %v1593 = vadd.f32 %v1498, %v1592
        %v1594 = vpop.f32.mrb[0].mxu0
        %1595 = vdwg.mxu0
        %v1598 = vunpack.c.l.s4 1966171168
        %v1599 = vunpack.c.0.s8 %v1598
        %v1600 = vlaneseq
        %v1601 = vshrl.u32 %v1600, 7
        %v1602 = vsub.s32 %v1599, %v1601
        %v1603 = vrot.slane %v1474, %v1602
        %v1604 = vcombine.high %v1603, %v1603
        %v1606 = vunpack.c.l.s4 1966171168
        %v1607 = vunpack.c.0.s8 %v1606
        %v1608 = vlaneseq
        %v1609 = vshrl.u32 %v1608, 7
        %v1610 = vsub.s32 %v1607, %v1609
        %v1611 = vrot.slane %v1603, %v1610
        %v1613 = vunpack.c.l.s4 1966171168
        %v1614 = vunpack.c.0.s8 %v1613
        %v1615 = vlaneseq
        %v1616 = vshrl.u32 %v1615, 7
        %v1617 = vsub.s32 %v1614, %v1616
        %v1618 = vrot.slane %v1604, %v1617
        %v1619 = vlaneseq
        %v1620 = vshrl.u32 %v1619, 7
        %v1621 = vsub.s32 0, %v1620
        %v1622 = vrot.slane %v1611, %v1621
        %v1623 = vlaneseq
        %v1624 = vshrl.u32 %v1623, 7
        %v1625 = vsub.s32 0, %v1624
        %v1626 = vrot.slane %v1618, %v1625
        %v1629 = vmul.f32 %v1578, %v1622
        %v1630 = vmul.f32 %v1583, %v1622
        %v1631 = vmul.f32 %v1588, %v1626
        %v1632 = vmul.f32 %v1593, %v1626
        %v1633 = vld [vmem:[%s10] sm:$0xff]
        %v1634 = vld [vmem:[%s10 + $0x8] sm:$0xff]
        %v1635 = vld [vmem:[%s10 + $0x10] sm:$0xff]
        %v1636 = vld [vmem:[%s10 + $0x18] sm:$0xff]
        %v1637 = vld [vmem:[%s11] sm:$0x1]
        %v1639 = vlaneseq
        %v1640 = vshrl.u32 %v1639, 7
        %v1641 = vsub.s32 0, %v1640
        %v1642 = vrot.slane %v1637, %v1641
        %1644 = vxpose.xlu0.b32.start [1/16] %v1629, 128
        %1645 = vxpose.xlu0.b32.cont [2/16] %v1630, 128
        %1646 = vxpose.xlu0.b32.cont [3/16] %v1631, 128
        %1647 = vxpose.xlu0.b32.cont [4/16] %v1632, 128
        %1648 = vxpose.xlu0.b32.cont [5/16] 0.0, 128
        %1649 = vxpose.xlu0.b32.cont [6/16] 0.0, 128
        %1650 = vxpose.xlu0.b32.cont [7/16] 0.0, 128
        %1651 = vxpose.xlu0.b32.cont [8/16] 0.0, 128
        %1652 = vxpose.xlu0.b32.cont [9/16] 0.0, 128
        %1653 = vxpose.xlu0.b32.cont [10/16] 0.0, 128
        %1654 = vxpose.xlu0.b32.cont [11/16] 0.0, 128
        %1655 = vxpose.xlu0.b32.cont [12/16] 0.0, 128
        %1656 = vxpose.xlu0.b32.cont [13/16] 0.0, 128
        %1657 = vxpose.xlu0.b32.cont [14/16] 0.0, 128
        %1658 = vxpose.xlu0.b32.cont [15/16] 0.0, 128
        %1659 = vxpose.xlu0.b32.end [16/16] 0.0, 128
        %v1660 = vpop.trf.xlu0
        %v1661 = vpop.trf.xlu0
        %v1662 = vpop.trf.xlu0
        %v1663 = vpop.trf.xlu0
        %v1664 = vpop.trf.xlu0
        %v1665 = vpop.trf.xlu0
        %v1666 = vpop.trf.xlu0
        %v1667 = vpop.trf.xlu0
        %v1668 = vpop.trf.xlu0
        %v1669 = vpop.trf.xlu0
        %v1670 = vpop.trf.xlu0
        %v1671 = vpop.trf.xlu0
        %v1672 = vpop.trf.xlu0
        %v1673 = vpop.trf.xlu0
        %v1674 = vpop.trf.xlu0
        %v1675 = vpop.trf.xlu0
        %v1677 = vsel %vm434, %v1660, 0
        %1679 = vmatprep.subr.mxu0 0.0
        %1680 = vmatpush1.msra.mxu0 %v1633
        %1681 = vmatprep.subr.mxu0 0.0
        %1682 = vmatpush1.msra.mxu0 %v1634
        %1683 = vmatprep.subr.mxu0 0.0
        %1684 = vmatpush1.msra.mxu0 %v1635
        %1685 = vmatprep.subr.mxu0 0.0
        %1686 = vmatpush1.msra.mxu0 %v1636
        %1687 = vmatprep.subr.mxu0 0.0
        %1688 = vmatpush1.msra.mxu0 0.0
        %1689 = vmatprep.subr.mxu0 0.0
        %1690 = vmatpush1.msra.mxu0 0.0
        %1691 = vmatprep.subr.mxu0 0.0
        %1692 = vmatpush1.msra.mxu0 0.0
        %1693 = vmatprep.subr.mxu0 0.0
        %1694 = vmatpush1.msra.mxu0 0.0
        %1695 = vmatprep.subr.mxu0 0.0
        %1696 = vmatpush1.msra.mxu0 0.0
        %1697 = vmatprep.subr.mxu0 0.0
        %1698 = vmatpush1.msra.mxu0 0.0
        %1699 = vmatprep.subr.mxu0 0.0
        %1700 = vmatpush1.msra.mxu0 0.0
        %1701 = vmatprep.subr.mxu0 0.0
        %1702 = vmatpush1.msra.mxu0 0.0
        %1703 = vmatprep.subr.mxu0 0.0
        %1704 = vmatpush1.msra.mxu0 0.0
        %1705 = vmatprep.subr.mxu0 0.0
        %1706 = vmatpush1.msra.mxu0 0.0
        %1707 = vmatprep.subr.mxu0 0.0
        %1708 = vmatpush1.msra.mxu0 0.0
        %1709 = vmatprep.subr.mxu0 0.0
        %1710 = vmatpush1.msra.mxu0 0.0
        %1711 = vmatprep.subr.mxu0 0.0
        %1712 = vmatpush1.msra.mxu0 0.0
        %1713 = vmatprep.subr.mxu0 0.0
        %1714 = vmatpush1.msra.mxu0 0.0
        %1715 = vmatprep.subr.mxu0 0.0
        %1716 = vmatpush1.msra.mxu0 0.0
        %1717 = vmatprep.subr.mxu0 0.0
        %1718 = vmatpush1.msra.mxu0 0.0
        %1719 = vmatprep.subr.mxu0 0.0
        %1720 = vmatpush1.msra.mxu0 0.0
        %1721 = vmatprep.subr.mxu0 0.0
        %1722 = vmatpush1.msra.mxu0 0.0
        %1723 = vmatprep.subr.mxu0 0.0
        %1724 = vmatpush1.msra.mxu0 0.0
        %1725 = vmatprep.subr.mxu0 0.0
        %1726 = vmatpush1.msra.mxu0 0.0
        %1727 = vmatprep.subr.mxu0 0.0
        %1728 = vmatpush1.msra.mxu0 0.0
        %1729 = vmatprep.subr.mxu0 0.0
        %1730 = vmatpush1.msra.mxu0 0.0
        %1731 = vmatprep.subr.mxu0 0.0
        %1732 = vmatpush1.msra.mxu0 0.0
        %1733 = vmatprep.subr.mxu0 0.0
        %1734 = vmatpush1.msra.mxu0 0.0
        %1735 = vmatprep.subr.mxu0 0.0
        %1736 = vmatpush1.msra.mxu0 0.0
        %1737 = vmatprep.subr.mxu0 0.0
        %1738 = vmatpush1.msra.mxu0 0.0
        %1739 = vmatprep.subr.mxu0 0.0
        %1740 = vmatpush1.msra.mxu0 0.0
        %1741 = vmatprep.subr.mxu0 0.0
        %1742 = vmatpush1.msra.mxu0 0.0
        %1743 = vmatprep.mubr.f32.mxu0 0.0
        %1744 = vmatmul.mubr.f32.gmra.mrb[0].mxu0 %v1677
        %v1745 = vpop.f32.mrb[0].mxu0
        %v1746 = vadd.f32 %v1642, %v1745
        %v1747 = vpop.f32.mrb[0].mxu0
        %1748 = vdwg.mxu0
        %1749 = vst.msk [vmem:[%s419] sm:$0x3] %vm1264, %v1746
        %s1750 = sand.u32 %s292, 1
        %s1751 = scalar_lea.sflag [#allocation4], %s1750
        %s1752 = sand.u32 %s292, 1
        %s1753 = smul.addr %s1752, 2
        %s1754 = scalar_lea.vmem [#allocation5], %s1753
        // Predicated region
        $region73: #{tpu_custom_call.1} parent=67 // pred_check
          %p1755 = pneg %p302
        $region74: #{tpu_custom_call.1} parent=67 // pred_check_branch
          %1757 = sbr.rel (%p1755) target = $region76
        $region75: #{tpu_custom_call.1} parent=67 // pred_region
          %s1759 = ssub.s32 32, 32
          %1760 = vsyncadd %s1751, %s1759
          %s1761 = smul.addr %s27, 32
          %s1762 = scalar_lea.hbm %s12, %s1761
          %s1764 = sshll.u32 %s1754, 4
          %s1765 = int_to_ptr.vmem [resolvable:$true] %s1764
          %1767 = dma.vmem_to_hbm [thread:$0]  %s1765, 32, %s1762, %s1751
        $region76: #{tpu_custom_call.1} parent=67 // pred_fallthru
          _
      $region68: #{tpu_custom_call.1} parent=5 // pred_fallthru
        _
      %p1768 = scmp.le.s32.totalorder 2, %s22
      // Predicated region
      $region77: #{tpu_custom_call.1} parent=5 // pred_check
        %p1769 = pneg %p1768
      $region78: #{tpu_custom_call.1} parent=5 // pred_check_branch
        %1771 = sbr.rel (%p1769) target = $region80
      $region79: #{tpu_custom_call.1} parent=5 // pred_region
        %s1772 = ssub.s32 %s22, 2
        // Predicated region
        $region81: #{tpu_custom_call.1} parent=79 // pred_check
          %p1773 = pneg %p308
        $region82: #{tpu_custom_call.1} parent=79 // pred_check_branch
          %1775 = sbr.rel (%p1773) target = $region84
        $region83: #{tpu_custom_call.1} parent=79 // pred_region
          %s1776 = sand.u32 %s293, 1
          %s1777 = scalar_lea.sflag [#allocation4], %s1776
          %s1778 = sand.u32 %s293, 1
          %s1779 = smul.addr %s1778, 2
          %s1780 = scalar_lea.vmem [#allocation5], %s1779
          %1781 = dma.done %s1777, 32
        $region84: #{tpu_custom_call.1} parent=79 // pred_fallthru
          _
      $region80: #{tpu_custom_call.1} parent=5 // pred_fallthru
        _
    $region6: #{tpu_custom_call.1} parent=1 // loop_footer
      %s26 = sadd.s32 1, %s22
    $region7: #{tpu_custom_call.1} parent=1 // loop_footer_branch
      %21 = sbr.rel target = $region3
    $region8: #{tpu_custom_call.1} parent=1 // loop_exit
      _
    %1782 = vsyncpa [#allocation3], 1
    %s1783 = scalar_lea.sflag [#allocation3], 1
    %1784 = vsyncpa %s1783, 1
    %1785 = vsyncpa [#allocation4], 1
    %s1786 = scalar_lea.sflag [#allocation4], 1
    %1787 = vsyncpa %s1786, 1

// kernel: tpu_custom_call.1
$region0: #{tpu_custom_call.1}
  #allocation0 [shape = 'u32[]', space=smem, size = 0x4, offset = 0x4, fixed_abs, tag = 'smem constant byte address 0x4 - core index']
  #allocation1 [shape = 'u32[144,128]{1,0:T(1,128)}', space=vmem, size = 0x12000, scoped, tag = 'internal scratch']
  %s0 = inlined_call_operand.vmem [shape: f32[2,32,32], index: 0, kind: input, shape index: {}]
  %s1 = inlined_call_operand.vmem [shape: f32[32,1], index: 1, kind: input, shape index: {}]
  %s2 = inlined_call_operand.vmem [shape: f32[32,2], index: 2, kind: input, shape index: {}]
  %s3 = inlined_call_operand.hbm [shape: f32[2,32], index: 3, kind: input, shape index: {}]
  %s4 = inlined_call_operand.vmem [shape: f32[32,32], index: 4, kind: input, shape index: {}]
  %s5 = inlined_call_operand.vmem [shape: f32[32,32], index: 5, kind: input, shape index: {}]
  %s6 = inlined_call_operand.vmem [shape: f32[32,32], index: 6, kind: input, shape index: {}]
  %s7 = inlined_call_operand.vmem [shape: f32[32,1], index: 7, kind: input, shape index: {}]
  %s8 = inlined_call_operand.vmem [shape: f32[32,1], index: 8, kind: input, shape index: {}]
  %s9 = inlined_call_operand.vmem [shape: f32[32,1], index: 9, kind: input, shape index: {}]
  %s10 = inlined_call_operand.vmem [shape: f32[32,32], index: 10, kind: input, shape index: {}]
  %s11 = inlined_call_operand.vmem [shape: f32[1,32], index: 11, kind: input, shape index: {}]
  %s12 = inlined_call_operand.hbm [shape: f32[2,2,32], index: 12, kind: output, shape index: {}]
  %s13 = sld [smem:[#allocation0]]
  $region85: #{tpu_custom_call.1} parent=0
    _
  %s15 = ssub.s32 1, %s13
  %s16 = scalar_select 0, %s15, %s13
  $region1: #{tpu_custom_call.1} parent=0
    #allocation2 [shape = 'u8[1024]{0}', space=vmem, size = 0x400, scoped, tag = 'input window, operand 3, single buffered']
    #allocation3 [shape = 's32[2]{0}', space=sflag, size = 0x8, scoped, tag = 'scoped memory for tpu_custom_call.1']
    #allocation4 [shape = 's32[2]{0}', space=sflag, size = 0x8, scoped, tag = 'scoped memory for tpu_custom_call.1']
    #allocation5 [shape = 'u8[2048]{0}', space=vmem, size = 0x800, scoped, tag = 'output window, operand 0']
    %17 = vsyncpa [#allocation3], 0
    %18 = vsyncpa [#allocation4], 0
    %s19 = scalar_lea.sflag [#allocation4], 1
    %20 = vsyncpa %s19, 0
    loop: start=0, step=1, limit=4
    $region2: #{tpu_custom_call.1} parent=1 // loop_pre_header
      _
    $region3: #{tpu_custom_call.1} parent=1 // loop_header
      %s22 = sphi 0, %s26
      %p23 = scmp.ge.s32.totalorder %s22, 4
      %s32 = sphi 0, %s34
      %s35 = sphi 0, %s32
      %s36 = sphi 0, %s35
      %s52 = sphi 0, %s36
      %s56 = sphi 0, %s56
      %s58 = sphi 0, %s56
      %s59 = sphi 0, %s58
      %s73 = sphi 0, %s59
      %s77 = sphi 0, %s77
      %s79 = sphi 0, %s77
      %s80 = sphi 0, %s79
      %s94 = sphi 0, %s80
      %s98 = sphi 0, %s98
      %s100 = sphi 0, %s98
      %s101 = sphi 0, %s100
      %s115 = sphi 0, %s101
      %s119 = sphi 0, %s119
      %s121 = sphi 0, %s119
      %s122 = sphi 0, %s121
      %s136 = sphi 0, %s122
      %s140 = sphi 0, %s140
      %s142 = sphi 0, %s140
      %s143 = sphi 0, %s142
      %s157 = sphi 0, %s143
      %s161 = sphi 0, %s161
      %s163 = sphi 0, %s161
      %s164 = sphi 0, %s163
      %s178 = sphi 0, %s164
      %s182 = sphi 0, %s182
      %s184 = sphi 0, %s182
      %s185 = sphi 0, %s184
      %s199 = sphi 0, %s185
      %s203 = sphi 0, %s203
      %s205 = sphi 0, %s203
      %s206 = sphi 0, %s205
      %s220 = sphi 0, %s206
      %s224 = sphi 0, %s224
      %s226 = sphi 0, %s224
      %s227 = sphi 0, %s226
      %s241 = sphi 0, %s227
      %s245 = sphi 0, %s245
      %s247 = sphi 0, %s245
      %s248 = sphi 0, %s247
      %s262 = sphi 0, %s248
      %s266 = sphi 0, %s266
      %s268 = sphi 0, %s266
      %s269 = sphi 0, %s268
      %s283 = sphi 0, %s269
      %s289 = sphi 0, %s291
      %s292 = sphi 0, %s289
      %s293 = sphi 0, %s292
      %s309 = sphi 0, %s293
    $region4: #{tpu_custom_call.1} parent=1 // loop_header_branch
      %25 = sbr.rel (%p23) target = $region8
    $region5: #{tpu_custom_call.1} parent=1 // loop_body
      %s27 = ssub.s32 %s22, 1
      %s28 = ssub.s32 %s22, 2
      %s29 = sadd.s32 %s22, 1
      %s30 = ssub.s32 %s22, %s29
      %p31 = scmp.eq.s32.totalorder %s30, 0
      %s33 = sadd.s32 %s32, 1
      %s34 = scalar_select %p31, %s32, %s33
      %p37 = pneg %p31
      %p38 = scmp.eq.s32.totalorder %s22, 1
      %p39 = por %p37, %p38
      %p40 = scmp.ne.s32.totalorder %s32, %s35
      %p41 = scmp.eq.s32.totalorder %s22, 0
      %p42 = por %p40, %p41
      %p43 = scmp.ne.s32.totalorder %s32, %s35
      %p44 = scmp.eq.s32.totalorder %s27, 1
      %p45 = por %p43, %p44
      %p46 = scmp.ne.s32.totalorder %s35, %s36
      %p47 = scmp.eq.s32.totalorder %s27, 0
      %p48 = por %p46, %p47
      %p49 = scmp.ne.s32.totalorder %s35, %s36
      %p50 = scmp.eq.s32.totalorder %s28, 1
      %p51 = por %p49, %p50
      %p53 = scmp.ne.s32.totalorder %s36, %s52
      %p54 = scmp.eq.s32.totalorder %s28, 0
      %p55 = por %p53, %p54
      %s57 = sadd.s32 %s56, 1
      %p60 = scmp.eq.s32.totalorder %s22, 1
      %p61 = scmp.ne.s32.totalorder %s56, %s58
      %p62 = scmp.eq.s32.totalorder %s22, 0
      %p63 = por %p61, %p62
      %p64 = scmp.ne.s32.totalorder %s56, %s58
      %p65 = scmp.eq.s32.totalorder %s27, 1
      %p66 = por %p64, %p65
      %p67 = scmp.ne.s32.totalorder %s58, %s59
      %p68 = scmp.eq.s32.totalorder %s27, 0
      %p69 = por %p67, %p68
      %p70 = scmp.ne.s32.totalorder %s58, %s59
      %p71 = scmp.eq.s32.totalorder %s28, 1
      %p72 = por %p70, %p71
      %p74 = scmp.ne.s32.totalorder %s59, %s73
      %p75 = scmp.eq.s32.totalorder %s28, 0
      %p76 = por %p74, %p75
      %s78 = sadd.s32 %s77, 1
      %p81 = scmp.eq.s32.totalorder %s22, 1
      %p82 = scmp.ne.s32.totalorder %s77, %s79
      %p83 = scmp.eq.s32.totalorder %s22, 0
      %p84 = por %p82, %p83
      %p85 = scmp.ne.s32.totalorder %s77, %s79
      %p86 = scmp.eq.s32.totalorder %s27, 1
      %p87 = por %p85, %p86
      %p88 = scmp.ne.s32.totalorder %s79, %s80
      %p89 = scmp.eq.s32.totalorder %s27, 0
      %p90 = por %p88, %p89
      %p91 = scmp.ne.s32.totalorder %s79, %s80
      %p92 = scmp.eq.s32.totalorder %s28, 1
      %p93 = por %p91, %p92
      %p95 = scmp.ne.s32.totalorder %s80, %s94
      %p96 = scmp.eq.s32.totalorder %s28, 0
      %p97 = por %p95, %p96
      %s99 = sadd.s32 %s98, 1
      %p102 = scmp.eq.s32.totalorder %s22, 1
      %p103 = scmp.ne.s32.totalorder %s98, %s100
      %p104 = scmp.eq.s32.totalorder %s22, 0
      %p105 = por %p103, %p104
      %p106 = scmp.ne.s32.totalorder %s98, %s100
      %p107 = scmp.eq.s32.totalorder %s27, 1
      %p108 = por %p106, %p107
      %p109 = scmp.ne.s32.totalorder %s100, %s101
      %p110 = scmp.eq.s32.totalorder %s27, 0
      %p111 = por %p109, %p110
      %p112 = scmp.ne.s32.totalorder %s100, %s101
      %p113 = scmp.eq.s32.totalorder %s28, 1
      %p114 = por %p112, %p113
      %p116 = scmp.ne.s32.totalorder %s101, %s115
      %p117 = scmp.eq.s32.totalorder %s28, 0
      %p118 = por %p116, %p117
      %s120 = sadd.s32 %s119, 1
      %p123 = scmp.eq.s32.totalorder %s22, 1
      %p124 = scmp.ne.s32.totalorder %s119, %s121
      %p125 = scmp.eq.s32.totalorder %s22, 0
      %p126 = por %p124, %p125
      %p127 = scmp.ne.s32.totalorder %s119, %s121
      %p128 = scmp.eq.s32.totalorder %s27, 1
      %p129 = por %p127, %p128
      %p130 = scmp.ne.s32.totalorder %s121, %s122
      %p131 = scmp.eq.s32.totalorder %s27, 0
      %p132 = por %p130, %p131
      %p133 = scmp.ne.s32.totalorder %s121, %s122
      %p134 = scmp.eq.s32.totalorder %s28, 1
      %p135 = por %p133, %p134
      %p137 = scmp.ne.s32.totalorder %s122, %s136
      %p138 = scmp.eq.s32.totalorder %s28, 0
      %p139 = por %p137, %p138
      %s141 = sadd.s32 %s140, 1
      %p144 = scmp.eq.s32.totalorder %s22, 1
      %p145 = scmp.ne.s32.totalorder %s140, %s142
      %p146 = scmp.eq.s32.totalorder %s22, 0
      %p147 = por %p145, %p146
      %p148 = scmp.ne.s32.totalorder %s140, %s142
      %p149 = scmp.eq.s32.totalorder %s27, 1
      %p150 = por %p148, %p149
      %p151 = scmp.ne.s32.totalorder %s142, %s143
      %p152 = scmp.eq.s32.totalorder %s27, 0
      %p153 = por %p151, %p152
      %p154 = scmp.ne.s32.totalorder %s142, %s143
      %p155 = scmp.eq.s32.totalorder %s28, 1
      %p156 = por %p154, %p155
      %p158 = scmp.ne.s32.totalorder %s143, %s157
      %p159 = scmp.eq.s32.totalorder %s28, 0
      %p160 = por %p158, %p159
      %s162 = sadd.s32 %s161, 1
      %p165 = scmp.eq.s32.totalorder %s22, 1
      %p166 = scmp.ne.s32.totalorder %s161, %s163
      %p167 = scmp.eq.s32.totalorder %s22, 0
      %p168 = por %p166, %p167
      %p169 = scmp.ne.s32.totalorder %s161, %s163
      %p170 = scmp.eq.s32.totalorder %s27, 1
      %p171 = por %p169, %p170
      %p172 = scmp.ne.s32.totalorder %s163, %s164
      %p173 = scmp.eq.s32.totalorder %s27, 0
      %p174 = por %p172, %p173
      %p175 = scmp.ne.s32.totalorder %s163, %s164
      %p176 = scmp.eq.s32.totalorder %s28, 1
      %p177 = por %p175, %p176
      %p179 = scmp.ne.s32.totalorder %s164, %s178
      %p180 = scmp.eq.s32.totalorder %s28, 0
      %p181 = por %p179, %p180
      %s183 = sadd.s32 %s182, 1
      %p186 = scmp.eq.s32.totalorder %s22, 1
      %p187 = scmp.ne.s32.totalorder %s182, %s184
      %p188 = scmp.eq.s32.totalorder %s22, 0
      %p189 = por %p187, %p188
      %p190 = scmp.ne.s32.totalorder %s182, %s184
      %p191 = scmp.eq.s32.totalorder %s27, 1
      %p192 = por %p190, %p191
      %p193 = scmp.ne.s32.totalorder %s184, %s185
      %p194 = scmp.eq.s32.totalorder %s27, 0
      %p195 = por %p193, %p194
      %p196 = scmp.ne.s32.totalorder %s184, %s185
      %p197 = scmp.eq.s32.totalorder %s28, 1
      %p198 = por %p196, %p197
      %p200 = scmp.ne.s32.totalorder %s185, %s199
      %p201 = scmp.eq.s32.totalorder %s28, 0
      %p202 = por %p200, %p201
      %s204 = sadd.s32 %s203, 1
      %p207 = scmp.eq.s32.totalorder %s22, 1
      %p208 = scmp.ne.s32.totalorder %s203, %s205
      %p209 = scmp.eq.s32.totalorder %s22, 0
      %p210 = por %p208, %p209
      %p211 = scmp.ne.s32.totalorder %s203, %s205
      %p212 = scmp.eq.s32.totalorder %s27, 1
      %p213 = por %p211, %p212
      %p214 = scmp.ne.s32.totalorder %s205, %s206
      %p215 = scmp.eq.s32.totalorder %s27, 0
      %p216 = por %p214, %p215
      %p217 = scmp.ne.s32.totalorder %s205, %s206
      %p218 = scmp.eq.s32.totalorder %s28, 1
      %p219 = por %p217, %p218
      %p221 = scmp.ne.s32.totalorder %s206, %s220
      %p222 = scmp.eq.s32.totalorder %s28, 0
      %p223 = por %p221, %p222
      %s225 = sadd.s32 %s224, 1
      %p228 = scmp.eq.s32.totalorder %s22, 1
      %p229 = scmp.ne.s32.totalorder %s224, %s226
      %p230 = scmp.eq.s32.totalorder %s22, 0
      %p231 = por %p229, %p230
      %p232 = scmp.ne.s32.totalorder %s224, %s226
      %p233 = scmp.eq.s32.totalorder %s27, 1
      %p234 = por %p232, %p233
      %p235 = scmp.ne.s32.totalorder %s226, %s227
      %p236 = scmp.eq.s32.totalorder %s27, 0
      %p237 = por %p235, %p236
      %p238 = scmp.ne.s32.totalorder %s226, %s227
      %p239 = scmp.eq.s32.totalorder %s28, 1
      %p240 = por %p238, %p239
      %p242 = scmp.ne.s32.totalorder %s227, %s241
      %p243 = scmp.eq.s32.totalorder %s28, 0
      %p244 = por %p242, %p243
      %s246 = sadd.s32 %s245, 1
      %p249 = scmp.eq.s32.totalorder %s22, 1
      %p250 = scmp.ne.s32.totalorder %s245, %s247
      %p251 = scmp.eq.s32.totalorder %s22, 0
      %p252 = por %p250, %p251
      %p253 = scmp.ne.s32.totalorder %s245, %s247
      %p254 = scmp.eq.s32.totalorder %s27, 1
      %p255 = por %p253, %p254
      %p256 = scmp.ne.s32.totalorder %s247, %s248
      %p257 = scmp.eq.s32.totalorder %s27, 0
      %p258 = por %p256, %p257
      %p259 = scmp.ne.s32.totalorder %s247, %s248
      %p260 = scmp.eq.s32.totalorder %s28, 1
      %p261 = por %p259, %p260
      %p263 = scmp.ne.s32.totalorder %s248, %s262
      %p264 = scmp.eq.s32.totalorder %s28, 0
      %p265 = por %p263, %p264
      %s267 = sadd.s32 %s266, 1
      %p270 = scmp.eq.s32.totalorder %s22, 1
      %p271 = scmp.ne.s32.totalorder %s266, %s268
      %p272 = scmp.eq.s32.totalorder %s22, 0
      %p273 = por %p271, %p272
      %p274 = scmp.ne.s32.totalorder %s266, %s268
      %p275 = scmp.eq.s32.totalorder %s27, 1
      %p276 = por %p274, %p275
      %p277 = scmp.ne.s32.totalorder %s268, %s269
      %p278 = scmp.eq.s32.totalorder %s27, 0
      %p279 = por %p277, %p278
      %p280 = scmp.ne.s32.totalorder %s268, %s269
      %p281 = scmp.eq.s32.totalorder %s28, 1
      %p282 = por %p280, %p281
      %p284 = scmp.ne.s32.totalorder %s269, %s283
      %p285 = scmp.eq.s32.totalorder %s28, 0
      %p286 = por %p284, %p285
      %s287 = ssub.s32 %s22, %s29
      %p288 = scmp.eq.s32.totalorder %s287, 0
      %s290 = sadd.s32 %s289, 1
      %s291 = scalar_select %p288, %s289, %s290
      %p294 = pneg %p288
      %p295 = scmp.eq.s32.totalorder %s22, 1
      %p296 = por %p294, %p295
      %p297 = scmp.ne.s32.totalorder %s289, %s292
      %p298 = scmp.eq.s32.totalorder %s22, 0
      %p299 = por %p297, %p298
      %p300 = scmp.ne.s32.totalorder %s289, %s292
      %p301 = scmp.eq.s32.totalorder %s27, 1
      %p302 = por %p300, %p301
      %p303 = scmp.ne.s32.totalorder %s292, %s293
      %p304 = scmp.eq.s32.totalorder %s27, 0
      %p305 = por %p303, %p304
      %p306 = scmp.ne.s32.totalorder %s292, %s293
      %p307 = scmp.eq.s32.totalorder %s28, 1
      %p308 = por %p306, %p307
      %p310 = scmp.ne.s32.totalorder %s293, %s309
      %p311 = scmp.eq.s32.totalorder %s28, 0
      %p312 = por %p310, %p311
      %p313 = scmp.le.s32.totalorder 1, %s22
      %p314 = scmp.lt.s32.totalorder %s22, 3
      %p315 = pnand %p313, %p314
      %p316 = pneg %p315
      // Predicated region
      $region9: #{tpu_custom_call.1} parent=5 // pred_check
        _
      $region10: #{tpu_custom_call.1} parent=5 // pred_check_branch
        %318 = sbr.rel (%p315) target = $region12
      $region11: #{tpu_custom_call.1} parent=5 // pred_region
        %s319 = ssub.s32 %s22, 1
        // Predicated region
        $region13: #{tpu_custom_call.1} parent=11 // pred_check
          %p320 = pneg %p69
        $region14: #{tpu_custom_call.1} parent=11 // pred_check_branch
          %322 = sbr.rel (%p320) target = $region16
        $region15: #{tpu_custom_call.1} parent=11 // pred_region
          _
        $region16: #{tpu_custom_call.1} parent=11 // pred_fallthru
          _
        // Predicated region
        $region17: #{tpu_custom_call.1} parent=11 // pred_check
          %p323 = pneg %p90
        $region18: #{tpu_custom_call.1} parent=11 // pred_check_branch
          %325 = sbr.rel (%p323) target = $region20
        $region19: #{tpu_custom_call.1} parent=11 // pred_region
          _
        $region20: #{tpu_custom_call.1} parent=11 // pred_fallthru
          _
        // Predicated region
        $region21: #{tpu_custom_call.1} parent=11 // pred_check
          %p326 = pneg %p111
        $region22: #{tpu_custom_call.1} parent=11 // pred_check_branch
          %328 = sbr.rel (%p326) target = $region24
        $region23: #{tpu_custom_call.1} parent=11 // pred_region
          %s330 = ssub.s32 32, 32
          %331 = vsyncadd [#allocation3], %s330
          %s333 = sshll.u32 [#allocation2], 4
          %s334 = int_to_ptr.vmem [resolvable:$true] %s333
          %336 = dma.hbm_to_vmem [thread:$0]  %s3, 32, %s334, [#allocation3]
        $region24: #{tpu_custom_call.1} parent=11 // pred_fallthru
          _
        // Predicated region
        $region25: #{tpu_custom_call.1} parent=11 // pred_check
          %p337 = pneg %p132
        $region26: #{tpu_custom_call.1} parent=11 // pred_check_branch
          %339 = sbr.rel (%p337) target = $region28
        $region27: #{tpu_custom_call.1} parent=11 // pred_region
          _
        $region28: #{tpu_custom_call.1} parent=11 // pred_fallthru
          _
        // Predicated region
        $region29: #{tpu_custom_call.1} parent=11 // pred_check
          %p340 = pneg %p153
        $region30: #{tpu_custom_call.1} parent=11 // pred_check_branch
          %342 = sbr.rel (%p340) target = $region32
        $region31: #{tpu_custom_call.1} parent=11 // pred_region
          _
        $region32: #{tpu_custom_call.1} parent=11 // pred_fallthru
          _
        // Predicated region
        $region33: #{tpu_custom_call.1} parent=11 // pred_check
          %p343 = pneg %p174
        $region34: #{tpu_custom_call.1} parent=11 // pred_check_branch
          %345 = sbr.rel (%p343) target = $region36
        $region35: #{tpu_custom_call.1} parent=11 // pred_region
          _
        $region36: #{tpu_custom_call.1} parent=11 // pred_fallthru
          _
        // Predicated region
        $region37: #{tpu_custom_call.1} parent=11 // pred_check
          %p346 = pneg %p195
        $region38: #{tpu_custom_call.1} parent=11 // pred_check_branch
          %348 = sbr.rel (%p346) target = $region40
        $region39: #{tpu_custom_call.1} parent=11 // pred_region
          _
        $region40: #{tpu_custom_call.1} parent=11 // pred_fallthru
          _
        // Predicated region
        $region41: #{tpu_custom_call.1} parent=11 // pred_check
          %p349 = pneg %p216
        $region42: #{tpu_custom_call.1} parent=11 // pred_check_branch
          %351 = sbr.rel (%p349) target = $region44
        $region43: #{tpu_custom_call.1} parent=11 // pred_region
          _
        $region44: #{tpu_custom_call.1} parent=11 // pred_fallthru
          _
        // Predicated region
        $region45: #{tpu_custom_call.1} parent=11 // pred_check
          %p352 = pneg %p237
        $region46: #{tpu_custom_call.1} parent=11 // pred_check_branch
          %354 = sbr.rel (%p352) target = $region48
        $region47: #{tpu_custom_call.1} parent=11 // pred_region
          _
        $region48: #{tpu_custom_call.1} parent=11 // pred_fallthru
          _
        // Predicated region
        $region49: #{tpu_custom_call.1} parent=11 // pred_check
          %p355 = pneg %p258
        $region50: #{tpu_custom_call.1} parent=11 // pred_check_branch
          %357 = sbr.rel (%p355) target = $region52
        $region51: #{tpu_custom_call.1} parent=11 // pred_region
          _
        $region52: #{tpu_custom_call.1} parent=11 // pred_fallthru
          _
        // Predicated region
        $region53: #{tpu_custom_call.1} parent=11 // pred_check
          %p358 = pneg %p279
        $region54: #{tpu_custom_call.1} parent=11 // pred_check_branch
          %360 = sbr.rel (%p358) target = $region56
        $region55: #{tpu_custom_call.1} parent=11 // pred_region
          _
        $region56: #{tpu_custom_call.1} parent=11 // pred_fallthru
          _
      $region12: #{tpu_custom_call.1} parent=5 // pred_fallthru
        _
      %p361 = scmp.lt.s32.totalorder %s22, 2
      // Predicated region
      $region57: #{tpu_custom_call.1} parent=5 // pred_check
        %p362 = pneg %p361
      $region58: #{tpu_custom_call.1} parent=5 // pred_check_branch
        %364 = sbr.rel (%p362) target = $region60
      $region59: #{tpu_custom_call.1} parent=5 // pred_region
        // Predicated region
        $region61: #{tpu_custom_call.1} parent=59 // pred_check
          %p365 = pneg %p42
        $region62: #{tpu_custom_call.1} parent=59 // pred_check_branch
          %367 = sbr.rel (%p365) target = $region64
        $region63: #{tpu_custom_call.1} parent=59 // pred_region
          %p368 = scmp.lt.s32.totalorder %s22, 1
          %s369 = scalar_select %p368, %s22, 1
          %s370 = smul.addr %s369, 4
          %s371 = smul.addr %s370, 8
          %s372 = scalar_lea.vmem %s0, %s371
        $region64: #{tpu_custom_call.1} parent=59 // pred_fallthru
          _
      $region60: #{tpu_custom_call.1} parent=5 // pred_fallthru
        _
      %p373 = scmp.le.s32.totalorder 1, %s22
      %p374 = scmp.lt.s32.totalorder %s22, 3
      %p375 = pnand %p373, %p374
      %p376 = pneg %p375
      // Predicated region
      $region65: #{tpu_custom_call.1} parent=5 // pred_check
        _
      $region66: #{tpu_custom_call.1} parent=5 // pred_check_branch
        %378 = sbr.rel (%p375) target = $region68
      $region67: #{tpu_custom_call.1} parent=5 // pred_region
        %s379 = ssub.s32 %s22, 1
        // Predicated region
        $region69: #{tpu_custom_call.1} parent=67 // pred_check
          %p380 = pneg %p111
        $region70: #{tpu_custom_call.1} parent=67 // pred_check_branch
          %382 = sbr.rel (%p380) target = $region72
        $region71: #{tpu_custom_call.1} parent=67 // pred_region
          %383 = dma.done [#allocation3], 32
        $region72: #{tpu_custom_call.1} parent=67 // pred_fallthru
          _
        %p384 = scmp.lt.s32.totalorder %s27, 1
        %s385 = scalar_select %p384, %s27, 1
        %s386 = smul.addr %s385, 4
        %s387 = smul.addr %s386, 8
        %s388 = scalar_lea.vmem %s0, %s387
        %p389 = pneg %p48
        %p390 = pneg %p45
        %p391 = pneg %p69
        %p392 = pneg %p66
        %p393 = pneg %p90
        %p394 = pneg %p87
        %p395 = pneg %p111
        %p396 = pneg %p108
        %p397 = pneg %p132
        %p398 = pneg %p129
        %p399 = pneg %p153
        %p400 = pneg %p150
        %p401 = pneg %p174
        %p402 = pneg %p171
        %p403 = pneg %p195
        %p404 = pneg %p192
        %p405 = pneg %p216
        %p406 = pneg %p213
        %p407 = pneg %p237
        %p408 = pneg %p234
        %p409 = pneg %p258
        %p410 = pneg %p255
        %p411 = pneg %p279
        %p412 = pneg %p276
        %p413 = pneg %p305
        %p414 = pneg %p302
        %s415 = sand.u32 %s292, 1
        %s416 = scalar_lea.sflag [#allocation4], %s415
        %s417 = sand.u32 %s292, 1
        %s418 = smul.addr %s417, 2
        %s419 = scalar_lea.vmem [#allocation5], %s418
        %p420 = scmp.lt.s32.totalorder %s27, 1
        %s421 = scalar_select %p420, %s27, 1
        %s422 = smul.addr %s421, 4
        %s423 = smul.addr %s422, 8
        %s424 = scalar_lea.vmem %s0, %s423
        %v425 = vld [vmem:[%s424] sm:$0xff]
        %v426 = vld [vmem:[%s424 + $0x8] sm:$0xff]
        %v427 = vld [vmem:[%s424 + $0x10] sm:$0xff]
        %v428 = vld [vmem:[%s424 + $0x18] sm:$0xff]
        %v429 = vld [vmem:[%s2] sm:$0xff]
        %v430 = vld [vmem:[%s2 + $0x8] sm:$0xff]
        %v431 = vld [vmem:[%s2 + $0x10] sm:$0xff]
        %v432 = vld [vmem:[%s2 + $0x18] sm:$0xff]
        %v433 = vld [vmem:[#allocation2] sm:$0x3]
        %vm434 = vcmask 261120
        %v436 = vsel %vm434, %v425, 0
        %v439 = vsel %vm434, %v426, 0
        %v442 = vsel %vm434, %v427, 0
        %v445 = vsel %vm434, %v428, 0
        %447 = vmatprep.subr.mxu0 0.0
        %448 = vmatpush1.msra.mxu0 %v429
        %449 = vmatprep.subr.mxu0 0.0
        %450 = vmatpush1.msra.mxu0 %v430
        %451 = vmatprep.subr.mxu0 0.0
        %452 = vmatpush1.msra.mxu0 %v431
        %453 = vmatprep.subr.mxu0 0.0
        %454 = vmatpush1.msra.mxu0 %v432
        %455 = vmatprep.subr.mxu0 0.0
        %456 = vmatpush1.msra.mxu0 0.0
        %457 = vmatprep.subr.mxu0 0.0
        %458 = vmatpush1.msra.mxu0 0.0
        %459 = vmatprep.subr.mxu0 0.0
        %460 = vmatpush1.msra.mxu0 0.0
        %461 = vmatprep.subr.mxu0 0.0
        %462 = vmatpush1.msra.mxu0 0.0
        %463 = vmatprep.subr.mxu0 0.0
        %464 = vmatpush1.msra.mxu0 0.0
        %465 = vmatprep.subr.mxu0 0.0
        %466 = vmatpush1.msra.mxu0 0.0
        %467 = vmatprep.subr.mxu0 0.0
        %468 = vmatpush1.msra.mxu0 0.0
        %469 = vmatprep.subr.mxu0 0.0
        %470 = vmatpush1.msra.mxu0 0.0
        %471 = vmatprep.subr.mxu0 0.0
        %472 = vmatpush1.msra.mxu0 0.0
        %473 = vmatprep.subr.mxu0 0.0
        %474 = vmatpush1.msra.mxu0 0.0
        %475 = vmatprep.subr.mxu0 0.0
        %476 = vmatpush1.msra.mxu0 0.0
        %477 = vmatprep.subr.mxu0 0.0
        %478 = vmatpush1.msra.mxu0 0.0
        %479 = vmatprep.subr.mxu0 0.0
        %480 = vmatpush1.msra.mxu0 0.0
        %481 = vmatprep.subr.mxu0 0.0
        %482 = vmatpush1.msra.mxu0 0.0
        %483 = vmatprep.subr.mxu0 0.0
        %484 = vmatpush1.msra.mxu0 0.0
        %485 = vmatprep.subr.mxu0 0.0
        %486 = vmatpush1.msra.mxu0 0.0
        %487 = vmatprep.subr.mxu0 0.0
        %488 = vmatpush1.msra.mxu0 0.0
        %489 = vmatprep.subr.mxu0 0.0
        %490 = vmatpush1.msra.mxu0 0.0
        %491 = vmatprep.subr.mxu0 0.0
        %492 = vmatpush1.msra.mxu0 0.0
        %493 = vmatprep.subr.mxu0 0.0
        %494 = vmatpush1.msra.mxu0 0.0
        %495 = vmatprep.subr.mxu0 0.0
        %496 = vmatpush1.msra.mxu0 0.0
        %497 = vmatprep.subr.mxu0 0.0
        %498 = vmatpush1.msra.mxu0 0.0
        %499 = vmatprep.subr.mxu0 0.0
        %500 = vmatpush1.msra.mxu0 0.0
        %501 = vmatprep.subr.mxu0 0.0
        %502 = vmatpush1.msra.mxu0 0.0
        %503 = vmatprep.subr.mxu0 0.0
        %504 = vmatpush1.msra.mxu0 0.0
        %505 = vmatprep.subr.mxu0 0.0
        %506 = vmatpush1.msra.mxu0 0.0
        %507 = vmatprep.subr.mxu0 0.0
        %508 = vmatpush1.msra.mxu0 0.0
        %509 = vmatprep.subr.mxu0 0.0
        %510 = vmatpush1.msra.mxu0 0.0
        %511 = vmatprep.mubr.f32.mxu0 0.0
        %512 = vmatmul.mubr.f32.gmra.mrb[0].mxu0 %v436
        %v513 = vpop.f32.mrb[0].mxu0
        %v514 = vadd.f32 0.0, %v513
        %v515 = vpop.f32.mrb[0].mxu0
        %516 = vmatprep.mubr.f32.mxu0 0.0
        %517 = vmatmul.mubr.f32.gmra.mrb[0].mxu0 %v439
        %v518 = vpop.f32.mrb[0].mxu0
        %v519 = vadd.f32 0.0, %v518
        %v520 = vpop.f32.mrb[0].mxu0
        %521 = vmatprep.mubr.f32.mxu0 0.0
        %522 = vmatmul.mubr.f32.gmra.mrb[0].mxu0 %v442
        %v523 = vpop.f32.mrb[0].mxu0
        %v524 = vadd.f32 0.0, %v523
        %v525 = vpop.f32.mrb[0].mxu0
        %526 = vmatprep.mubr.f32.mxu0 0.0
        %527 = vmatmul.mubr.f32.gmra.mrb[0].mxu0 %v445
        %v528 = vpop.f32.mrb[0].mxu0
        %v529 = vadd.f32 0.0, %v528
        %v530 = vpop.f32.mrb[0].mxu0
        %531 = vdwg.mxu0
        %v532 = vmul.f32 %v514, 0.0625
        %v533 = vmul.f32 %v519, 0.0625
        %v534 = vmul.f32 %v524, 0.0625
        %v535 = vmul.f32 %v529, 0.0625
        %v536 = vld [vmem:[%s1] sm:$0xff]
        %v537 = vld [vmem:[%s1 + $0x8] sm:$0xff]
        %v538 = vld [vmem:[%s1 + $0x10] sm:$0xff]
        %v539 = vld [vmem:[%s1 + $0x18] sm:$0xff]
        %541 = vset.pattern.permute.xlu0 0
        %542 = vperm.xlu0 %541, %v536
        %v543 = vpop.permute.xlu0 %542
        %546 = vset.pattern.permute.xlu0 0
        %547 = vperm.xlu0 %546, %v537
        %v548 = vpop.permute.xlu0 %547
        %551 = vset.pattern.permute.xlu0 0
        %552 = vperm.xlu0 %551, %v538
        %v553 = vpop.permute.xlu0 %552
        %556 = vset.pattern.permute.xlu0 0
        %557 = vperm.xlu0 %556, %v539
        %v558 = vpop.permute.xlu0 %557
        %v560 = vadd.f32 %v532, %v543
        %v561 = vadd.f32 %v533, %v548
        %v562 = vadd.f32 %v534, %v553
        %v563 = vadd.f32 %v535, %v558
        %v564 = vld [vmem:[%s4] sm:$0xff]
        %v565 = vld [vmem:[%s4 + $0x8] sm:$0xff]
        %v566 = vld [vmem:[%s4 + $0x10] sm:$0xff]
        %v567 = vld [vmem:[%s4 + $0x18] sm:$0xff]
        %v568 = vld [vmem:[%s7] sm:$0xff]
        %v569 = vld [vmem:[%s7 + $0x8] sm:$0xff]
        %v570 = vld [vmem:[%s7 + $0x10] sm:$0xff]
        %v571 = vld [vmem:[%s7 + $0x18] sm:$0xff]
        %573 = vset.pattern.permute.xlu0 0
        %574 = vperm.xlu0 %573, %v568
        %v575 = vpop.permute.xlu0 %574
        %578 = vset.pattern.permute.xlu0 0
        %579 = vperm.xlu0 %578, %v569
        %v580 = vpop.permute.xlu0 %579
        %583 = vset.pattern.permute.xlu0 0
        %584 = vperm.xlu0 %583, %v570
        %v585 = vpop.permute.xlu0 %584
        %588 = vset.pattern.permute.xlu0 0
        %589 = vperm.xlu0 %588, %v571
        %v590 = vpop.permute.xlu0 %589
        %v593 = vsel %vm434, %v564, 0
        %v596 = vsel %vm434, %v565, 0
        %v599 = vsel %vm434, %v566, 0
        %v602 = vsel %vm434, %v567, 0
        %604 = vmatprep.subr.mxu0 0.0
        %605 = vmatpush1.msra.mxu0 %v560
        %606 = vmatprep.subr.mxu0 0.0
        %607 = vmatpush1.msra.mxu0 %v561
        %608 = vmatprep.subr.mxu0 0.0
        %609 = vmatpush1.msra.mxu0 %v562
        %610 = vmatprep.subr.mxu0 0.0
        %611 = vmatpush1.msra.mxu0 %v563
        %612 = vmatprep.subr.mxu0 0.0
        %613 = vmatpush1.msra.mxu0 0.0
        %614 = vmatprep.subr.mxu0 0.0
        %615 = vmatpush1.msra.mxu0 0.0
        %616 = vmatprep.subr.mxu0 0.0
        %617 = vmatpush1.msra.mxu0 0.0
        %618 = vmatprep.subr.mxu0 0.0
        %619 = vmatpush1.msra.mxu0 0.0
        %620 = vmatprep.subr.mxu0 0.0
        %621 = vmatpush1.msra.mxu0 0.0
        %622 = vmatprep.subr.mxu0 0.0
        %623 = vmatpush1.msra.mxu0 0.0
        %624 = vmatprep.subr.mxu0 0.0
        %625 = vmatpush1.msra.mxu0 0.0
        %626 = vmatprep.subr.mxu0 0.0
        %627 = vmatpush1.msra.mxu0 0.0
        %628 = vmatprep.subr.mxu0 0.0
        %629 = vmatpush1.msra.mxu0 0.0
        %630 = vmatprep.subr.mxu0 0.0
        %631 = vmatpush1.msra.mxu0 0.0
        %632 = vmatprep.subr.mxu0 0.0
        %633 = vmatpush1.msra.mxu0 0.0
        %634 = vmatprep.subr.mxu0 0.0
        %635 = vmatpush1.msra.mxu0 0.0
        %636 = vmatprep.subr.mxu0 0.0
        %637 = vmatpush1.msra.mxu0 0.0
        %638 = vmatprep.subr.mxu0 0.0
        %639 = vmatpush1.msra.mxu0 0.0
        %640 = vmatprep.subr.mxu0 0.0
        %641 = vmatpush1.msra.mxu0 0.0
        %642 = vmatprep.subr.mxu0 0.0
        %643 = vmatpush1.msra.mxu0 0.0
        %644 = vmatprep.subr.mxu0 0.0
        %645 = vmatpush1.msra.mxu0 0.0
        %646 = vmatprep.subr.mxu0 0.0
        %647 = vmatpush1.msra.mxu0 0.0
        %648 = vmatprep.subr.mxu0 0.0
        %649 = vmatpush1.msra.mxu0 0.0
        %650 = vmatprep.subr.mxu0 0.0
        %651 = vmatpush1.msra.mxu0 0.0
        %652 = vmatprep.subr.mxu0 0.0
        %653 = vmatpush1.msra.mxu0 0.0
        %654 = vmatprep.subr.mxu0 0.0
        %655 = vmatpush1.msra.mxu0 0.0
        %656 = vmatprep.subr.mxu0 0.0
        %657 = vmatpush1.msra.mxu0 0.0
        %658 = vmatprep.subr.mxu0 0.0
        %659 = vmatpush1.msra.mxu0 0.0
        %660 = vmatprep.subr.mxu0 0.0
        %661 = vmatpush1.msra.mxu0 0.0
        %662 = vmatprep.subr.mxu0 0.0
        %663 = vmatpush1.msra.mxu0 0.0
        %664 = vmatprep.subr.mxu0 0.0
        %665 = vmatpush1.msra.mxu0 0.0
        %666 = vmatprep.subr.mxu0 0.0
        %667 = vmatpush1.msra.mxu0 0.0
        %668 = vmatprep.mubr.f32.mxu0 0.0
        %669 = vmatmul.mubr.f32.gmra.mrb[0].mxu0 %v593
        %v670 = vpop.f32.mrb[0].mxu0
        %v671 = vadd.f32 %v575, %v670
        %v672 = vpop.f32.mrb[0].mxu0
        %673 = vmatprep.mubr.f32.mxu0 0.0
        %674 = vmatmul.mubr.f32.gmra.mrb[0].mxu0 %v596
        %v675 = vpop.f32.mrb[0].mxu0
        %v676 = vadd.f32 %v580, %v675
        %v677 = vpop.f32.mrb[0].mxu0
        %678 = vmatprep.mubr.f32.mxu0 0.0
        %679 = vmatmul.mubr.f32.gmra.mrb[0].mxu0 %v599
        %v680 = vpop.f32.mrb[0].mxu0
        %v681 = vadd.f32 %v585, %v680
        %v682 = vpop.f32.mrb[0].mxu0
        %683 = vmatprep.mubr.f32.mxu0 0.0
        %684 = vmatmul.mubr.f32.gmra.mrb[0].mxu0 %v602
        %v685 = vpop.f32.mrb[0].mxu0
        %v686 = vadd.f32 %v590, %v685
        %v687 = vpop.f32.mrb[0].mxu0
        %688 = vdwg.mxu0
        %v689 = vmul.f32 %v671, 0.25
        %v690 = vmul.f32 %v676, 0.25
        %v691 = vmul.f32 %v681, 0.25
        %v692 = vmul.f32 %v686, 0.25
        %v693 = vld [vmem:[%s5] sm:$0xff]
        %v694 = vld [vmem:[%s5 + $0x8] sm:$0xff]
        %v695 = vld [vmem:[%s5 + $0x10] sm:$0xff]
        %v696 = vld [vmem:[%s5 + $0x18] sm:$0xff]
        %v697 = vld [vmem:[%s8] sm:$0xff]
        %v698 = vld [vmem:[%s8 + $0x8] sm:$0xff]
        %v699 = vld [vmem:[%s8 + $0x10] sm:$0xff]
        %v700 = vld [vmem:[%s8 + $0x18] sm:$0xff]
        %702 = vset.pattern.permute.xlu0 0
        %703 = vperm.xlu0 %702, %v697
        %v704 = vpop.permute.xlu0 %703
        %707 = vset.pattern.permute.xlu0 0
        %708 = vperm.xlu0 %707, %v698
        %v709 = vpop.permute.xlu0 %708
        %712 = vset.pattern.permute.xlu0 0
        %713 = vperm.xlu0 %712, %v699
        %v714 = vpop.permute.xlu0 %713
        %717 = vset.pattern.permute.xlu0 0
        %718 = vperm.xlu0 %717, %v700
        %v719 = vpop.permute.xlu0 %718
        %v722 = vsel %vm434, %v693, 0
        %v725 = vsel %vm434, %v694, 0
        %v728 = vsel %vm434, %v695, 0
        %v731 = vsel %vm434, %v696, 0
        %733 = vmatprep.subr.mxu0 0.0
        %734 = vmatpush1.msra.mxu0 %v560
        %735 = vmatprep.subr.mxu0 0.0
        %736 = vmatpush1.msra.mxu0 %v561
        %737 = vmatprep.subr.mxu0 0.0
        %738 = vmatpush1.msra.mxu0 %v562
        %739 = vmatprep.subr.mxu0 0.0
        %740 = vmatpush1.msra.mxu0 %v563
        %741 = vmatprep.subr.mxu0 0.0
        %742 = vmatpush1.msra.mxu0 0.0
        %743 = vmatprep.subr.mxu0 0.0
        %744 = vmatpush1.msra.mxu0 0.0
        %745 = vmatprep.subr.mxu0 0.0
        %746 = vmatpush1.msra.mxu0 0.0
        %747 = vmatprep.subr.mxu0 0.0
        %748 = vmatpush1.msra.mxu0 0.0
        %749 = vmatprep.subr.mxu0 0.0
        %750 = vmatpush1.msra.mxu0 0.0
        %751 = vmatprep.subr.mxu0 0.0
        %752 = vmatpush1.msra.mxu0 0.0
        %753 = vmatprep.subr.mxu0 0.0
        %754 = vmatpush1.msra.mxu0 0.0
        %755 = vmatprep.subr.mxu0 0.0
        %756 = vmatpush1.msra.mxu0 0.0
        %757 = vmatprep.subr.mxu0 0.0
        %758 = vmatpush1.msra.mxu0 0.0
        %759 = vmatprep.subr.mxu0 0.0
        %760 = vmatpush1.msra.mxu0 0.0
        %761 = vmatprep.subr.mxu0 0.0
        %762 = vmatpush1.msra.mxu0 0.0
        %763 = vmatprep.subr.mxu0 0.0
        %764 = vmatpush1.msra.mxu0 0.0
        %765 = vmatprep.subr.mxu0 0.0
        %766 = vmatpush1.msra.mxu0 0.0
        %767 = vmatprep.subr.mxu0 0.0
        %768 = vmatpush1.msra.mxu0 0.0
        %769 = vmatprep.subr.mxu0 0.0
        %770 = vmatpush1.msra.mxu0 0.0
        %771 = vmatprep.subr.mxu0 0.0
        %772 = vmatpush1.msra.mxu0 0.0
        %773 = vmatprep.subr.mxu0 0.0
        %774 = vmatpush1.msra.mxu0 0.0
        %775 = vmatprep.subr.mxu0 0.0
        %776 = vmatpush1.msra.mxu0 0.0
        %777 = vmatprep.subr.mxu0 0.0
        %778 = vmatpush1.msra.mxu0 0.0
        %779 = vmatprep.subr.mxu0 0.0
        %780 = vmatpush1.msra.mxu0 0.0
        %781 = vmatprep.subr.mxu0 0.0
        %782 = vmatpush1.msra.mxu0 0.0
        %783 = vmatprep.subr.mxu0 0.0
        %784 = vmatpush1.msra.mxu0 0.0
        %785 = vmatprep.subr.mxu0 0.0
        %786 = vmatpush1.msra.mxu0 0.0
        %787 = vmatprep.subr.mxu0 0.0
        %788 = vmatpush1.msra.mxu0 0.0
        %789 = vmatprep.subr.mxu0 0.0
        %790 = vmatpush1.msra.mxu0 0.0
        %791 = vmatprep.subr.mxu0 0.0
        %792 = vmatpush1.msra.mxu0 0.0
        %793 = vmatprep.subr.mxu0 0.0
        %794 = vmatpush1.msra.mxu0 0.0
        %795 = vmatprep.subr.mxu0 0.0
        %796 = vmatpush1.msra.mxu0 0.0
        %797 = vmatprep.mubr.f32.mxu0 0.0
        %798 = vmatmul.mubr.f32.gmra.mrb[0].mxu0 %v722
        %v799 = vpop.f32.mrb[0].mxu0
        %v800 = vadd.f32 %v704, %v799
        %v801 = vpop.f32.mrb[0].mxu0
        %802 = vmatprep.mubr.f32.mxu0 0.0
        %803 = vmatmul.mubr.f32.gmra.mrb[0].mxu0 %v725
        %v804 = vpop.f32.mrb[0].mxu0
        %v805 = vadd.f32 %v709, %v804
        %v806 = vpop.f32.mrb[0].mxu0
        %807 = vmatprep.mubr.f32.mxu0 0.0
        %808 = vmatmul.mubr.f32.gmra.mrb[0].mxu0 %v728
        %v809 = vpop.f32.mrb[0].mxu0
        %v810 = vadd.f32 %v714, %v809
        %v811 = vpop.f32.mrb[0].mxu0
        %812 = vmatprep.mubr.f32.mxu0 0.0
        %813 = vmatmul.mubr.f32.gmra.mrb[0].mxu0 %v731
        %v814 = vpop.f32.mrb[0].mxu0
        %v815 = vadd.f32 %v719, %v814
        %v816 = vpop.f32.mrb[0].mxu0
        %817 = vdwg.mxu0
        %v818 = vld [vmem:[%s6] sm:$0xff]
        %v819 = vld [vmem:[%s6 + $0x8] sm:$0xff]
        %v820 = vld [vmem:[%s6 + $0x10] sm:$0xff]
        %v821 = vld [vmem:[%s6 + $0x18] sm:$0xff]
        %v822 = vld [vmem:[%s9] sm:$0xff]
        %v823 = vld [vmem:[%s9 + $0x8] sm:$0xff]
        %v824 = vld [vmem:[%s9 + $0x10] sm:$0xff]
        %v825 = vld [vmem:[%s9 + $0x18] sm:$0xff]
        %827 = vset.pattern.permute.xlu0 0
        %828 = vperm.xlu0 %827, %v822
        %v829 = vpop.permute.xlu0 %828
        %832 = vset.pattern.permute.xlu0 0
        %833 = vperm.xlu0 %832, %v823
        %v834 = vpop.permute.xlu0 %833
        %837 = vset.pattern.permute.xlu0 0
        %838 = vperm.xlu0 %837, %v824
        %v839 = vpop.permute.xlu0 %838
        %842 = vset.pattern.permute.xlu0 0
        %843 = vperm.xlu0 %842, %v825
        %v844 = vpop.permute.xlu0 %843
        %v847 = vsel %vm434, %v818, 0
        %v850 = vsel %vm434, %v819, 0
        %v853 = vsel %vm434, %v820, 0
        %v856 = vsel %vm434, %v821, 0
        %858 = vmatprep.subr.mxu0 0.0
        %859 = vmatpush1.msra.mxu0 %v560
        %860 = vmatprep.subr.mxu0 0.0
        %861 = vmatpush1.msra.mxu0 %v561
        %862 = vmatprep.subr.mxu0 0.0
        %863 = vmatpush1.msra.mxu0 %v562
        %864 = vmatprep.subr.mxu0 0.0
        %865 = vmatpush1.msra.mxu0 %v563
        %866 = vmatprep.subr.mxu0 0.0
        %867 = vmatpush1.msra.mxu0 0.0
        %868 = vmatprep.subr.mxu0 0.0
        %869 = vmatpush1.msra.mxu0 0.0
        %870 = vmatprep.subr.mxu0 0.0
        %871 = vmatpush1.msra.mxu0 0.0
        %872 = vmatprep.subr.mxu0 0.0
        %873 = vmatpush1.msra.mxu0 0.0
        %874 = vmatprep.subr.mxu0 0.0
        %875 = vmatpush1.msra.mxu0 0.0
        %876 = vmatprep.subr.mxu0 0.0
        %877 = vmatpush1.msra.mxu0 0.0
        %878 = vmatprep.subr.mxu0 0.0
        %879 = vmatpush1.msra.mxu0 0.0
        %880 = vmatprep.subr.mxu0 0.0
        %881 = vmatpush1.msra.mxu0 0.0
        %882 = vmatprep.subr.mxu0 0.0
        %883 = vmatpush1.msra.mxu0 0.0
        %884 = vmatprep.subr.mxu0 0.0
        %885 = vmatpush1.msra.mxu0 0.0
        %886 = vmatprep.subr.mxu0 0.0
        %887 = vmatpush1.msra.mxu0 0.0
        %888 = vmatprep.subr.mxu0 0.0
        %889 = vmatpush1.msra.mxu0 0.0
        %890 = vmatprep.subr.mxu0 0.0
        %891 = vmatpush1.msra.mxu0 0.0
        %892 = vmatprep.subr.mxu0 0.0
        %893 = vmatpush1.msra.mxu0 0.0
        %894 = vmatprep.subr.mxu0 0.0
        %895 = vmatpush1.msra.mxu0 0.0
        %896 = vmatprep.subr.mxu0 0.0
        %897 = vmatpush1.msra.mxu0 0.0
        %898 = vmatprep.subr.mxu0 0.0
        %899 = vmatpush1.msra.mxu0 0.0
        %900 = vmatprep.subr.mxu0 0.0
        %901 = vmatpush1.msra.mxu0 0.0
        %902 = vmatprep.subr.mxu0 0.0
        %903 = vmatpush1.msra.mxu0 0.0
        %904 = vmatprep.subr.mxu0 0.0
        %905 = vmatpush1.msra.mxu0 0.0
        %906 = vmatprep.subr.mxu0 0.0
        %907 = vmatpush1.msra.mxu0 0.0
        %908 = vmatprep.subr.mxu0 0.0
        %909 = vmatpush1.msra.mxu0 0.0
        %910 = vmatprep.subr.mxu0 0.0
        %911 = vmatpush1.msra.mxu0 0.0
        %912 = vmatprep.subr.mxu0 0.0
        %913 = vmatpush1.msra.mxu0 0.0
        %914 = vmatprep.subr.mxu0 0.0
        %915 = vmatpush1.msra.mxu0 0.0
        %916 = vmatprep.subr.mxu0 0.0
        %917 = vmatpush1.msra.mxu0 0.0
        %918 = vmatprep.subr.mxu0 0.0
        %919 = vmatpush1.msra.mxu0 0.0
        %920 = vmatprep.subr.mxu0 0.0
        %921 = vmatpush1.msra.mxu0 0.0
        %922 = vmatprep.mubr.f32.mxu0 0.0
        %923 = vmatmul.mubr.f32.gmra.mrb[0].mxu0 %v847
        %v924 = vpop.f32.mrb[0].mxu0
        %v925 = vadd.f32 %v829, %v924
        %v926 = vpop.f32.mrb[0].mxu0
        %927 = vmatprep.mubr.f32.mxu0 0.0
        %928 = vmatmul.mubr.f32.gmra.mrb[0].mxu0 %v850
        %v929 = vpop.f32.mrb[0].mxu0
        %v930 = vadd.f32 %v834, %v929
        %v931 = vpop.f32.mrb[0].mxu0
        %932 = vmatprep.mubr.f32.mxu0 0.0
        %933 = vmatmul.mubr.f32.gmra.mrb[0].mxu0 %v853
        %v934 = vpop.f32.mrb[0].mxu0
        %v935 = vadd.f32 %v839, %v934
        %v936 = vpop.f32.mrb[0].mxu0
        %937 = vmatprep.mubr.f32.mxu0 0.0
        %938 = vmatmul.mubr.f32.gmra.mrb[0].mxu0 %v856
        %v939 = vpop.f32.mrb[0].mxu0
        %v940 = vadd.f32 %v844, %v939
        %v941 = vpop.f32.mrb[0].mxu0
        %942 = vdwg.mxu0
        %943 = vmatprep.subr.mxu0 0.0
        %944 = vmatpush1.msra.mxu0 %v425
        %945 = vmatprep.subr.mxu0 0.0
        %946 = vmatpush1.msra.mxu0 %v426
        %947 = vmatprep.subr.mxu0 0.0
        %948 = vmatpush1.msra.mxu0 %v427
        %949 = vmatprep.subr.mxu0 0.0
        %950 = vmatpush1.msra.mxu0 %v428
        %951 = vmatprep.subr.mxu0 0.0
        %952 = vmatpush1.msra.mxu0 0.0
        %953 = vmatprep.subr.mxu0 0.0
        %954 = vmatpush1.msra.mxu0 0.0
        %955 = vmatprep.subr.mxu0 0.0
        %956 = vmatpush1.msra.mxu0 0.0
        %957 = vmatprep.subr.mxu0 0.0
        %958 = vmatpush1.msra.mxu0 0.0
        %959 = vmatprep.subr.mxu0 0.0
        %960 = vmatpush1.msra.mxu0 0.0
        %961 = vmatprep.subr.mxu0 0.0
        %962 = vmatpush1.msra.mxu0 0.0
        %963 = vmatprep.subr.mxu0 0.0
        %964 = vmatpush1.msra.mxu0 0.0
        %965 = vmatprep.subr.mxu0 0.0
        %966 = vmatpush1.msra.mxu0 0.0
        %967 = vmatprep.subr.mxu0 0.0
        %968 = vmatpush1.msra.mxu0 0.0
        %969 = vmatprep.subr.mxu0 0.0
        %970 = vmatpush1.msra.mxu0 0.0
        %971 = vmatprep.subr.mxu0 0.0
        %972 = vmatpush1.msra.mxu0 0.0
        %973 = vmatprep.subr.mxu0 0.0
        %974 = vmatpush1.msra.mxu0 0.0
        %975 = vmatprep.subr.mxu0 0.0
        %976 = vmatpush1.msra.mxu0 0.0
        %977 = vmatprep.subr.mxu0 0.0
        %978 = vmatpush1.msra.mxu0 0.0
        %979 = vmatprep.subr.mxu0 0.0
        %980 = vmatpush1.msra.mxu0 0.0
        %981 = vmatprep.subr.mxu0 0.0
        %982 = vmatpush1.msra.mxu0 0.0
        %983 = vmatprep.subr.mxu0 0.0
        %984 = vmatpush1.msra.mxu0 0.0
        %985 = vmatprep.subr.mxu0 0.0
        %986 = vmatpush1.msra.mxu0 0.0
        %987 = vmatprep.subr.mxu0 0.0
        %988 = vmatpush1.msra.mxu0 0.0
        %989 = vmatprep.subr.mxu0 0.0
        %990 = vmatpush1.msra.mxu0 0.0
        %991 = vmatprep.subr.mxu0 0.0
        %992 = vmatpush1.msra.mxu0 0.0
        %993 = vmatprep.subr.mxu0 0.0
        %994 = vmatpush1.msra.mxu0 0.0
        %995 = vmatprep.subr.mxu0 0.0
        %996 = vmatpush1.msra.mxu0 0.0
        %997 = vmatprep.subr.mxu0 0.0
        %998 = vmatpush1.msra.mxu0 0.0
        %999 = vmatprep.subr.mxu0 0.0
        %1000 = vmatpush1.msra.mxu0 0.0
        %1001 = vmatprep.subr.mxu0 0.0
        %1002 = vmatpush1.msra.mxu0 0.0
        %1003 = vmatprep.subr.mxu0 0.0
        %1004 = vmatpush1.msra.mxu0 0.0
        %1005 = vmatprep.subr.mxu0 0.0
        %1006 = vmatpush1.msra.mxu0 0.0
        %1007 = vmatprep.mubr.f32.mxu0 0.0
        %1008 = vmatmul.mubr.f32.gmra.mrb[0].mxu0 %v722
        %v1009 = vpop.f32.mrb[0].mxu0
        %v1010 = vadd.f32 %v704, %v1009
        %v1011 = vpop.f32.mrb[0].mxu0
        %1012 = vmatprep.mubr.f32.mxu0 0.0
        %1013 = vmatmul.mubr.f32.gmra.mrb[0].mxu0 %v725
        %v1014 = vpop.f32.mrb[0].mxu0
        %v1015 = vadd.f32 %v709, %v1014
        %v1016 = vpop.f32.mrb[0].mxu0
        %1017 = vmatprep.mubr.f32.mxu0 0.0
        %1018 = vmatmul.mubr.f32.gmra.mrb[0].mxu0 %v728
        %v1019 = vpop.f32.mrb[0].mxu0
        %v1020 = vadd.f32 %v714, %v1019
        %v1021 = vpop.f32.mrb[0].mxu0
        %1022 = vmatprep.mubr.f32.mxu0 0.0
        %1023 = vmatmul.mubr.f32.gmra.mrb[0].mxu0 %v731
        %v1024 = vpop.f32.mrb[0].mxu0
        %v1025 = vadd.f32 %v719, %v1024
        %v1026 = vpop.f32.mrb[0].mxu0
        %1027 = vdwg.mxu0
        %1028 = vmatprep.subr.mxu0 0.0
        %1029 = vmatpush1.msra.mxu0 %v425
        %1030 = vmatprep.subr.mxu0 0.0
        %1031 = vmatpush1.msra.mxu0 %v426
        %1032 = vmatprep.subr.mxu0 0.0
        %1033 = vmatpush1.msra.mxu0 %v427
        %1034 = vmatprep.subr.mxu0 0.0
        %1035 = vmatpush1.msra.mxu0 %v428
        %1036 = vmatprep.subr.mxu0 0.0
        %1037 = vmatpush1.msra.mxu0 0.0
        %1038 = vmatprep.subr.mxu0 0.0
        %1039 = vmatpush1.msra.mxu0 0.0
        %1040 = vmatprep.subr.mxu0 0.0
        %1041 = vmatpush1.msra.mxu0 0.0
        %1042 = vmatprep.subr.mxu0 0.0
        %1043 = vmatpush1.msra.mxu0 0.0
        %1044 = vmatprep.subr.mxu0 0.0
        %1045 = vmatpush1.msra.mxu0 0.0
        %1046 = vmatprep.subr.mxu0 0.0
        %1047 = vmatpush1.msra.mxu0 0.0
        %1048 = vmatprep.subr.mxu0 0.0
        %1049 = vmatpush1.msra.mxu0 0.0
        %1050 = vmatprep.subr.mxu0 0.0
        %1051 = vmatpush1.msra.mxu0 0.0
        %1052 = vmatprep.subr.mxu0 0.0
        %1053 = vmatpush1.msra.mxu0 0.0
        %1054 = vmatprep.subr.mxu0 0.0
        %1055 = vmatpush1.msra.mxu0 0.0
        %1056 = vmatprep.subr.mxu0 0.0
        %1057 = vmatpush1.msra.mxu0 0.0
        %1058 = vmatprep.subr.mxu0 0.0
        %1059 = vmatpush1.msra.mxu0 0.0
        %1060 = vmatprep.subr.mxu0 0.0
        %1061 = vmatpush1.msra.mxu0 0.0
        %1062 = vmatprep.subr.mxu0 0.0
        %1063 = vmatpush1.msra.mxu0 0.0
        %1064 = vmatprep.subr.mxu0 0.0
        %1065 = vmatpush1.msra.mxu0 0.0
        %1066 = vmatprep.subr.mxu0 0.0
        %1067 = vmatpush1.msra.mxu0 0.0
        %1068 = vmatprep.subr.mxu0 0.0
        %1069 = vmatpush1.msra.mxu0 0.0
        %1070 = vmatprep.subr.mxu0 0.0
        %1071 = vmatpush1.msra.mxu0 0.0
        %1072 = vmatprep.subr.mxu0 0.0
        %1073 = vmatpush1.msra.mxu0 0.0
        %1074 = vmatprep.subr.mxu0 0.0
        %1075 = vmatpush1.msra.mxu0 0.0
        %1076 = vmatprep.subr.mxu0 0.0
        %1077 = vmatpush1.msra.mxu0 0.0
        %1078 = vmatprep.subr.mxu0 0.0
        %1079 = vmatpush1.msra.mxu0 0.0
        %1080 = vmatprep.subr.mxu0 0.0
        %1081 = vmatpush1.msra.mxu0 0.0
        %1082 = vmatprep.subr.mxu0 0.0
        %1083 = vmatpush1.msra.mxu0 0.0
        %1084 = vmatprep.subr.mxu0 0.0
        %1085 = vmatpush1.msra.mxu0 0.0
        %1086 = vmatprep.subr.mxu0 0.0
        %1087 = vmatpush1.msra.mxu0 0.0
        %1088 = vmatprep.subr.mxu0 0.0
        %1089 = vmatpush1.msra.mxu0 0.0
        %1090 = vmatprep.subr.mxu0 0.0
        %1091 = vmatpush1.msra.mxu0 0.0
        %1092 = vmatprep.mubr.f32.mxu0 0.0
        %1093 = vmatmul.mubr.f32.gmra.mrb[0].mxu0 %v847
        %v1094 = vpop.f32.mrb[0].mxu0
        %v1095 = vadd.f32 %v829, %v1094
        %v1096 = vpop.f32.mrb[0].mxu0
        %1097 = vmatprep.mubr.f32.mxu0 0.0
        %1098 = vmatmul.mubr.f32.gmra.mrb[0].mxu0 %v850
        %v1099 = vpop.f32.mrb[0].mxu0
        %v1100 = vadd.f32 %v834, %v1099
        %v1101 = vpop.f32.mrb[0].mxu0
        %1102 = vmatprep.mubr.f32.mxu0 0.0
        %1103 = vmatmul.mubr.f32.gmra.mrb[0].mxu0 %v853
        %v1104 = vpop.f32.mrb[0].mxu0
        %v1105 = vadd.f32 %v839, %v1104
        %v1106 = vpop.f32.mrb[0].mxu0
        %1107 = vmatprep.mubr.f32.mxu0 0.0
        %1108 = vmatmul.mubr.f32.gmra.mrb[0].mxu0 %v856
        %v1109 = vpop.f32.mrb[0].mxu0
        %v1110 = vadd.f32 %v844, %v1109
        %v1111 = vpop.f32.mrb[0].mxu0
        %1112 = vdwg.mxu0
        %vm1113 = vcmask 15360
        %v1115 = vsel %vm1113, %v689, 0
        %v1118 = vsel %vm1113, %v690, 0
        %v1121 = vsel %vm1113, %v691, 0
        %v1124 = vsel %vm1113, %v692, 0
        %vm1126 = vcmask 1041408
        %v1128 = vsel %vm1126, %v433, 0
        %1130 = vmatprep.subr.mxu0 0.0
        %1131 = vmatpush1.msra.mxu0 %v1128
        %1132 = vmatprep.subr.mxu0 0.0
        %1133 = vmatpush1.msra.mxu0 0.0
        %1134 = vmatprep.subr.mxu0 0.0
        %1135 = vmatpush1.msra.mxu0 0.0
        %1136 = vmatprep.subr.mxu0 0.0
        %1137 = vmatpush1.msra.mxu0 0.0
        %1138 = vmatprep.subr.mxu0 0.0
        %1139 = vmatpush1.msra.mxu0 0.0
        %1140 = vmatprep.subr.mxu0 0.0
        %1141 = vmatpush1.msra.mxu0 0.0
        %1142 = vmatprep.subr.mxu0 0.0
        %1143 = vmatpush1.msra.mxu0 0.0
        %1144 = vmatprep.subr.mxu0 0.0
        %1145 = vmatpush1.msra.mxu0 0.0
        %1146 = vmatprep.subr.mxu0 0.0
        %1147 = vmatpush1.msra.mxu0 0.0
        %1148 = vmatprep.subr.mxu0 0.0
        %1149 = vmatpush1.msra.mxu0 0.0
        %1150 = vmatprep.subr.mxu0 0.0
        %1151 = vmatpush1.msra.mxu0 0.0
        %1152 = vmatprep.subr.mxu0 0.0
        %1153 = vmatpush1.msra.mxu0 0.0
        %1154 = vmatprep.subr.mxu0 0.0
        %1155 = vmatpush1.msra.mxu0 0.0
        %1156 = vmatprep.subr.mxu0 0.0
        %1157 = vmatpush1.msra.mxu0 0.0
        %1158 = vmatprep.subr.mxu0 0.0
        %1159 = vmatpush1.msra.mxu0 0.0
        %1160 = vmatprep.subr.mxu0 0.0
        %1161 = vmatpush1.msra.mxu0 0.0
        %1162 = vmatprep.subr.mxu0 0.0
        %1163 = vmatpush1.msra.mxu0 0.0
        %1164 = vmatprep.subr.mxu0 0.0
        %1165 = vmatpush1.msra.mxu0 0.0
        %1166 = vmatprep.subr.mxu0 0.0
        %1167 = vmatpush1.msra.mxu0 0.0
        %1168 = vmatprep.subr.mxu0 0.0
        %1169 = vmatpush1.msra.mxu0 0.0
        %1170 = vmatprep.subr.mxu0 0.0
        %1171 = vmatpush1.msra.mxu0 0.0
        %1172 = vmatprep.subr.mxu0 0.0
        %1173 = vmatpush1.msra.mxu0 0.0
        %1174 = vmatprep.subr.mxu0 0.0
        %1175 = vmatpush1.msra.mxu0 0.0
        %1176 = vmatprep.subr.mxu0 0.0
        %1177 = vmatpush1.msra.mxu0 0.0
        %1178 = vmatprep.subr.mxu0 0.0
        %1179 = vmatpush1.msra.mxu0 0.0
        %1180 = vmatprep.subr.mxu0 0.0
        %1181 = vmatpush1.msra.mxu0 0.0
        %1182 = vmatprep.subr.mxu0 0.0
        %1183 = vmatpush1.msra.mxu0 0.0
        %1184 = vmatprep.subr.mxu0 0.0
        %1185 = vmatpush1.msra.mxu0 0.0
        %1186 = vmatprep.subr.mxu0 0.0
        %1187 = vmatpush1.msra.mxu0 0.0
        %1188 = vmatprep.subr.mxu0 0.0
        %1189 = vmatpush1.msra.mxu0 0.0
        %1190 = vmatprep.subr.mxu0 0.0
        %1191 = vmatpush1.msra.mxu0 0.0
        %1192 = vmatprep.subr.mxu0 0.0
        %1193 = vmatpush1.msra.mxu0 0.0
        %1194 = vmatprep.mubr.f32.mxu0 0.0
        %1195 = vmatmul.mubr.f32.gmra.mrb[0].mxu0 %v1115
        %v1196 = vpop.f32.mrb[0].mxu0
        %v1197 = vadd.f32 0.0, %v1196
        %v1198 = vpop.f32.mrb[0].mxu0
        %1199 = vmatprep.mubr.f32.mxu0 0.0
        %1200 = vmatmul.mubr.f32.gmra.mrb[0].mxu0 %v1118
        %v1201 = vpop.f32.mrb[0].mxu0
        %v1202 = vadd.f32 0.0, %v1201
        %v1203 = vpop.f32.mrb[0].mxu0
        %1204 = vmatprep.mubr.f32.mxu0 0.0
        %1205 = vmatmul.mubr.f32.gmra.mrb[0].mxu0 %v1121
        %v1206 = vpop.f32.mrb[0].mxu0
        %v1207 = vadd.f32 0.0, %v1206
        %v1208 = vpop.f32.mrb[0].mxu0
        %1209 = vmatprep.mubr.f32.mxu0 0.0
        %1210 = vmatmul.mubr.f32.gmra.mrb[0].mxu0 %v1124
        %v1211 = vpop.f32.mrb[0].mxu0
        %v1212 = vadd.f32 0.0, %v1211
        %v1213 = vpop.f32.mrb[0].mxu0
        %1214 = vdwg.mxu0
        %v1215 = vmul.f32 %v1197, %v1010
        %v1216 = vmul.f32 %v1202, %v1015
        %v1217 = vmul.f32 %v1207, %v1020
        %v1218 = vmul.f32 %v1212, %v1025
        %v1219 = vsel %vm434, %v1215, 0.0
        %v1220 = vsel %vm434, %v1216, 0.0
        %v1221 = vadd.f32 %v1219, %v1220
        %v1222 = vrot.slane %v1221, 4
        %v1223 = vadd.f32 %v1221, %v1222
        %v1224 = vrot.slane %v1223, 2
        %v1225 = vadd.f32 %v1223, %v1224
        %v1226 = vrot.slane %v1225, 1
        %v1227 = vadd.f32 %v1225, %v1226
        %v1228 = vsel %vm434, %v1217, 0.0
        %v1229 = vsel %vm434, %v1218, 0.0
        %v1230 = vadd.f32 %v1228, %v1229
        %v1231 = vrot.slane %v1230, 4
        %v1232 = vadd.f32 %v1230, %v1231
        %v1233 = vrot.slane %v1232, 2
        %v1234 = vadd.f32 %v1232, %v1233
        %v1235 = vrot.slane %v1234, 1
        %v1236 = vadd.f32 %v1234, %v1235
        %v1237 = vmul.f32 %v689, %v800
        %v1238 = vmul.f32 %v690, %v805
        %v1239 = vmul.f32 %v691, %v810
        %v1240 = vmul.f32 %v692, %v815
        %v1241 = vsel %vm1113, %v1237, 0.0
        %v1242 = vsel %vm1113, %v1238, 0.0
        %v1243 = vadd.f32 %v1241, %v1242
        %v1244 = vrot.slane %v1243, 4
        %v1245 = vadd.f32 %v1243, %v1244
        %v1246 = vrot.slane %v1245, 2
        %v1247 = vadd.f32 %v1245, %v1246
        %v1248 = vrot.slane %v1247, 1
        %v1249 = vadd.f32 %v1247, %v1248
        %v1250 = vsel %vm1113, %v1239, 0.0
        %v1251 = vsel %vm1113, %v1240, 0.0
        %v1252 = vadd.f32 %v1250, %v1251
        %v1253 = vrot.slane %v1252, 4
        %v1254 = vadd.f32 %v1252, %v1253
        %v1255 = vrot.slane %v1254, 2
        %v1256 = vadd.f32 %v1254, %v1255
        %v1257 = vrot.slane %v1256, 1
        %v1258 = vadd.f32 %v1256, %v1257
        %vm1259 = vcmp.gt.f32.partialorder %v433, 0.0
        %v1260 = vsel %vm1259, 1, 0
        %vm1261 = vcmp.eq.s32.totalorder %v1260, 1
        %v1262 = vsel %vm1261, %v1227, -1e+30
        %v1263 = vsel %vm1261, %v1236, -1e+30
        %vm1264 = vcmask 254976
        %v1265 = vsel %vm1264, %v1262, -inf
        %1266 = vmax.xlane.f32.xlu0 %v1265
        %v1267 = vpop.xlane.xlu0 %1266
        %v1268 = vsel %vm1264, %v1263, -inf
        %1269 = vmax.xlane.f32.xlu0 %v1268
        %v1270 = vpop.xlane.xlu0 %1269
        %1274 = vbcast.lane.b32.xlu0 %v1249, 256
        %v1275 = vpop.permute.xlu0 %1274
        %1277 = vbcast.lane.b32.xlu0 %v1258, 256
        %v1278 = vpop.permute.xlu0 %1277
        %v1281 = vmax.f32 %v1267, %v1275
        %v1282 = vmax.f32 %v1270, %v1278
        %1285 = vset.pattern.permute.xlu0 0
        %1286 = vperm.xlu0 %1285, %v1281
        %v1287 = vpop.permute.xlu0 %1286
        %1288 = vset.pattern.permute.xlu0 0
        %1289 = vperm.xlu0 %1288, %v1282
        %v1290 = vpop.permute.xlu0 %1289
        %v1291 = vlaneseq
        %v1292 = vand.u32 %v1291, 127
        %v1293 = vlaneseq
        %v1294 = vshrl.u32 %v1293, 7
        %v1295 = vsub.s32 %v1292, %v1294
        %v1296 = vrot.slane %v1287, %v1295
        %v1297 = vlaneseq
        %v1298 = vshrl.u32 %v1297, 7
        %v1299 = vsub.s32 %v1292, %v1298
        %v1300 = vrot.slane %v1290, %v1299
        %vm1301 = vcmask 1041409
        %v1302 = vsel %vm1301, %v1300, %v1296
        %v1303 = vsel %vm1113, %v1302, 0
        %1305 = vmatprep.subr.mxu0 0.0
        %1306 = vmatpush1.msra.mxu0 %v1128
        %1307 = vmatprep.subr.mxu0 0.0
        %1308 = vmatpush1.msra.mxu0 0.0
        %1309 = vmatprep.subr.mxu0 0.0
        %1310 = vmatpush1.msra.mxu0 0.0
        %1311 = vmatprep.subr.mxu0 0.0
        %1312 = vmatpush1.msra.mxu0 0.0
        %1313 = vmatprep.subr.mxu0 0.0
        %1314 = vmatpush1.msra.mxu0 0.0
        %1315 = vmatprep.subr.mxu0 0.0
        %1316 = vmatpush1.msra.mxu0 0.0
        %1317 = vmatprep.subr.mxu0 0.0
        %1318 = vmatpush1.msra.mxu0 0.0
        %1319 = vmatprep.subr.mxu0 0.0
        %1320 = vmatpush1.msra.mxu0 0.0
        %1321 = vmatprep.subr.mxu0 0.0
        %1322 = vmatpush1.msra.mxu0 0.0
        %1323 = vmatprep.subr.mxu0 0.0
        %1324 = vmatpush1.msra.mxu0 0.0
        %1325 = vmatprep.subr.mxu0 0.0
        %1326 = vmatpush1.msra.mxu0 0.0
        %1327 = vmatprep.subr.mxu0 0.0
        %1328 = vmatpush1.msra.mxu0 0.0
        %1329 = vmatprep.subr.mxu0 0.0
        %1330 = vmatpush1.msra.mxu0 0.0
        %1331 = vmatprep.subr.mxu0 0.0
        %1332 = vmatpush1.msra.mxu0 0.0
        %1333 = vmatprep.subr.mxu0 0.0
        %1334 = vmatpush1.msra.mxu0 0.0
        %1335 = vmatprep.subr.mxu0 0.0
        %1336 = vmatpush1.msra.mxu0 0.0
        %1337 = vmatprep.subr.mxu0 0.0
        %1338 = vmatpush1.msra.mxu0 0.0
        %1339 = vmatprep.subr.mxu0 0.0
        %1340 = vmatpush1.msra.mxu0 0.0
        %1341 = vmatprep.subr.mxu0 0.0
        %1342 = vmatpush1.msra.mxu0 0.0
        %1343 = vmatprep.subr.mxu0 0.0
        %1344 = vmatpush1.msra.mxu0 0.0
        %1345 = vmatprep.subr.mxu0 0.0
        %1346 = vmatpush1.msra.mxu0 0.0
        %1347 = vmatprep.subr.mxu0 0.0
        %1348 = vmatpush1.msra.mxu0 0.0
        %1349 = vmatprep.subr.mxu0 0.0
        %1350 = vmatpush1.msra.mxu0 0.0
        %1351 = vmatprep.subr.mxu0 0.0
        %1352 = vmatpush1.msra.mxu0 0.0
        %1353 = vmatprep.subr.mxu0 0.0
        %1354 = vmatpush1.msra.mxu0 0.0
        %1355 = vmatprep.subr.mxu0 0.0
        %1356 = vmatpush1.msra.mxu0 0.0
        %1357 = vmatprep.subr.mxu0 0.0
        %1358 = vmatpush1.msra.mxu0 0.0
        %1359 = vmatprep.subr.mxu0 0.0
        %1360 = vmatpush1.msra.mxu0 0.0
        %1361 = vmatprep.subr.mxu0 0.0
        %1362 = vmatpush1.msra.mxu0 0.0
        %1363 = vmatprep.subr.mxu0 0.0
        %1364 = vmatpush1.msra.mxu0 0.0
        %1365 = vmatprep.subr.mxu0 0.0
        %1366 = vmatpush1.msra.mxu0 0.0
        %1367 = vmatprep.subr.mxu0 0.0
        %1368 = vmatpush1.msra.mxu0 0.0
        %1369 = vmatprep.mubr.f32.mxu0 0.0
        %1370 = vmatmul.mubr.f32.gmra.mrb[0].mxu0 %v1303
        %v1371 = vpop.f32.mrb[0].mxu0
        %v1372 = vadd.f32 0.0, %v1371
        %v1373 = vpop.f32.mrb[0].mxu0
        %1374 = vdwg.mxu0
        %v1376 = vrot.slane %v1372, 1
        %v1379 = vsub.f32 %v1227, %v1372
        %v1380 = vsub.f32 %v1236, %v1376
        %v1381 = vmul.f32 %v1379, 1.442695
        %v1382 = vpow.pop %v1381
        %v1383 = vmul.f32 %v1380, 1.442695
        %v1384 = vpow.pop %v1383
        %v1387 = vsub.f32 %v1249, %v1296
        %v1388 = vsub.f32 %v1258, %v1300
        %v1389 = vmul.f32 %v1387, 1.442695
        %v1390 = vpow.pop %v1389
        %v1391 = vmul.f32 %v1388, 1.442695
        %v1392 = vpow.pop %v1391
        %v1395 = vrot.slane %v1384, 7
        %v1396 = vsel %vm1301, %v1395, %v1382
        %v1399 = vrot.slane %v1392, 7
        %v1400 = vsel %vm1301, %v1399, %v1390
        %v1402 = vsel %vm434, %v1396, 0
        %1404 = vmatprep.subr.mxu0 0.0
        %1405 = vmatpush1.msra.mxu0 %v429
        %1406 = vmatprep.subr.mxu0 0.0
        %1407 = vmatpush1.msra.mxu0 %v430
        %1408 = vmatprep.subr.mxu0 0.0
        %1409 = vmatpush1.msra.mxu0 %v431
        %1410 = vmatprep.subr.mxu0 0.0
        %1411 = vmatpush1.msra.mxu0 %v432
        %1412 = vmatprep.subr.mxu0 0.0
        %1413 = vmatpush1.msra.mxu0 0.0
        %1414 = vmatprep.subr.mxu0 0.0
        %1415 = vmatpush1.msra.mxu0 0.0
        %1416 = vmatprep.subr.mxu0 0.0
        %1417 = vmatpush1.msra.mxu0 0.0
        %1418 = vmatprep.subr.mxu0 0.0
        %1419 = vmatpush1.msra.mxu0 0.0
        %1420 = vmatprep.subr.mxu0 0.0
        %1421 = vmatpush1.msra.mxu0 0.0
        %1422 = vmatprep.subr.mxu0 0.0
        %1423 = vmatpush1.msra.mxu0 0.0
        %1424 = vmatprep.subr.mxu0 0.0
        %1425 = vmatpush1.msra.mxu0 0.0
        %1426 = vmatprep.subr.mxu0 0.0
        %1427 = vmatpush1.msra.mxu0 0.0
        %1428 = vmatprep.subr.mxu0 0.0
        %1429 = vmatpush1.msra.mxu0 0.0
        %1430 = vmatprep.subr.mxu0 0.0
        %1431 = vmatpush1.msra.mxu0 0.0
        %1432 = vmatprep.subr.mxu0 0.0
        %1433 = vmatpush1.msra.mxu0 0.0
        %1434 = vmatprep.subr.mxu0 0.0
        %1435 = vmatpush1.msra.mxu0 0.0
        %1436 = vmatprep.subr.mxu0 0.0
        %1437 = vmatpush1.msra.mxu0 0.0
        %1438 = vmatprep.subr.mxu0 0.0
        %1439 = vmatpush1.msra.mxu0 0.0
        %1440 = vmatprep.subr.mxu0 0.0
        %1441 = vmatpush1.msra.mxu0 0.0
        %1442 = vmatprep.subr.mxu0 0.0
        %1443 = vmatpush1.msra.mxu0 0.0
        %1444 = vmatprep.subr.mxu0 0.0
        %1445 = vmatpush1.msra.mxu0 0.0
        %1446 = vmatprep.subr.mxu0 0.0
        %1447 = vmatpush1.msra.mxu0 0.0
        %1448 = vmatprep.subr.mxu0 0.0
        %1449 = vmatpush1.msra.mxu0 0.0
        %1450 = vmatprep.subr.mxu0 0.0
        %1451 = vmatpush1.msra.mxu0 0.0
        %1452 = vmatprep.subr.mxu0 0.0
        %1453 = vmatpush1.msra.mxu0 0.0
        %1454 = vmatprep.subr.mxu0 0.0
        %1455 = vmatpush1.msra.mxu0 0.0
        %1456 = vmatprep.subr.mxu0 0.0
        %1457 = vmatpush1.msra.mxu0 0.0
        %1458 = vmatprep.subr.mxu0 0.0
        %1459 = vmatpush1.msra.mxu0 0.0
        %1460 = vmatprep.subr.mxu0 0.0
        %1461 = vmatpush1.msra.mxu0 0.0
        %1462 = vmatprep.subr.mxu0 0.0
        %1463 = vmatpush1.msra.mxu0 0.0
        %1464 = vmatprep.subr.mxu0 0.0
        %1465 = vmatpush1.msra.mxu0 0.0
        %1466 = vmatprep.subr.mxu0 0.0
        %1467 = vmatpush1.msra.mxu0 0.0
        %1468 = vmatprep.mubr.f32.mxu0 0.0
        %1469 = vmatmul.mubr.f32.gmra.mrb[0].mxu0 %v1402
        %v1470 = vpop.f32.mrb[0].mxu0
        %v1471 = vadd.f32 %v1400, %v1470
        %v1472 = vpop.f32.mrb[0].mxu0
        %1473 = vdwg.mxu0
        %v1474 = vrcp.pop %v1471
        %v1475 = vlaneseq
        %v1476 = vshrl.u32 %v1475, 7
        %v1477 = vsub.s32 0, %v1476
        %v1478 = vrot.slane %v1382, %v1477
        %v1479 = vlaneseq
        %v1480 = vshrl.u32 %v1479, 7
        %v1481 = vsub.s32 0, %v1480
        %v1482 = vrot.slane %v1384, %v1481
        %v1483 = vmul.f32 %v1095, %v1478
        %v1484 = vmul.f32 %v1100, %v1478
        %v1485 = vmul.f32 %v1105, %v1482
        %v1486 = vmul.f32 %v1110, %v1482
        %v1487 = vlaneseq
        %v1488 = vshrl.u32 %v1487, 7
        %v1489 = vsub.s32 0, %v1488
        %v1490 = vrot.slane %v1390, %v1489
        %v1491 = vlaneseq
        %v1492 = vshrl.u32 %v1491, 7
        %v1493 = vsub.s32 0, %v1492
        %v1494 = vrot.slane %v1392, %v1493
        %v1495 = vmul.f32 %v925, %v1490
        %v1496 = vmul.f32 %v930, %v1490
        %v1497 = vmul.f32 %v935, %v1494
        %v1498 = vmul.f32 %v940, %v1494
        %v1500 = vsel %vm434, %v1483, 0
        %v1503 = vsel %vm434, %v1484, 0
        %v1506 = vsel %vm434, %v1485, 0
        %v1509 = vsel %vm434, %v1486, 0
        %1511 = vmatprep.subr.mxu0 0.0
        %1512 = vmatpush1.msra.mxu0 %v429
        %1513 = vmatprep.subr.mxu0 0.0
        %1514 = vmatpush1.msra.mxu0 %v430
        %1515 = vmatprep.subr.mxu0 0.0
        %1516 = vmatpush1.msra.mxu0 %v431
        %1517 = vmatprep.subr.mxu0 0.0
        %1518 = vmatpush1.msra.mxu0 %v432
        %1519 = vmatprep.subr.mxu0 0.0
        %1520 = vmatpush1.msra.mxu0 0.0
        %1521 = vmatprep.subr.mxu0 0.0
        %1522 = vmatpush1.msra.mxu0 0.0
        %1523 = vmatprep.subr.mxu0 0.0
        %1524 = vmatpush1.msra.mxu0 0.0
        %1525 = vmatprep.subr.mxu0 0.0
        %1526 = vmatpush1.msra.mxu0 0.0
        %1527 = vmatprep.subr.mxu0 0.0
        %1528 = vmatpush1.msra.mxu0 0.0
        %1529 = vmatprep.subr.mxu0 0.0
        %1530 = vmatpush1.msra.mxu0 0.0
        %1531 = vmatprep.subr.mxu0 0.0
        %1532 = vmatpush1.msra.mxu0 0.0
        %1533 = vmatprep.subr.mxu0 0.0
        %1534 = vmatpush1.msra.mxu0 0.0
        %1535 = vmatprep.subr.mxu0 0.0
        %1536 = vmatpush1.msra.mxu0 0.0
        %1537 = vmatprep.subr.mxu0 0.0
        %1538 = vmatpush1.msra.mxu0 0.0
        %1539 = vmatprep.subr.mxu0 0.0
        %1540 = vmatpush1.msra.mxu0 0.0
        %1541 = vmatprep.subr.mxu0 0.0
        %1542 = vmatpush1.msra.mxu0 0.0
        %1543 = vmatprep.subr.mxu0 0.0
        %1544 = vmatpush1.msra.mxu0 0.0
        %1545 = vmatprep.subr.mxu0 0.0
        %1546 = vmatpush1.msra.mxu0 0.0
        %1547 = vmatprep.subr.mxu0 0.0
        %1548 = vmatpush1.msra.mxu0 0.0
        %1549 = vmatprep.subr.mxu0 0.0
        %1550 = vmatpush1.msra.mxu0 0.0
        %1551 = vmatprep.subr.mxu0 0.0
        %1552 = vmatpush1.msra.mxu0 0.0
        %1553 = vmatprep.subr.mxu0 0.0
        %1554 = vmatpush1.msra.mxu0 0.0
        %1555 = vmatprep.subr.mxu0 0.0
        %1556 = vmatpush1.msra.mxu0 0.0
        %1557 = vmatprep.subr.mxu0 0.0
        %1558 = vmatpush1.msra.mxu0 0.0
        %1559 = vmatprep.subr.mxu0 0.0
        %1560 = vmatpush1.msra.mxu0 0.0
        %1561 = vmatprep.subr.mxu0 0.0
        %1562 = vmatpush1.msra.mxu0 0.0
        %1563 = vmatprep.subr.mxu0 0.0
        %1564 = vmatpush1.msra.mxu0 0.0
        %1565 = vmatprep.subr.mxu0 0.0
        %1566 = vmatpush1.msra.mxu0 0.0
        %1567 = vmatprep.subr.mxu0 0.0
        %1568 = vmatpush1.msra.mxu0 0.0
        %1569 = vmatprep.subr.mxu0 0.0
        %1570 = vmatpush1.msra.mxu0 0.0
        %1571 = vmatprep.subr.mxu0 0.0
        %1572 = vmatpush1.msra.mxu0 0.0
        %1573 = vmatprep.subr.mxu0 0.0
        %1574 = vmatpush1.msra.mxu0 0.0
        %1575 = vmatprep.mubr.f32.mxu0 0.0
        %1576 = vmatmul.mubr.f32.gmra.mrb[0].mxu0 %v1500
        %v1577 = vpop.f32.mrb[0].mxu0
        %v1578 = vadd.f32 %v1495, %v1577
        %v1579 = vpop.f32.mrb[0].mxu0
        %1580 = vmatprep.mubr.f32.mxu0 0.0
        %1581 = vmatmul.mubr.f32.gmra.mrb[0].mxu0 %v1503
        %v1582 = vpop.f32.mrb[0].mxu0
        %v1583 = vadd.f32 %v1496, %v1582
        %v1584 = vpop.f32.mrb[0].mxu0
        %1585 = vmatprep.mubr.f32.mxu0 0.0
        %1586 = vmatmul.mubr.f32.gmra.mrb[0].mxu0 %v1506
        %v1587 = vpop.f32.mrb[0].mxu0
        %v1588 = vadd.f32 %v1497, %v1587
        %v1589 = vpop.f32.mrb[0].mxu0
        %1590 = vmatprep.mubr.f32.mxu0 0.0
        %1591 = vmatmul.mubr.f32.gmra.mrb[0].mxu0 %v1509
        %v1592 = vpop.f32.mrb[0].mxu0
        %v1593 = vadd.f32 %v1498, %v1592
        %v1594 = vpop.f32.mrb[0].mxu0
        %1595 = vdwg.mxu0
        %v1598 = vunpack.c.l.s4 1966171168
        %v1599 = vunpack.c.0.s8 %v1598
        %v1600 = vlaneseq
        %v1601 = vshrl.u32 %v1600, 7
        %v1602 = vsub.s32 %v1599, %v1601
        %v1603 = vrot.slane %v1474, %v1602
        %v1604 = vcombine.high %v1603, %v1603
        %v1606 = vunpack.c.l.s4 1966171168
        %v1607 = vunpack.c.0.s8 %v1606
        %v1608 = vlaneseq
        %v1609 = vshrl.u32 %v1608, 7
        %v1610 = vsub.s32 %v1607, %v1609
        %v1611 = vrot.slane %v1603, %v1610
        %v1613 = vunpack.c.l.s4 1966171168
        %v1614 = vunpack.c.0.s8 %v1613
        %v1615 = vlaneseq
        %v1616 = vshrl.u32 %v1615, 7
        %v1617 = vsub.s32 %v1614, %v1616
        %v1618 = vrot.slane %v1604, %v1617
        %v1619 = vlaneseq
        %v1620 = vshrl.u32 %v1619, 7
        %v1621 = vsub.s32 0, %v1620
        %v1622 = vrot.slane %v1611, %v1621
        %v1623 = vlaneseq
        %v1624 = vshrl.u32 %v1623, 7
        %v1625 = vsub.s32 0, %v1624
        %v1626 = vrot.slane %v1618, %v1625
        %v1629 = vmul.f32 %v1578, %v1622
        %v1630 = vmul.f32 %v1583, %v1622
        %v1631 = vmul.f32 %v1588, %v1626
        %v1632 = vmul.f32 %v1593, %v1626
        %v1633 = vld [vmem:[%s10] sm:$0xff]
        %v1634 = vld [vmem:[%s10 + $0x8] sm:$0xff]
        %v1635 = vld [vmem:[%s10 + $0x10] sm:$0xff]
        %v1636 = vld [vmem:[%s10 + $0x18] sm:$0xff]
        %v1637 = vld [vmem:[%s11] sm:$0x1]
        %v1639 = vlaneseq
        %v1640 = vshrl.u32 %v1639, 7
        %v1641 = vsub.s32 0, %v1640
        %v1642 = vrot.slane %v1637, %v1641
        %1644 = vxpose.xlu0.b32.start [1/16] %v1629, 128
        %1645 = vxpose.xlu0.b32.cont [2/16] %v1630, 128
        %1646 = vxpose.xlu0.b32.cont [3/16] %v1631, 128
        %1647 = vxpose.xlu0.b32.cont [4/16] %v1632, 128
        %1648 = vxpose.xlu0.b32.cont [5/16] 0.0, 128
        %1649 = vxpose.xlu0.b32.cont [6/16] 0.0, 128
        %1650 = vxpose.xlu0.b32.cont [7/16] 0.0, 128
        %1651 = vxpose.xlu0.b32.cont [8/16] 0.0, 128
        %1652 = vxpose.xlu0.b32.cont [9/16] 0.0, 128
        %1653 = vxpose.xlu0.b32.cont [10/16] 0.0, 128
        %1654 = vxpose.xlu0.b32.cont [11/16] 0.0, 128
        %1655 = vxpose.xlu0.b32.cont [12/16] 0.0, 128
        %1656 = vxpose.xlu0.b32.cont [13/16] 0.0, 128
        %1657 = vxpose.xlu0.b32.cont [14/16] 0.0, 128
        %1658 = vxpose.xlu0.b32.cont [15/16] 0.0, 128
        %1659 = vxpose.xlu0.b32.end [16/16] 0.0, 128
        %v1660 = vpop.trf.xlu0
        %v1661 = vpop.trf.xlu0
        %v1662 = vpop.trf.xlu0
        %v1663 = vpop.trf.xlu0
        %v1664 = vpop.trf.xlu0
        %v1665 = vpop.trf.xlu0
        %v1666 = vpop.trf.xlu0
        %v1667 = vpop.trf.xlu0
        %v1668 = vpop.trf.xlu0
        %v1669 = vpop.trf.xlu0
        %v1670 = vpop.trf.xlu0
        %v1671 = vpop.trf.xlu0
        %v1672 = vpop.trf.xlu0
        %v1673 = vpop.trf.xlu0
        %v1674 = vpop.trf.xlu0
        %v1675 = vpop.trf.xlu0
        %v1677 = vsel %vm434, %v1660, 0
        %1679 = vmatprep.subr.mxu0 0.0
        %1680 = vmatpush1.msra.mxu0 %v1633
        %1681 = vmatprep.subr.mxu0 0.0
        %1682 = vmatpush1.msra.mxu0 %v1634
        %1683 = vmatprep.subr.mxu0 0.0
        %1684 = vmatpush1.msra.mxu0 %v1635
        %1685 = vmatprep.subr.mxu0 0.0
        %1686 = vmatpush1.msra.mxu0 %v1636
        %1687 = vmatprep.subr.mxu0 0.0
        %1688 = vmatpush1.msra.mxu0 0.0
        %1689 = vmatprep.subr.mxu0 0.0
        %1690 = vmatpush1.msra.mxu0 0.0
        %1691 = vmatprep.subr.mxu0 0.0
        %1692 = vmatpush1.msra.mxu0 0.0
        %1693 = vmatprep.subr.mxu0 0.0
        %1694 = vmatpush1.msra.mxu0 0.0
        %1695 = vmatprep.subr.mxu0 0.0
        %1696 = vmatpush1.msra.mxu0 0.0
        %1697 = vmatprep.subr.mxu0 0.0
        %1698 = vmatpush1.msra.mxu0 0.0
        %1699 = vmatprep.subr.mxu0 0.0
        %1700 = vmatpush1.msra.mxu0 0.0
        %1701 = vmatprep.subr.mxu0 0.0
        %1702 = vmatpush1.msra.mxu0 0.0
        %1703 = vmatprep.subr.mxu0 0.0
        %1704 = vmatpush1.msra.mxu0 0.0
        %1705 = vmatprep.subr.mxu0 0.0
        %1706 = vmatpush1.msra.mxu0 0.0
        %1707 = vmatprep.subr.mxu0 0.0
        %1708 = vmatpush1.msra.mxu0 0.0
        %1709 = vmatprep.subr.mxu0 0.0
        %1710 = vmatpush1.msra.mxu0 0.0
        %1711 = vmatprep.subr.mxu0 0.0
        %1712 = vmatpush1.msra.mxu0 0.0
        %1713 = vmatprep.subr.mxu0 0.0
        %1714 = vmatpush1.msra.mxu0 0.0
        %1715 = vmatprep.subr.mxu0 0.0
        %1716 = vmatpush1.msra.mxu0 0.0
        %1717 = vmatprep.subr.mxu0 0.0
        %1718 = vmatpush1.msra.mxu0 0.0
        %1719 = vmatprep.subr.mxu0 0.0
        %1720 = vmatpush1.msra.mxu0 0.0
        %1721 = vmatprep.subr.mxu0 0.0
        %1722 = vmatpush1.msra.mxu0 0.0
        %1723 = vmatprep.subr.mxu0 0.0
        %1724 = vmatpush1.msra.mxu0 0.0
        %1725 = vmatprep.subr.mxu0 0.0
        %1726 = vmatpush1.msra.mxu0 0.0
        %1727 = vmatprep.subr.mxu0 0.0
        %1728 = vmatpush1.msra.mxu0 0.0
        %1729 = vmatprep.subr.mxu0 0.0
        %1730 = vmatpush1.msra.mxu0 0.0
        %1731 = vmatprep.subr.mxu0 0.0
        %1732 = vmatpush1.msra.mxu0 0.0
        %1733 = vmatprep.subr.mxu0 0.0
        %1734 = vmatpush1.msra.mxu0 0.0
        %1735 = vmatprep.subr.mxu0 0.0
        %1736 = vmatpush1.msra.mxu0 0.0
        %1737 = vmatprep.subr.mxu0 0.0
        %1738 = vmatpush1.msra.mxu0 0.0
        %1739 = vmatprep.subr.mxu0 0.0
        %1740 = vmatpush1.msra.mxu0 0.0
        %1741 = vmatprep.subr.mxu0 0.0
        %1742 = vmatpush1.msra.mxu0 0.0
        %1743 = vmatprep.mubr.f32.mxu0 0.0
        %1744 = vmatmul.mubr.f32.gmra.mrb[0].mxu0 %v1677
        %v1745 = vpop.f32.mrb[0].mxu0
        %v1746 = vadd.f32 %v1642, %v1745
        %v1747 = vpop.f32.mrb[0].mxu0
        %1748 = vdwg.mxu0
        %1749 = vst.msk [vmem:[%s419] sm:$0x3] %vm1264, %v1746
        %s1750 = sand.u32 %s292, 1
        %s1751 = scalar_lea.sflag [#allocation4], %s1750
        %s1752 = sand.u32 %s292, 1
        %s1753 = smul.addr %s1752, 2
        %s1754 = scalar_lea.vmem [#allocation5], %s1753
        // Predicated region
        $region73: #{tpu_custom_call.1} parent=67 // pred_check
          %p1755 = pneg %p302
        $region74: #{tpu_custom_call.1} parent=67 // pred_check_branch
          %1757 = sbr.rel (%p1755) target = $region76
        $region75: #{tpu_custom_call.1} parent=67 // pred_region
          %s1759 = ssub.s32 32, 32
          %1760 = vsyncadd %s1751, %s1759
          %s1761 = smul.addr %s27, 32
          %s1762 = scalar_lea.hbm %s12, %s1761
          %s1764 = sshll.u32 %s1754, 4
          %s1765 = int_to_ptr.vmem [resolvable:$true] %s1764
          %1767 = dma.vmem_to_hbm [thread:$0]  %s1765, 32, %s1762, %s1751
        $region76: #{tpu_custom_call.1} parent=67 // pred_fallthru
          _
      $region68: #{tpu_custom_call.1} parent=5 // pred_fallthru
        _
      %p1768 = scmp.le.s32.totalorder 2, %s22
      // Predicated region
      $region77: #{tpu_custom_call.1} parent=5 // pred_check
        %p1769 = pneg %p1768
      $region78: #{tpu_custom_call.1} parent=5 // pred_check_branch
        %1771 = sbr.rel (%p1769) target = $region80
      $region79: #{tpu_custom_call.1} parent=5 // pred_region
        %s1772 = ssub.s32 %s22, 2
        // Predicated region
        $region81: #{tpu_custom_call.1} parent=79 // pred_check
          %p1773 = pneg %p308
        $region82: #{tpu_custom_call.1} parent=79 // pred_check_branch
          %1775 = sbr.rel (%p1773) target = $region84
        $region83: #{tpu_custom_call.1} parent=79 // pred_region
          %s1776 = sand.u32 %s293, 1
          %s1777 = scalar_lea.sflag [#allocation4], %s1776
          %s1778 = sand.u32 %s293, 1
          %s1779 = smul.addr %s1778, 2
          %s1780 = scalar_lea.vmem [#allocation5], %s1779
          %1781 = dma.done %s1777, 32
        $region84: #{tpu_custom_call.1} parent=79 // pred_fallthru
          _
      $region80: #{tpu_custom_call.1} parent=5 // pred_fallthru
        _
    $region6: #{tpu_custom_call.1} parent=1 // loop_footer
      %s26 = sadd.s32 1, %s22
    $region7: #{tpu_custom_call.1} parent=1 // loop_footer_branch
      %21 = sbr.rel target = $region3
    $region8: #{tpu_custom_call.1} parent=1 // loop_exit
      _
    %1782 = vsyncpa [#allocation3], 1
    %s1783 = scalar_lea.sflag [#allocation3], 1
    %1784 = vsyncpa %s1783, 1
    %1785 = vsyncpa [#allocation4], 1
    %s1786 = scalar_lea.sflag [#allocation4], 1
    %1787 = vsyncpa %s1786, 1

</llo_original>
